<compile_context>
chip_gen: v5e
topology: v5e:2x2
jax: 0.10.0
libtpu: 0.0.40
codegen_flags: <defaults>
</compile_context>

<pallas_src>
import functools

import jax
import jax.numpy as jnp
from jax.experimental import pallas as pl
from jax.experimental.pallas import tpu as pltpu


# -----------------------------------------------------------------------------
# Kernel 1: fused bilinear x2 upsample + concat + 1x1 conv + BN + ReLU
# -----------------------------------------------------------------------------
def _up_cat_conv1x1_bn_relu_kernel(fd1_ref, k_ref, s2_ref, w3a_ref, w3b_ref,
                                   shift_ref, o_ref):
    # fd1_ref  : (1, P1, C1)  low-res image, channel-last (pixels x channels)
    # k_ref    : (TP, P1)     rows of the bilinear interpolation matrix
    # s2_ref   : (1, TP, C2)  skip-connection pixels, channel-last
    # w3a_ref  : (C1, Co)     1x1 weight (upsampled half of concat), BN-scaled
    # w3b_ref  : (C2, Co)     1x1 weight (s2 half of concat), BN-scaled
    # shift_ref: (1, Co)      folded conv-bias + BN shift
    # o_ref    : (1, TP, Co)  lane-dense output (Co = 128 on lanes)
    up = jnp.dot(k_ref[...], fd1_ref[0], preferred_element_type=jnp.float32)   # (TP, C1)
    z = jnp.dot(up, w3a_ref[...], preferred_element_type=jnp.float32)          # (TP, Co)
    z = z + jnp.dot(s2_ref[0], w3b_ref[...], preferred_element_type=jnp.float32)
    z = z + shift_ref[...]
    o_ref[0] = jnp.maximum(z, 0.0).astype(o_ref.dtype)


# -----------------------------------------------------------------------------
# Kernel 2: 3x3 conv (pad=1) + BN + ReLU, as 9 shifted MXU matmuls on a
#           flattened padded image (contiguous sublane slices per tap).
# -----------------------------------------------------------------------------
def _conv3x3_bn_relu_kernel(wpad, xf_ref, w_ref, shift_ref, o_ref):
    # wpad     : static padded row width (W2 + 2)
    # xf_ref   : (1, PP, Ci)  zero-padded image, flattened row-major,
    #            PP = (H2 + 3) * wpad   (one extra zero row to keep the
    #            largest tap slice in bounds)
    # w_ref    : (9, Ci, Co)  one (Ci, Co) matrix per 3x3 tap, BN-scaled
    # shift_ref: (1, Co)      folded conv-bias + BN shift
    # o_ref    : (1, PR, Co)  PR = H2 * wpad (rows in padded-width layout)
    pr = o_ref.shape[1]
    xf = xf_ref[0]                                        # (PP, Ci)
    acc = jnp.zeros((pr, w_ref.shape[2]), jnp.float32)
    for t in range(9):                                    # static unroll
        dy, dx = divmod(t, 3)
        off = dy * wpad + dx
        acc = acc + jnp.dot(xf[off:off + pr, :], w_ref[t],
                            preferred_element_type=jnp.float32)
    acc = acc + shift_ref[...]
    o_ref[0] = jnp.maximum(acc, 0.0).astype(o_ref.dtype)


# -----------------------------------------------------------------------------
# Wrapper helpers
# -----------------------------------------------------------------------------
def _linear_interp_matrix(out_size, in_size):
    """(out_size, in_size) 1-D linear interpolation matrix, align_corners=True."""
    if in_size == 1:
        return jnp.ones((out_size, 1), jnp.float32)
    if out_size == 1:
        return jnp.zeros((1, in_size), jnp.float32).at[0, 0].set(1.0)
    src = jnp.arange(out_size, dtype=jnp.float32) * ((in_size - 1) / (out_size - 1))
    i0 = jnp.clip(jnp.floor(src).astype(jnp.int32), 0, in_size - 1)
    i1 = jnp.clip(i0 + 1, 0, in_size - 1)
    frac = src - i0.astype(jnp.float32)
    rows = jnp.arange(out_size)
    m = jnp.zeros((out_size, in_size), jnp.float32)
    m = m.at[rows, i0].add(1.0 - frac)
    m = m.at[rows, i1].add(frac)
    return m


def _fold_bn(gamma, beta, mean, var, conv_bias, eps):
    # BN(conv(x) + b) == conv(x) * scale + shift   (inference mode)
    scale = gamma * jax.lax.rsqrt(var + eps)
    shift = beta + (conv_bias - mean) * scale
    return scale, shift


def base22_forward(s2, fd1, params, *, eps=1e-5, tile_p=None):
    """Base22.forward(s2, fd1) -> fd2.  NCHW in / NCHW out (PyTorch layout)."""
    n, c1, h, w = fd1.shape
    ns, c2, h2, w2 = s2.shape
    assert ns == n and h2 == 2 * h and w2 == 2 * w, "s2 must be 2x fd1 spatially"
    co3 = params["w3"].shape[0]
    co4 = params["w4"].shape[0]
    assert params["w3"].shape[1] == c1 + c2
    assert params["w4"].shape[1] == co3
    p1, p2 = h * w, h2 * w2

    # ---- small constants built once in the wrapper --------------------------
    # Bilinear x2 (align_corners=True) as a single (P2, P1) matrix.
    kmat = jnp.kron(_linear_interp_matrix(h2, h), _linear_interp_matrix(w2, w))
    # Split the 1x1 weight so the concat never materializes:
    #   conv3(cat([up, s2])) == up @ w3a + s2 @ w3b
    w3_2d = params["w3"].reshape(co3, c1 + c2)
    w3a = jnp.transpose(w3_2d[:, :c1])                       # (C1, Co3)
    w3b = jnp.transpose(w3_2d[:, c1:])                       # (C2, Co3)
    # Per-tap (Ci, Co) matrices for the 3x3 conv.
    w4_taps = jnp.transpose(params["w4"], (2, 3, 1, 0)).reshape(9, co3, co4)
    # TODO(synk): BatchNorm runs in inference mode (running stats folded into a
    # per-channel affine); training-mode batch statistics are not computed.
    scale3, shift3 = _fold_bn(params["g3"], params["be3"], params["m3"],
                              params["v3"], params["b3"], eps)
    scale4, shift4 = _fold_bn(params["g4"], params["be4"], params["m4"],
                              params["v4"], params["b4"], eps)
    # Fold the BN scale directly into the conv weights (conv is linear in w).
    w3a = w3a * scale3[None, :]
    w3b = w3b * scale3[None, :]
    w4_taps = w4_taps * scale4[None, None, :]
    shift3 = shift3.reshape(1, co3)
    shift4 = shift4.reshape(1, co4)

    # ---- NCHW -> channel-last once at the module boundary --------------------
    fd1_t = jnp.transpose(fd1, (0, 2, 3, 1)).reshape(n, p1, c1)
    s2_t = jnp.transpose(s2, (0, 2, 3, 1)).reshape(n, p2, c2)

    # ---- output-pixel tile for kernel 1 ---------------------------------------
    if tile_p is None:
        tile_p = p2 if p2 <= 4096 else 4096
    if p2 % tile_p != 0:       # ragged fall-back: one (full-image) tile per step
        tile_p = p2

    y1 = pl.pallas_call(
        _up_cat_conv1x1_bn_relu_kernel,
        out_shape=jax.ShapeDtypeStruct((n, p2, co3), jnp.float32),
        grid=(n, p2 // tile_p),
        in_specs=[
            pl.BlockSpec((1, p1, c1), lambda i, j: (i, 0, 0)),
            pl.BlockSpec((tile_p, p1), lambda i, j: (j, 0)),
            pl.BlockSpec((1, tile_p, c2), lambda i, j: (i, j, 0)),
            pl.BlockSpec((c1, co3), lambda i, j: (0, 0)),
            pl.BlockSpec((c2, co3), lambda i, j: (0, 0)),
            pl.BlockSpec((1, co3), lambda i, j: (0, 0)),
        ],
        out_specs=pl.BlockSpec((1, tile_p, co3), lambda i, j: (i, j, 0)),
        compiler_params=pltpu.CompilerParams(
            dimension_semantics=("parallel", "parallel")),
    )(fd1_t, kmat, s2_t, w3a, w3b, shift3)

    # ---- spatial zero-pad + flatten for the 3x3 conv (tiny XLA ops) ----------
    wpad = w2 + 2
    # pad: top 1, bottom 2 (one extra zero row keeps every tap slice in
    # bounds), left 1, right 1.
    xpad = jnp.pad(y1.reshape(n, h2, w2, co3), ((0, 0), (1, 2), (1, 1), (0, 0)))
    pp = (h2 + 3) * wpad
    pr = h2 * wpad
    xflat = xpad.reshape(n, pp, co3)

    y2 = pl.pallas_call(
        functools.partial(_conv3x3_bn_relu_kernel, wpad),
        out_shape=jax.ShapeDtypeStruct((n, pr, co4), jnp.float32),
        grid=(n,),
        in_specs=[
            pl.BlockSpec((1, pp, co3), lambda i: (i, 0, 0)),
            pl.BlockSpec((9, co3, co4), lambda i: (0, 0, 0)),
            pl.BlockSpec((1, co4), lambda i: (0, 0)),
        ],
        out_specs=pl.BlockSpec((1, pr, co4), lambda i: (i, 0, 0)),
        compiler_params=pltpu.CompilerParams(dimension_semantics=("parallel",)),
    )(xflat, w4_taps, shift4)

    # Drop the 2 wrap-around columns per row, then channel-last -> NCHW.
    out = y2.reshape(n, h2, wpad, co4)[:, :, :w2, :]
    return jnp.transpose(out, (0, 3, 1, 2))


# -----------------------------------------------------------------------------
# Pure-JAX reference (same math, XLA ops) for the correctness check
# -----------------------------------------------------------------------------
def _reference(s2, fd1, params, eps=1e-5):
    n, c1, h, w = fd1.shape
    h2, w2 = 2 * h, 2 * w
    a_h = _linear_interp_matrix(h2, h)
    a_w = _linear_interp_matrix(w2, w)
    up = jnp.einsum("nchw,Ih,Jw->ncIJ", fd1, a_h, a_w)
    x = jnp.concatenate([up, s2], axis=1)

    def conv_bn_relu(x, wt, b, g, be, m, v, pad):
        z = jax.lax.conv_general_dilated(
            x, wt, window_strides=(1, 1), padding=((pad, pad), (pad, pad)),
            dimension_numbers=("NCHW", "OIHW", "NCHW"))
        z = z + b[None, :, None, None]
        z = (z - m[None, :, None, None]) * jax.lax.rsqrt(v + eps)[None, :, None, None]
        z = z * g[None, :, None, None] + be[None, :, None, None]
        return jnp.maximum(z, 0.0)

    x = conv_bn_relu(x, params["w3"], params["b3"], params["g3"],
                     params["be3"], params["m3"], params["v3"], 0)
    x = conv_bn_relu(x, params["w4"], params["b4"], params["g4"],
                     params["be4"], params["m4"], params["v4"], 1)
    return x


if __name__ == "__main__":
    key = jax.random.PRNGKey(0)
    ks = jax.random.split(key, 12)

    # Small shapes consistent with Base22: fd1 (N,256,H,W), s2 (N,256,2H,2W).
    N, C_FD, C_S2 = 2, 256, 256
    H, W = 8, 8
    fd1 = jax.random.normal(ks[0], (N, C_FD, H, W), jnp.float32)
    s2 = jax.random.normal(ks[1], (N, C_S2, 2 * H, 2 * W), jnp.float32)

    params = dict(
        # conv3_2: 1x1, 512->128.  BaseConv init: weight ~ N(0, 0.01), bias = 0.
        w3=0.01 * jax.random.normal(ks[2], (128, C_FD + C_S2, 1, 1), jnp.float32),
        b3=jnp.zeros((128,), jnp.float32),
        g3=1.0 + 0.2 * jax.random.normal(ks[3], (128,), jnp.float32),
        be3=0.1 * jax.random.normal(ks[4], (128,), jnp.float32),
        m3=0.1 * jax.random.normal(ks[5], (128,), jnp.float32),
        v3=0.5 + jax.random.uniform(ks[6], (128,), jnp.float32),
        # conv4_2: 3x3, 128->128.
        w4=0.01 * jax.random.normal(ks[7], (128, 128, 3, 3), jnp.float32),
        b4=jnp.zeros((128,), jnp.float32),
        g4=1.0 + 0.2 * jax.random.normal(ks[8], (128,), jnp.float32),
        be4=0.1 * jax.random.normal(ks[9], (128,), jnp.float32),
        m4=0.1 * jax.random.normal(ks[10], (128,), jnp.float32),
        v4=0.5 + jax.random.uniform(ks[11], (128,), jnp.float32),
    )

    out = jax.jit(base22_forward)(s2, fd1, params)
    out = jax.block_until_ready(out)

    ref = _reference(s2, fd1, params)
    assert out.shape == (N, 128, 2 * H, 2 * W), out.shape
    assert jnp.allclose(out, ref, atol=1e-4, rtol=1e-3), (
        f"mismatch vs reference: max abs err = {jnp.max(jnp.abs(out - ref))}")
    print("KERNEL_OK")
</pallas_src>

<mosaic_0001>
module attributes {stable_mosaic.version = 11 : i64} {
  func.func @_up_cat_conv1x1_bn_relu_kernel(%arg0: i32, %arg1: i32, %arg2: memref<1x64x256xf32, #tpu.memory_space<vmem>>, %arg3: memref<256x64xf32, #tpu.memory_space<vmem>>, %arg4: memref<1x256x256xf32, #tpu.memory_space<vmem>>, %arg5: memref<256x128xf32, #tpu.memory_space<vmem>>, %arg6: memref<256x128xf32, #tpu.memory_space<vmem>>, %arg7: memref<1x128xf32, #tpu.memory_space<vmem>>, %arg8: memref<1x256x128xf32, #tpu.memory_space<vmem>>) attributes {dimension_semantics = [#tpu.dimension_semantics<parallel>, #tpu.dimension_semantics<parallel>], iteration_bounds = array<i64: 2, 1>, scalar_prefetch = 0 : i64, scratch_operands = 0 : i64, tpu.core_type = #tpu.core_type<tc>, window_params = [{transform_indices = @transform_0, window_bounds = array<i64: 1, 64, 256>}, {transform_indices = @transform_1, window_bounds = array<i64: 256, 64>}, {transform_indices = @transform_2, window_bounds = array<i64: 1, 256, 256>}, {pipeline_mode = #tpu.pipeline_mode<synchronous>, transform_indices = @transform_3, window_bounds = array<i64: 256, 128>}, {pipeline_mode = #tpu.pipeline_mode<synchronous>, transform_indices = @transform_4, window_bounds = array<i64: 256, 128>}, {pipeline_mode = #tpu.pipeline_mode<synchronous>, transform_indices = @transform_5, window_bounds = array<i64: 1, 128>}, {transform_indices = @transform_6, window_bounds = array<i64: 1, 256, 128>}]} {
    %c0 = arith.constant 0 : index
    %c0_0 = arith.constant 0 : index
    %0 = vector.load %arg3[%c0, %c0_0] : memref<256x64xf32, #tpu.memory_space<vmem>>, vector<256x64xf32>
    %c0_1 = arith.constant 0 : index
    %c0_2 = arith.constant 0 : index
    %c0_3 = arith.constant 0 : index
    %1 = vector.load %arg2[%c0_1, %c0_2, %c0_3] : memref<1x64x256xf32, #tpu.memory_space<vmem>>, vector<1x64x256xf32>
    %2 = vector.shape_cast %1 : vector<1x64x256xf32> to vector<64x256xf32>
    %cst = arith.constant dense<0.000000e+00> : vector<256x256xf32>
    %3 = tpu.matmul %0, %2, %cst {dimension_numbers = #tpu.dot_dimension_numbers<[1], [0], [0], [1], [0, 0, 1, 1], [], []>} : vector<256x64xf32>, vector<64x256xf32>, vector<256x256xf32> -> vector<256x256xf32>
    %c0_4 = arith.constant 0 : index
    %c0_5 = arith.constant 0 : index
    %4 = vector.load %arg5[%c0_4, %c0_5] : memref<256x128xf32, #tpu.memory_space<vmem>>, vector<256x128xf32>
    %cst_6 = arith.constant dense<0.000000e+00> : vector<256x128xf32>
    %5 = tpu.matmul %3, %4, %cst_6 {dimension_numbers = #tpu.dot_dimension_numbers<[1], [0], [0], [1], [0, 0, 1, 1], [], []>} : vector<256x256xf32>, vector<256x128xf32>, vector<256x128xf32> -> vector<256x128xf32>
    %c0_7 = arith.constant 0 : index
    %c0_8 = arith.constant 0 : index
    %c0_9 = arith.constant 0 : index
    %6 = vector.load %arg4[%c0_7, %c0_8, %c0_9] : memref<1x256x256xf32, #tpu.memory_space<vmem>>, vector<1x256x256xf32>
    %7 = vector.shape_cast %6 : vector<1x256x256xf32> to vector<256x256xf32>
    %c0_10 = arith.constant 0 : index
    %c0_11 = arith.constant 0 : index
    %8 = vector.load %arg6[%c0_10, %c0_11] : memref<256x128xf32, #tpu.memory_space<vmem>>, vector<256x128xf32>
    %cst_12 = arith.constant dense<0.000000e+00> : vector<256x128xf32>
    %9 = tpu.matmul %7, %8, %cst_12 {dimension_numbers = #tpu.dot_dimension_numbers<[1], [0], [0], [1], [0, 0, 1, 1], [], []>} : vector<256x256xf32>, vector<256x128xf32>, vector<256x128xf32> -> vector<256x128xf32>
    %10 = arith.addf %5, %9 : vector<256x128xf32>
    %c0_13 = arith.constant 0 : index
    %c0_14 = arith.constant 0 : index
    %11 = vector.load %arg7[%c0_13, %c0_14] : memref<1x128xf32, #tpu.memory_space<vmem>>, vector<1x128xf32>
    %12 = vector.broadcast %11 : vector<1x128xf32> to vector<256x128xf32>
    %13 = arith.addf %10, %12 : vector<256x128xf32>
    %cst_15 = arith.constant 0.000000e+00 : f32
    %14 = vector.broadcast %cst_15 : f32 to vector<256x128xf32>
    %15 = arith.maximumf %13, %14 : vector<256x128xf32>
    %c0_16 = arith.constant 0 : index
    %c0_17 = arith.constant 0 : index
    %c0_18 = arith.constant 0 : index
    %16 = vector.load %arg8[%c0_16, %c0_17, %c0_18] : memref<1x256x128xf32, #tpu.memory_space<vmem>>, vector<1x256x128xf32>
    %17 = vector.shape_cast %16 : vector<1x256x128xf32> to vector<256x128xf32>
    %18 = vector.shape_cast %15 : vector<256x128xf32> to vector<1x256x128xf32>
    tpu.vector_store %arg8[%c0_16, %c0_17, %c0_18], %18 {strides = array<i32>} : memref<1x256x128xf32, #tpu.memory_space<vmem>>, vector<1x256x128xf32>,
    return
  }
  func.func @transform_0(%arg0: i32, %arg1: i32) -> (i32, i32, i32) {
    %c0_i32 = arith.constant 0 : i32
    %c0_i32_0 = arith.constant 0 : i32
    %c0_i32_1 = arith.constant 0 : i32
    return %arg0, %c0_i32, %c0_i32_0 : i32, i32, i32
  }
  func.func @transform_1(%arg0: i32, %arg1: i32) -> (i32, i32) {
    %c0_i32 = arith.constant 0 : i32
    %c0_i32_0 = arith.constant 0 : i32
    return %arg1, %c0_i32 : i32, i32
  }
  func.func @transform_2(%arg0: i32, %arg1: i32) -> (i32, i32, i32) {
    %c0_i32 = arith.constant 0 : i32
    %c0_i32_0 = arith.constant 0 : i32
    return %arg0, %arg1, %c0_i32 : i32, i32, i32
  }
  func.func @transform_3(%arg0: i32, %arg1: i32) -> (i32, i32) {
    %c0_i32 = arith.constant 0 : i32
    %c0_i32_0 = arith.constant 0 : i32
    %c0_i32_1 = arith.constant 0 : i32
    return %c0_i32, %c0_i32_0 : i32, i32
  }
  func.func @transform_4(%arg0: i32, %arg1: i32) -> (i32, i32) {
    %c0_i32 = arith.constant 0 : i32
    %c0_i32_0 = arith.constant 0 : i32
    %c0_i32_1 = arith.constant 0 : i32
    return %c0_i32, %c0_i32_0 : i32, i32
  }
  func.func @transform_5(%arg0: i32, %arg1: i32) -> (i32, i32) {
    %c0_i32 = arith.constant 0 : i32
    %c0_i32_0 = arith.constant 0 : i32
    %c0_i32_1 = arith.constant 0 : i32
    return %c0_i32, %c0_i32_0 : i32, i32
  }
  func.func @transform_6(%arg0: i32, %arg1: i32) -> (i32, i32, i32) {
    %c0_i32 = arith.constant 0 : i32
    %c0_i32_0 = arith.constant 0 : i32
    return %arg0, %arg1, %c0_i32 : i32, i32, i32
  }
}

module attributes {stable_mosaic.version = 11 : i64} {
  func.func @_conv3x3_bn_relu_kernel(%arg0: i32, %arg1: memref<1x342x128xf32, #tpu.memory_space<vmem>>, %arg2: memref<9x128x128xf32, #tpu.memory_space<vmem>>, %arg3: memref<1x128xf32, #tpu.memory_space<vmem>>, %arg4: memref<1x288x128xf32, #tpu.memory_space<vmem>>) attributes {dimension_semantics = [#tpu.dimension_semantics<parallel>], iteration_bounds = array<i64: 2>, scalar_prefetch = 0 : i64, scratch_operands = 0 : i64, tpu.core_type = #tpu.core_type<tc>, window_params = [{transform_indices = @transform_0, window_bounds = array<i64: 1, 342, 128>}, {pipeline_mode = #tpu.pipeline_mode<synchronous>, transform_indices = @transform_1, window_bounds = array<i64: 9, 128, 128>}, {pipeline_mode = #tpu.pipeline_mode<synchronous>, transform_indices = @transform_2, window_bounds = array<i64: 1, 128>}, {transform_indices = @transform_3, window_bounds = array<i64: 1, 288, 128>}]} {
    %c0 = arith.constant 0 : index
    %c0_0 = arith.constant 0 : index
    %c0_1 = arith.constant 0 : index
    %0 = vector.load %arg1[%c0, %c0_0, %c0_1] : memref<1x342x128xf32, #tpu.memory_space<vmem>>, vector<1x342x128xf32>
    %1 = vector.shape_cast %0 : vector<1x342x128xf32> to vector<342x128xf32>
    %cst = arith.constant 0.000000e+00 : f32
    %2 = vector.broadcast %cst : f32 to vector<288x128xf32>
    %3 = vector.extract_strided_slice %1 {offsets = [0, 0], sizes = [288, 128], strides = [1, 1]} : vector<342x128xf32> to vector<288x128xf32>
    %c0_2 = arith.constant 0 : index
    %c0_3 = arith.constant 0 : index
    %c0_4 = arith.constant 0 : index
    %4 = vector.load %arg2[%c0_2, %c0_3, %c0_4] : memref<9x128x128xf32, #tpu.memory_space<vmem>>, vector<1x128x128xf32>
    %5 = vector.shape_cast %4 : vector<1x128x128xf32> to vector<128x128xf32>
    %cst_5 = arith.constant dense<0.000000e+00> : vector<288x128xf32>
    %6 = tpu.matmul %3, %5, %cst_5 {dimension_numbers = #tpu.dot_dimension_numbers<[1], [0], [0], [1], [0, 0, 1, 1], [], []>} : vector<288x128xf32>, vector<128x128xf32>, vector<288x128xf32> -> vector<288x128xf32>
    %7 = arith.addf %2, %6 : vector<288x128xf32>
    %8 = vector.extract_strided_slice %1 {offsets = [1, 0], sizes = [288, 128], strides = [1, 1]} : vector<342x128xf32> to vector<288x128xf32>
    %c1 = arith.constant 1 : index
    %c0_6 = arith.constant 0 : index
    %c0_7 = arith.constant 0 : index
    %9 = vector.load %arg2[%c1, %c0_6, %c0_7] : memref<9x128x128xf32, #tpu.memory_space<vmem>>, vector<1x128x128xf32>
    %10 = vector.shape_cast %9 : vector<1x128x128xf32> to vector<128x128xf32>
    %cst_8 = arith.constant dense<0.000000e+00> : vector<288x128xf32>
    %11 = tpu.matmul %8, %10, %cst_8 {dimension_numbers = #tpu.dot_dimension_numbers<[1], [0], [0], [1], [0, 0, 1, 1], [], []>} : vector<288x128xf32>, vector<128x128xf32>, vector<288x128xf32> -> vector<288x128xf32>
    %12 = arith.addf %7, %11 : vector<288x128xf32>
    %13 = vector.extract_strided_slice %1 {offsets = [2, 0], sizes = [288, 128], strides = [1, 1]} : vector<342x128xf32> to vector<288x128xf32>
    %c2 = arith.constant 2 : index
    %c0_9 = arith.constant 0 : index
    %c0_10 = arith.constant 0 : index
    %14 = vector.load %arg2[%c2, %c0_9, %c0_10] : memref<9x128x128xf32, #tpu.memory_space<vmem>>, vector<1x128x128xf32>
    %15 = vector.shape_cast %14 : vector<1x128x128xf32> to vector<128x128xf32>
    %cst_11 = arith.constant dense<0.000000e+00> : vector<288x128xf32>
    %16 = tpu.matmul %13, %15, %cst_11 {dimension_numbers = #tpu.dot_dimension_numbers<[1], [0], [0], [1], [0, 0, 1, 1], [], []>} : vector<288x128xf32>, vector<128x128xf32>, vector<288x128xf32> -> vector<288x128xf32>
    %17 = arith.addf %12, %16 : vector<288x128xf32>
    %18 = vector.extract_strided_slice %1 {offsets = [18, 0], sizes = [288, 128], strides = [1, 1]} : vector<342x128xf32> to vector<288x128xf32>
    %c3 = arith.constant 3 : index
    %c0_12 = arith.constant 0 : index
    %c0_13 = arith.constant 0 : index
    %19 = vector.load %arg2[%c3, %c0_12, %c0_13] : memref<9x128x128xf32, #tpu.memory_space<vmem>>, vector<1x128x128xf32>
    %20 = vector.shape_cast %19 : vector<1x128x128xf32> to vector<128x128xf32>
    %cst_14 = arith.constant dense<0.000000e+00> : vector<288x128xf32>
    %21 = tpu.matmul %18, %20, %cst_14 {dimension_numbers = #tpu.dot_dimension_numbers<[1], [0], [0], [1], [0, 0, 1, 1], [], []>} : vector<288x128xf32>, vector<128x128xf32>, vector<288x128xf32> -> vector<288x128xf32>
    %22 = arith.addf %17, %21 : vector<288x128xf32>
    %23 = vector.extract_strided_slice %1 {offsets = [19, 0], sizes = [288, 128], strides = [1, 1]} : vector<342x128xf32> to vector<288x128xf32>
    %c4 = arith.constant 4 : index
    %c0_15 = arith.constant 0 : index
    %c0_16 = arith.constant 0 : index
    %24 = vector.load %arg2[%c4, %c0_15, %c0_16] : memref<9x128x128xf32, #tpu.memory_space<vmem>>, vector<1x128x128xf32>
    %25 = vector.shape_cast %24 : vector<1x128x128xf32> to vector<128x128xf32>
    %cst_17 = arith.constant dense<0.000000e+00> : vector<288x128xf32>
    %26 = tpu.matmul %23, %25, %cst_17 {dimension_numbers = #tpu.dot_dimension_numbers<[1], [0], [0], [1], [0, 0, 1, 1], [], []>} : vector<288x128xf32>, vector<128x128xf32>, vector<288x128xf32> -> vector<288x128xf32>
    %27 = arith.addf %22, %26 : vector<288x128xf32>
    %28 = vector.extract_strided_slice %1 {offsets = [20, 0], sizes = [288, 128], strides = [1, 1]} : vector<342x128xf32> to vector<288x128xf32>
    %c5 = arith.constant 5 : index
    %c0_18 = arith.constant 0 : index
    %c0_19 = arith.constant 0 : index
    %29 = vector.load %arg2[%c5, %c0_18, %c0_19] : memref<9x128x128xf32, #tpu.memory_space<vmem>>, vector<1x128x128xf32>
    %30 = vector.shape_cast %29 : vector<1x128x128xf32> to vector<128x128xf32>
    %cst_20 = arith.constant dense<0.000000e+00> : vector<288x128xf32>
    %31 = tpu.matmul %28, %30, %cst_20 {dimension_numbers = #tpu.dot_dimension_numbers<[1], [0], [0], [1], [0, 0, 1, 1], [], []>} : vector<288x128xf32>, vector<128x128xf32>, vector<288x128xf32> -> vector<288x128xf32>
    %32 = arith.addf %27, %31 : vector<288x128xf32>
    %33 = vector.extract_strided_slice %1 {offsets = [36, 0], sizes = [288, 128], strides = [1, 1]} : vector<342x128xf32> to vector<288x128xf32>
    %c6 = arith.constant 6 : index
    %c0_21 = arith.constant 0 : index
    %c0_22 = arith.constant 0 : index
    %34 = vector.load %arg2[%c6, %c0_21, %c0_22] : memref<9x128x128xf32, #tpu.memory_space<vmem>>, vector<1x128x128xf32>
    %35 = vector.shape_cast %34 : vector<1x128x128xf32> to vector<128x128xf32>
    %cst_23 = arith.constant dense<0.000000e+00> : vector<288x128xf32>
    %36 = tpu.matmul %33, %35, %cst_23 {dimension_numbers = #tpu.dot_dimension_numbers<[1], [0], [0], [1], [0, 0, 1, 1], [], []>} : vector<288x128xf32>, vector<128x128xf32>, vector<288x128xf32> -> vector<288x128xf32>
    %37 = arith.addf %32, %36 : vector<288x128xf32>
    %38 = vector.extract_strided_slice %1 {offsets = [37, 0], sizes = [288, 128], strides = [1, 1]} : vector<342x128xf32> to vector<288x128xf32>
    %c7 = arith.constant 7 : index
    %c0_24 = arith.constant 0 : index
    %c0_25 = arith.constant 0 : index
    %39 = vector.load %arg2[%c7, %c0_24, %c0_25] : memref<9x128x128xf32, #tpu.memory_space<vmem>>, vector<1x128x128xf32>
    %40 = vector.shape_cast %39 : vector<1x128x128xf32> to vector<128x128xf32>
    %cst_26 = arith.constant dense<0.000000e+00> : vector<288x128xf32>
    %41 = tpu.matmul %38, %40, %cst_26 {dimension_numbers = #tpu.dot_dimension_numbers<[1], [0], [0], [1], [0, 0, 1, 1], [], []>} : vector<288x128xf32>, vector<128x128xf32>, vector<288x128xf32> -> vector<288x128xf32>
    %42 = arith.addf %37, %41 : vector<288x128xf32>
    %43 = vector.extract_strided_slice %1 {offsets = [38, 0], sizes = [288, 128], strides = [1, 1]} : vector<342x128xf32> to vector<288x128xf32>
    %c8 = arith.constant 8 : index
    %c0_27 = arith.constant 0 : index
    %c0_28 = arith.constant 0 : index
    %44 = vector.load %arg2[%c8, %c0_27, %c0_28] : memref<9x128x128xf32, #tpu.memory_space<vmem>>, vector<1x128x128xf32>
    %45 = vector.shape_cast %44 : vector<1x128x128xf32> to vector<128x128xf32>
    %cst_29 = arith.constant dense<0.000000e+00> : vector<288x128xf32>
    %46 = tpu.matmul %43, %45, %cst_29 {dimension_numbers = #tpu.dot_dimension_numbers<[1], [0], [0], [1], [0, 0, 1, 1], [], []>} : vector<288x128xf32>, vector<128x128xf32>, vector<288x128xf32> -> vector<288x128xf32>
    %47 = arith.addf %42, %46 : vector<288x128xf32>
    %c0_30 = arith.constant 0 : index
    %c0_31 = arith.constant 0 : index
    %48 = vector.load %arg3[%c0_30, %c0_31] : memref<1x128xf32, #tpu.memory_space<vmem>>, vector<1x128xf32>
    %49 = vector.broadcast %48 : vector<1x128xf32> to vector<288x128xf32>
    %50 = arith.addf %47, %49 : vector<288x128xf32>
    %cst_32 = arith.constant 0.000000e+00 : f32
    %51 = vector.broadcast %cst_32 : f32 to vector<288x128xf32>
    %52 = arith.maximumf %50, %51 : vector<288x128xf32>
    %c0_33 = arith.constant 0 : index
    %c0_34 = arith.constant 0 : index
    %c0_35 = arith.constant 0 : index
    %53 = vector.load %arg4[%c0_33, %c0_34, %c0_35] : memref<1x288x128xf32, #tpu.memory_space<vmem>>, vector<1x288x128xf32>
    %54 = vector.shape_cast %53 : vector<1x288x128xf32> to vector<288x128xf32>
    %55 = vector.shape_cast %52 : vector<288x128xf32> to vector<1x288x128xf32>
    tpu.vector_store %arg4[%c0_33, %c0_34, %c0_35], %55 {strides = array<i32>} : memref<1x288x128xf32, #tpu.memory_space<vmem>>, vector<1x288x128xf32>,
    return
  }
  func.func @transform_0(%arg0: i32) -> (i32, i32, i32) {
    %c0_i32 = arith.constant 0 : i32
    %c0_i32_0 = arith.constant 0 : i32
    %c0_i32_1 = arith.constant 0 : i32
    return %arg0, %c0_i32, %c0_i32_0 : i32, i32, i32
  }
  func.func @transform_1(%arg0: i32) -> (i32, i32, i32) {
    %c0_i32 = arith.constant 0 : i32
    %c0_i32_0 = arith.constant 0 : i32
    %c0_i32_1 = arith.constant 0 : i32
    %c0_i32_2 = arith.constant 0 : i32
    return %c0_i32, %c0_i32_0, %c0_i32_1 : i32, i32, i32
  }
  func.func @transform_2(%arg0: i32) -> (i32, i32) {
    %c0_i32 = arith.constant 0 : i32
    %c0_i32_0 = arith.constant 0 : i32
    %c0_i32_1 = arith.constant 0 : i32
    return %c0_i32, %c0_i32_0 : i32, i32
  }
  func.func @transform_3(%arg0: i32) -> (i32, i32, i32) {
    %c0_i32 = arith.constant 0 : i32
    %c0_i32_0 = arith.constant 0 : i32
    %c0_i32_1 = arith.constant 0 : i32
    return %arg0, %c0_i32, %c0_i32_0 : i32, i32, i32
  }
}

</mosaic_0001>

<llo_original>
// kernel: base22_forward.2
$region0: #{base22_forward.2}
  #allocation0 [shape = 'u32[]', space=smem, size = 0x4, offset = 0x4, fixed_abs, tag = 'smem constant byte address 0x4 - core index']
  #allocation1 [shape = 'u32[72,128]{1,0:T(1,128)}', space=vmem, size = 0x9000, scoped, tag = 'internal scratch']
  %s0 = inlined_call_operand.vmem [shape: f32[2,64,256], index: 0, kind: input, shape index: {}]
  %s1 = inlined_call_operand.vmem [shape: f32[256,64], index: 1, kind: input, shape index: {}]
  %s2 = inlined_call_operand.vmem [shape: f32[2,256,256], index: 2, kind: input, shape index: {}]
  %s3 = inlined_call_operand.vmem [shape: f32[256,128], index: 3, kind: input, shape index: {}]
  %s4 = inlined_call_operand.vmem [shape: f32[256,128], index: 4, kind: input, shape index: {}]
  %s5 = inlined_call_operand.vmem [shape: f32[1,128], index: 5, kind: input, shape index: {}]
  %s6 = inlined_call_operand.vmem [shape: f32[2,256,128], index: 6, kind: output, shape index: {}]
  %s7 = sld [smem:[#allocation0]]
  $region57: #{base22_forward.2} parent=0
    _
  %s9 = ssub.s32 1, %s7
  %s10 = scalar_select 0, %s9, %s7
  loop: start=0, step=1, limit=4
  $region2: #{base22_forward.2} parent=0 // loop_pre_header
    _
  $region3: #{base22_forward.2} parent=0 // loop_header
    %s12 = sphi 0, %s16
    %p13 = scmp.ge.s32.totalorder %s12, 4
    %s19 = sphi 0, %s31
    %s20 = sphi 0, %s27
    %s21 = sphi 0, %s19
    %s22 = sphi 0, %s20
    %s23 = sphi 0, %s21
    %s24 = sphi 0, %s22
    %s34 = sphi 0, %s36
    %s37 = sphi 0, %s34
    %s38 = sphi 0, %s37
    %s54 = sphi 0, %s38
    %s60 = sphi 0, %s62
    %s63 = sphi 0, %s60
    %s64 = sphi 0, %s63
    %s80 = sphi 0, %s64
    %s88 = sphi 0, %s90
    %s91 = sphi 0, %s88
    %s92 = sphi 0, %s91
    %s108 = sphi 0, %s92
    %s112 = sphi 0, %s112
    %s114 = sphi 0, %s112
    %s115 = sphi 0, %s114
    %s129 = sphi 0, %s115
    %s133 = sphi 0, %s133
    %s135 = sphi 0, %s133
    %s136 = sphi 0, %s135
    %s150 = sphi 0, %s136
    %s154 = sphi 0, %s154
    %s156 = sphi 0, %s154
    %s157 = sphi 0, %s156
    %s171 = sphi 0, %s157
    %s179 = sphi 0, %s181
    %s182 = sphi 0, %s179
    %s183 = sphi 0, %s182
    %s199 = sphi 0, %s183
  $region4: #{base22_forward.2} parent=0 // loop_header_branch
    %15 = sbr.rel (%p13) target = $region8
  $region5: #{base22_forward.2} parent=0 // loop_body
    %s17 = ssub.s32 %s12, 1
    %s18 = ssub.s32 %s12, 2
    %s25 = sadd.s32 1, %s20
    %p26 = scmp.ge.s32.totalorder %s25, 1
    %s27 = scalar_select %p26, 0, %s25
    %s28 = sadd.s32 1, %s19
    %s29 = scalar_select %p26, %s28, %s19
    %p30 = scmp.ge.s32.totalorder %s29, 2
    %s31 = scalar_select %p30, 0, %s29
    %s32 = ssub.s32 %s19, %s31
    %p33 = scmp.eq.s32.totalorder %s32, 0
    %s35 = sadd.s32 %s34, 1
    %s36 = scalar_select %p33, %s34, %s35
    %p39 = pneg %p33
    %p40 = scmp.eq.s32.totalorder %s12, 1
    %p41 = por %p39, %p40
    %p42 = scmp.ne.s32.totalorder %s34, %s37
    %p43 = scmp.eq.s32.totalorder %s12, 0
    %p44 = por %p42, %p43
    %p45 = scmp.ne.s32.totalorder %s34, %s37
    %p46 = scmp.eq.s32.totalorder %s17, 1
    %p47 = por %p45, %p46
    %p48 = scmp.ne.s32.totalorder %s37, %s38
    %p49 = scmp.eq.s32.totalorder %s17, 0
    %p50 = por %p48, %p49
    %p51 = scmp.ne.s32.totalorder %s37, %s38
    %p52 = scmp.eq.s32.totalorder %s18, 1
    %p53 = por %p51, %p52
    %p55 = scmp.ne.s32.totalorder %s38, %s54
    %p56 = scmp.eq.s32.totalorder %s18, 0
    %p57 = por %p55, %p56
    %s58 = ssub.s32 %s20, %s27
    %p59 = scmp.eq.s32.totalorder %s58, 0
    %s61 = sadd.s32 %s60, 1
    %s62 = scalar_select %p59, %s60, %s61
    %p65 = pneg %p59
    %p66 = scmp.eq.s32.totalorder %s12, 1
    %p67 = por %p65, %p66
    %p68 = scmp.ne.s32.totalorder %s60, %s63
    %p69 = scmp.eq.s32.totalorder %s12, 0
    %p70 = por %p68, %p69
    %p71 = scmp.ne.s32.totalorder %s60, %s63
    %p72 = scmp.eq.s32.totalorder %s17, 1
    %p73 = por %p71, %p72
    %p74 = scmp.ne.s32.totalorder %s63, %s64
    %p75 = scmp.eq.s32.totalorder %s17, 0
    %p76 = por %p74, %p75
    %p77 = scmp.ne.s32.totalorder %s63, %s64
    %p78 = scmp.eq.s32.totalorder %s18, 1
    %p79 = por %p77, %p78
    %p81 = scmp.ne.s32.totalorder %s64, %s80
    %p82 = scmp.eq.s32.totalorder %s18, 0
    %p83 = por %p81, %p82
    %s84 = ssub.s32 %s19, %s31
    %s85 = ssub.s32 %s20, %s27
    %s86 = sor.u32 %s84, %s85
    %p87 = scmp.eq.s32.totalorder %s86, 0
    %s89 = sadd.s32 %s88, 1
    %s90 = scalar_select %p87, %s88, %s89
    %p93 = pneg %p87
    %p94 = scmp.eq.s32.totalorder %s12, 1
    %p95 = por %p93, %p94
    %p96 = scmp.ne.s32.totalorder %s88, %s91
    %p97 = scmp.eq.s32.totalorder %s12, 0
    %p98 = por %p96, %p97
    %p99 = scmp.ne.s32.totalorder %s88, %s91
    %p100 = scmp.eq.s32.totalorder %s17, 1
    %p101 = por %p99, %p100
    %p102 = scmp.ne.s32.totalorder %s91, %s92
    %p103 = scmp.eq.s32.totalorder %s17, 0
    %p104 = por %p102, %p103
    %p105 = scmp.ne.s32.totalorder %s91, %s92
    %p106 = scmp.eq.s32.totalorder %s18, 1
    %p107 = por %p105, %p106
    %p109 = scmp.ne.s32.totalorder %s92, %s108
    %p110 = scmp.eq.s32.totalorder %s18, 0
    %p111 = por %p109, %p110
    %s113 = sadd.s32 %s112, 1
    %p116 = scmp.eq.s32.totalorder %s12, 1
    %p117 = scmp.ne.s32.totalorder %s112, %s114
    %p118 = scmp.eq.s32.totalorder %s12, 0
    %p119 = por %p117, %p118
    %p120 = scmp.ne.s32.totalorder %s112, %s114
    %p121 = scmp.eq.s32.totalorder %s17, 1
    %p122 = por %p120, %p121
    %p123 = scmp.ne.s32.totalorder %s114, %s115
    %p124 = scmp.eq.s32.totalorder %s17, 0
    %p125 = por %p123, %p124
    %p126 = scmp.ne.s32.totalorder %s114, %s115
    %p127 = scmp.eq.s32.totalorder %s18, 1
    %p128 = por %p126, %p127
    %p130 = scmp.ne.s32.totalorder %s115, %s129
    %p131 = scmp.eq.s32.totalorder %s18, 0
    %p132 = por %p130, %p131
    %s134 = sadd.s32 %s133, 1
    %p137 = scmp.eq.s32.totalorder %s12, 1
    %p138 = scmp.ne.s32.totalorder %s133, %s135
    %p139 = scmp.eq.s32.totalorder %s12, 0
    %p140 = por %p138, %p139
    %p141 = scmp.ne.s32.totalorder %s133, %s135
    %p142 = scmp.eq.s32.totalorder %s17, 1
    %p143 = por %p141, %p142
    %p144 = scmp.ne.s32.totalorder %s135, %s136
    %p145 = scmp.eq.s32.totalorder %s17, 0
    %p146 = por %p144, %p145
    %p147 = scmp.ne.s32.totalorder %s135, %s136
    %p148 = scmp.eq.s32.totalorder %s18, 1
    %p149 = por %p147, %p148
    %p151 = scmp.ne.s32.totalorder %s136, %s150
    %p152 = scmp.eq.s32.totalorder %s18, 0
    %p153 = por %p151, %p152
    %s155 = sadd.s32 %s154, 1
    %p158 = scmp.eq.s32.totalorder %s12, 1
    %p159 = scmp.ne.s32.totalorder %s154, %s156
    %p160 = scmp.eq.s32.totalorder %s12, 0
    %p161 = por %p159, %p160
    %p162 = scmp.ne.s32.totalorder %s154, %s156
    %p163 = scmp.eq.s32.totalorder %s17, 1
    %p164 = por %p162, %p163
    %p165 = scmp.ne.s32.totalorder %s156, %s157
    %p166 = scmp.eq.s32.totalorder %s17, 0
    %p167 = por %p165, %p166
    %p168 = scmp.ne.s32.totalorder %s156, %s157
    %p169 = scmp.eq.s32.totalorder %s18, 1
    %p170 = por %p168, %p169
    %p172 = scmp.ne.s32.totalorder %s157, %s171
    %p173 = scmp.eq.s32.totalorder %s18, 0
    %p174 = por %p172, %p173
    %s175 = ssub.s32 %s19, %s31
    %s176 = ssub.s32 %s20, %s27
    %s177 = sor.u32 %s175, %s176
    %p178 = scmp.eq.s32.totalorder %s177, 0
    %s180 = sadd.s32 %s179, 1
    %s181 = scalar_select %p178, %s179, %s180
    %p184 = pneg %p178
    %p185 = scmp.eq.s32.totalorder %s12, 1
    %p186 = por %p184, %p185
    %p187 = scmp.ne.s32.totalorder %s179, %s182
    %p188 = scmp.eq.s32.totalorder %s12, 0
    %p189 = por %p187, %p188
    %p190 = scmp.ne.s32.totalorder %s179, %s182
    %p191 = scmp.eq.s32.totalorder %s17, 1
    %p192 = por %p190, %p191
    %p193 = scmp.ne.s32.totalorder %s182, %s183
    %p194 = scmp.eq.s32.totalorder %s17, 0
    %p195 = por %p193, %p194
    %p196 = scmp.ne.s32.totalorder %s182, %s183
    %p197 = scmp.eq.s32.totalorder %s18, 1
    %p198 = por %p196, %p197
    %p200 = scmp.ne.s32.totalorder %s183, %s199
    %p201 = scmp.eq.s32.totalorder %s18, 0
    %p202 = por %p200, %p201
    %p203 = scmp.le.s32.totalorder 1, %s12
    %p204 = scmp.lt.s32.totalorder %s12, 3
    %p205 = pnand %p203, %p204
    %p206 = pneg %p205
    // Predicated region
    $region9: #{base22_forward.2} parent=5 // pred_check
      _
    $region10: #{base22_forward.2} parent=5 // pred_check_branch
      %208 = sbr.rel (%p205) target = $region12
    $region11: #{base22_forward.2} parent=5 // pred_region
      %s209 = ssub.s32 %s12, 1
      // Predicated region
      $region13: #{base22_forward.2} parent=11 // pred_check
        %p210 = pneg %p76
      $region14: #{base22_forward.2} parent=11 // pred_check_branch
        %212 = sbr.rel (%p210) target = $region16
      $region15: #{base22_forward.2} parent=11 // pred_region
        %s213 = smul.u32 32, %s22
        %p214 = scmp.lt.s32.totalorder %s213, 31
        %s215 = scalar_select %p214, %s213, 31
        %s216 = smul.addr %s215, 8
        %s217 = scalar_lea.vmem %s1, %s216
        %s218 = smul.u32 32, %s22
      $region16: #{base22_forward.2} parent=11 // pred_fallthru
        _
      // Predicated region
      $region17: #{base22_forward.2} parent=11 // pred_check
        %p219 = pneg %p125
      $region18: #{base22_forward.2} parent=11 // pred_check_branch
        %221 = sbr.rel (%p219) target = $region20
      $region19: #{base22_forward.2} parent=11 // pred_region
        _
      $region20: #{base22_forward.2} parent=11 // pred_fallthru
        _
      // Predicated region
      $region21: #{base22_forward.2} parent=11 // pred_check
        %p222 = pneg %p146
      $region22: #{base22_forward.2} parent=11 // pred_check_branch
        %224 = sbr.rel (%p222) target = $region24
      $region23: #{base22_forward.2} parent=11 // pred_region
        _
      $region24: #{base22_forward.2} parent=11 // pred_fallthru
        _
      // Predicated region
      $region25: #{base22_forward.2} parent=11 // pred_check
        %p225 = pneg %p167
      $region26: #{base22_forward.2} parent=11 // pred_check_branch
        %227 = sbr.rel (%p225) target = $region28
      $region27: #{base22_forward.2} parent=11 // pred_region
        _
      $region28: #{base22_forward.2} parent=11 // pred_fallthru
        _
    $region12: #{base22_forward.2} parent=5 // pred_fallthru
      _
    %p228 = scmp.lt.s32.totalorder %s12, 2
    // Predicated region
    $region29: #{base22_forward.2} parent=5 // pred_check
      %p229 = pneg %p228
    $region30: #{base22_forward.2} parent=5 // pred_check_branch
      %231 = sbr.rel (%p229) target = $region32
    $region31: #{base22_forward.2} parent=5 // pred_region
      // Predicated region
      $region33: #{base22_forward.2} parent=31 // pred_check
        %p232 = pneg %p44
      $region34: #{base22_forward.2} parent=31 // pred_check_branch
        %234 = sbr.rel (%p232) target = $region36
      $region35: #{base22_forward.2} parent=31 // pred_region
        %p235 = scmp.lt.s32.totalorder %s19, 1
        %s236 = scalar_select %p235, %s19, 1
        %s237 = smul.addr %s236, 16
        %s238 = smul.addr %s237, 8
        %s239 = scalar_lea.vmem %s0, %s238
      $region36: #{base22_forward.2} parent=31 // pred_fallthru
        _
      // Predicated region
      $region37: #{base22_forward.2} parent=31 // pred_check
        %p240 = pneg %p98
      $region38: #{base22_forward.2} parent=31 // pred_check_branch
        %242 = sbr.rel (%p240) target = $region40
      $region39: #{base22_forward.2} parent=31 // pred_region
        %s243 = smul.u32 32, %s20
        %p244 = scmp.lt.s32.totalorder %s19, 1
        %s245 = scalar_select %p244, %s19, 1
        %p246 = scmp.lt.s32.totalorder %s243, 31
        %s247 = scalar_select %p246, %s243, 31
        %s248 = smul.addr %s247, 2
        %s249 = smul.addr %s245, 64
        %s250 = sadd.s32 %s248, %s249
        %s251 = smul.addr %s250, 8
        %s252 = scalar_lea.vmem %s2, %s251
        %s253 = smul.u32 32, %s20
      $region40: #{base22_forward.2} parent=31 // pred_fallthru
        _
    $region32: #{base22_forward.2} parent=5 // pred_fallthru
      _
    %p254 = scmp.le.s32.totalorder 1, %s12
    %p255 = scmp.lt.s32.totalorder %s12, 3
    %p256 = pnand %p254, %p255
    %p257 = pneg %p256
    // Predicated region
    $region41: #{base22_forward.2} parent=5 // pred_check
      _
    $region42: #{base22_forward.2} parent=5 // pred_check_branch
      %259 = sbr.rel (%p256) target = $region44
    $region43: #{base22_forward.2} parent=5 // pred_region
      %s260 = ssub.s32 %s12, 1
      %p261 = scmp.lt.s32.totalorder %s21, 1
      %s262 = scalar_select %p261, %s21, 1
      %s263 = smul.addr %s262, 16
      %s264 = smul.addr %s263, 8
      %s265 = scalar_lea.vmem %s0, %s264
      %p266 = pneg %p50
      %p267 = pneg %p47
      %s268 = smul.u32 32, %s22
      %p269 = scmp.lt.s32.totalorder %s268, 31
      %s270 = scalar_select %p269, %s268, 31
      %s271 = smul.addr %s270, 8
      %s272 = scalar_lea.vmem %s1, %s271
      %p273 = pneg %p76
      %p274 = pneg %p73
      %s275 = smul.u32 32, %s22
      %p276 = scmp.lt.s32.totalorder %s21, 1
      %s277 = scalar_select %p276, %s21, 1
      %p278 = scmp.lt.s32.totalorder %s275, 31
      %s279 = scalar_select %p278, %s275, 31
      %s280 = smul.addr %s279, 2
      %s281 = smul.addr %s277, 64
      %s282 = sadd.s32 %s280, %s281
      %s283 = smul.addr %s282, 8
      %s284 = scalar_lea.vmem %s2, %s283
      %p285 = pneg %p104
      %p286 = pneg %p101
      %p287 = pneg %p125
      %p288 = pneg %p122
      %p289 = pneg %p146
      %p290 = pneg %p143
      %p291 = pneg %p167
      %p292 = pneg %p164
      %p293 = pneg %p195
      %p294 = pneg %p192
      %s295 = smul.u32 32, %s22
      %p296 = scmp.lt.s32.totalorder %s21, 1
      %s297 = scalar_select %p296, %s21, 1
      %p298 = scmp.lt.s32.totalorder %s295, 31
      %s299 = scalar_select %p298, %s295, 31
      %s300 = smul.addr %s297, 32
      %s301 = sadd.s32 %s299, %s300
      %s302 = smul.addr %s301, 8
      %s303 = scalar_lea.vmem %s6, %s302
      %p304 = scmp.lt.s32.totalorder %s21, 1
      %s305 = scalar_select %p304, %s21, 1
      %s306 = smul.addr %s305, 16
      %s307 = smul.addr %s306, 8
      %s308 = scalar_lea.vmem %s0, %s307
      %s309 = smul.u32 32, %s22
      %p310 = scmp.lt.s32.totalorder %s309, 31
      %s311 = scalar_select %p310, %s309, 31
      %s312 = smul.addr %s311, 8
      %s313 = scalar_lea.vmem %s1, %s312
      %s314 = smul.u32 32, %s22
      %s315 = smul.u32 32, %s22
      %p316 = scmp.lt.s32.totalorder %s21, 1
      %s317 = scalar_select %p316, %s21, 1
      %p318 = scmp.lt.s32.totalorder %s315, 31
      %s319 = scalar_select %p318, %s315, 31
      %s320 = smul.addr %s319, 2
      %s321 = smul.addr %s317, 64
      %s322 = sadd.s32 %s320, %s321
      %s323 = smul.addr %s322, 8
      %s324 = scalar_lea.vmem %s2, %s323
      %s325 = smul.u32 32, %s22
      %s326 = smul.u32 32, %s22
      %p327 = scmp.lt.s32.totalorder %s21, 1
      %s328 = scalar_select %p327, %s21, 1
      %p329 = scmp.lt.s32.totalorder %s326, 31
      %s330 = scalar_select %p329, %s326, 31
      %s331 = smul.addr %s328, 32
      %s332 = sadd.s32 %s330, %s331
      %s333 = smul.addr %s332, 8
      %s334 = scalar_lea.vmem %s6, %s333
      %s335 = smul.u32 32, %s22
      %v336 = vld [vmem:[%s313] sm:$0xff]
      %v337 = vld [vmem:[%s313 + $0x8] sm:$0xff]
      %v338 = vld [vmem:[%s313 + $0x10] sm:$0xff]
      %v339 = vld [vmem:[%s313 + $0x18] sm:$0xff]
      %v340 = vld [vmem:[%s313 + $0x20] sm:$0xff]
      %v341 = vld [vmem:[%s313 + $0x28] sm:$0xff]
      %v342 = vld [vmem:[%s313 + $0x30] sm:$0xff]
      %v343 = vld [vmem:[%s313 + $0x38] sm:$0xff]
      %v344 = vld [vmem:[%s313 + $0x40] sm:$0xff]
      %v345 = vld [vmem:[%s313 + $0x48] sm:$0xff]
      %v346 = vld [vmem:[%s313 + $0x50] sm:$0xff]
      %v347 = vld [vmem:[%s313 + $0x58] sm:$0xff]
      %v348 = vld [vmem:[%s313 + $0x60] sm:$0xff]
      %v349 = vld [vmem:[%s313 + $0x68] sm:$0xff]
      %v350 = vld [vmem:[%s313 + $0x70] sm:$0xff]
      %v351 = vld [vmem:[%s313 + $0x78] sm:$0xff]
      %v352 = vld [vmem:[%s313 + $0x80] sm:$0xff]
      %v353 = vld [vmem:[%s313 + $0x88] sm:$0xff]
      %v354 = vld [vmem:[%s313 + $0x90] sm:$0xff]
      %v355 = vld [vmem:[%s313 + $0x98] sm:$0xff]
      %v356 = vld [vmem:[%s313 + $0xa0] sm:$0xff]
      %v357 = vld [vmem:[%s313 + $0xa8] sm:$0xff]
      %v358 = vld [vmem:[%s313 + $0xb0] sm:$0xff]
      %v359 = vld [vmem:[%s313 + $0xb8] sm:$0xff]
      %v360 = vld [vmem:[%s313 + $0xc0] sm:$0xff]
      %v361 = vld [vmem:[%s313 + $0xc8] sm:$0xff]
      %v362 = vld [vmem:[%s313 + $0xd0] sm:$0xff]
      %v363 = vld [vmem:[%s313 + $0xd8] sm:$0xff]
      %v364 = vld [vmem:[%s313 + $0xe0] sm:$0xff]
      %v365 = vld [vmem:[%s313 + $0xe8] sm:$0xff]
      %v366 = vld [vmem:[%s313 + $0xf0] sm:$0xff]
      %v367 = vld [vmem:[%s313 + $0xf8] sm:$0xff]
      %v368 = vld [vmem:[%s308] sm:$0xff]
      %v369 = vld [vmem:[%s308 + $0x8] sm:$0xff]
      %v370 = vld [vmem:[%s308 + $0x10] sm:$0xff]
      %v371 = vld [vmem:[%s308 + $0x18] sm:$0xff]
      %v372 = vld [vmem:[%s308 + $0x20] sm:$0xff]
      %v373 = vld [vmem:[%s308 + $0x28] sm:$0xff]
      %v374 = vld [vmem:[%s308 + $0x30] sm:$0xff]
      %v375 = vld [vmem:[%s308 + $0x38] sm:$0xff]
      %v376 = vld [vmem:[%s308 + $0x40] sm:$0xff]
      %v377 = vld [vmem:[%s308 + $0x48] sm:$0xff]
      %v378 = vld [vmem:[%s308 + $0x50] sm:$0xff]
      %v379 = vld [vmem:[%s308 + $0x58] sm:$0xff]
      %v380 = vld [vmem:[%s308 + $0x60] sm:$0xff]
      %v381 = vld [vmem:[%s308 + $0x68] sm:$0xff]
      %v382 = vld [vmem:[%s308 + $0x70] sm:$0xff]
      %v383 = vld [vmem:[%s308 + $0x78] sm:$0xff]
      %vm384 = vcmask 523264
      %v386 = vsel %vm384, %v336, 0
      %v389 = vsel %vm384, %v337, 0
      %v392 = vsel %vm384, %v338, 0
      %v395 = vsel %vm384, %v339, 0
      %v398 = vsel %vm384, %v340, 0
      %v401 = vsel %vm384, %v341, 0
      %v404 = vsel %vm384, %v342, 0
      %v407 = vsel %vm384, %v343, 0
      %v410 = vsel %vm384, %v344, 0
      %v413 = vsel %vm384, %v345, 0
      %v416 = vsel %vm384, %v346, 0
      %v419 = vsel %vm384, %v347, 0
      %v422 = vsel %vm384, %v348, 0
      %v425 = vsel %vm384, %v349, 0
      %v428 = vsel %vm384, %v350, 0
      %v431 = vsel %vm384, %v351, 0
      %v434 = vsel %vm384, %v352, 0
      %v437 = vsel %vm384, %v353, 0
      %v440 = vsel %vm384, %v354, 0
      %v443 = vsel %vm384, %v355, 0
      %v446 = vsel %vm384, %v356, 0
      %v449 = vsel %vm384, %v357, 0
      %v452 = vsel %vm384, %v358, 0
      %v455 = vsel %vm384, %v359, 0
      %v458 = vsel %vm384, %v360, 0
      %v461 = vsel %vm384, %v361, 0
      %v464 = vsel %vm384, %v362, 0
      %v467 = vsel %vm384, %v363, 0
      %v470 = vsel %vm384, %v364, 0
      %v473 = vsel %vm384, %v365, 0
      %v476 = vsel %vm384, %v366, 0
      %v479 = vsel %vm384, %v367, 0
      %481 = vmatpush.msra.mxu0 0.0
      %482 = vmatpush.msra.mxu0 0.0
      %483 = vmatpush.msra.mxu0 0.0
      %484 = vmatpush.msra.mxu0 0.0
      %485 = vmatpush.msra.mxu0 0.0
      %486 = vmatpush.msra.mxu0 0.0
      %487 = vmatpush.msra.mxu0 0.0
      %488 = vmatpush.msra.mxu0 0.0
      %489 = vmatpush.msra.mxu0 %v382
      %490 = vmatpush.msra.mxu0 %v380
      %491 = vmatpush.msra.mxu0 %v378
      %492 = vmatpush.msra.mxu0 %v376
      %493 = vmatpush.msra.mxu0 %v374
      %494 = vmatpush.msra.mxu0 %v372
      %495 = vmatpush.msra.mxu0 %v370
      %496 = vmatpush.msra.mxu0 %v368
      %497 = vmatmul.f32.gmra.mxu0 %v386
      %v498 = vpop.f32.mrf.mxu0
      %v499 = vadd.f32 0.0, %v498
      %500 = vmatmul.f32.gmra.mxu0 %v389
      %v501 = vpop.f32.mrf.mxu0
      %v502 = vadd.f32 0.0, %v501
      %503 = vmatmul.f32.gmra.mxu0 %v392
      %v504 = vpop.f32.mrf.mxu0
      %v505 = vadd.f32 0.0, %v504
      %506 = vmatmul.f32.gmra.mxu0 %v395
      %v507 = vpop.f32.mrf.mxu0
      %v508 = vadd.f32 0.0, %v507
      %509 = vmatmul.f32.gmra.mxu0 %v398
      %v510 = vpop.f32.mrf.mxu0
      %v511 = vadd.f32 0.0, %v510
      %512 = vmatmul.f32.gmra.mxu0 %v401
      %v513 = vpop.f32.mrf.mxu0
      %v514 = vadd.f32 0.0, %v513
      %515 = vmatmul.f32.gmra.mxu0 %v404
      %v516 = vpop.f32.mrf.mxu0
      %v517 = vadd.f32 0.0, %v516
      %518 = vmatmul.f32.gmra.mxu0 %v407
      %v519 = vpop.f32.mrf.mxu0
      %v520 = vadd.f32 0.0, %v519
      %521 = vmatmul.f32.gmra.mxu0 %v410
      %v522 = vpop.f32.mrf.mxu0
      %v523 = vadd.f32 0.0, %v522
      %524 = vmatmul.f32.gmra.mxu0 %v413
      %v525 = vpop.f32.mrf.mxu0
      %v526 = vadd.f32 0.0, %v525
      %527 = vmatmul.f32.gmra.mxu0 %v416
      %v528 = vpop.f32.mrf.mxu0
      %v529 = vadd.f32 0.0, %v528
      %530 = vmatmul.f32.gmra.mxu0 %v419
      %v531 = vpop.f32.mrf.mxu0
      %v532 = vadd.f32 0.0, %v531
      %533 = vmatmul.f32.gmra.mxu0 %v422
      %v534 = vpop.f32.mrf.mxu0
      %v535 = vadd.f32 0.0, %v534
      %536 = vmatmul.f32.gmra.mxu0 %v425
      %v537 = vpop.f32.mrf.mxu0
      %v538 = vadd.f32 0.0, %v537
      %539 = vmatmul.f32.gmra.mxu0 %v428
      %v540 = vpop.f32.mrf.mxu0
      %v541 = vadd.f32 0.0, %v540
      %542 = vmatmul.f32.gmra.mxu0 %v431
      %v543 = vpop.f32.mrf.mxu0
      %v544 = vadd.f32 0.0, %v543
      %545 = vmatmul.f32.gmra.mxu0 %v434
      %v546 = vpop.f32.mrf.mxu0
      %v547 = vadd.f32 0.0, %v546
      %548 = vmatmul.f32.gmra.mxu0 %v437
      %v549 = vpop.f32.mrf.mxu0
      %v550 = vadd.f32 0.0, %v549
      %551 = vmatmul.f32.gmra.mxu0 %v440
      %v552 = vpop.f32.mrf.mxu0
      %v553 = vadd.f32 0.0, %v552
      %554 = vmatmul.f32.gmra.mxu0 %v443
      %v555 = vpop.f32.mrf.mxu0
      %v556 = vadd.f32 0.0, %v555
      %557 = vmatmul.f32.gmra.mxu0 %v446
      %v558 = vpop.f32.mrf.mxu0
      %v559 = vadd.f32 0.0, %v558
      %560 = vmatmul.f32.gmra.mxu0 %v449
      %v561 = vpop.f32.mrf.mxu0
      %v562 = vadd.f32 0.0, %v561
      %563 = vmatmul.f32.gmra.mxu0 %v452
      %v564 = vpop.f32.mrf.mxu0
      %v565 = vadd.f32 0.0, %v564
      %566 = vmatmul.f32.gmra.mxu0 %v455
      %v567 = vpop.f32.mrf.mxu0
      %v568 = vadd.f32 0.0, %v567
      %569 = vmatmul.f32.gmra.mxu0 %v458
      %v570 = vpop.f32.mrf.mxu0
      %v571 = vadd.f32 0.0, %v570
      %572 = vmatmul.f32.gmra.mxu0 %v461
      %v573 = vpop.f32.mrf.mxu0
      %v574 = vadd.f32 0.0, %v573
      %575 = vmatmul.f32.gmra.mxu0 %v464
      %v576 = vpop.f32.mrf.mxu0
      %v577 = vadd.f32 0.0, %v576
      %578 = vmatmul.f32.gmra.mxu0 %v467
      %v579 = vpop.f32.mrf.mxu0
      %v580 = vadd.f32 0.0, %v579
      %581 = vmatmul.f32.gmra.mxu0 %v470
      %v582 = vpop.f32.mrf.mxu0
      %v583 = vadd.f32 0.0, %v582
      %584 = vmatmul.f32.gmra.mxu0 %v473
      %v585 = vpop.f32.mrf.mxu0
      %v586 = vadd.f32 0.0, %v585
      %587 = vmatmul.f32.gmra.mxu0 %v476
      %v588 = vpop.f32.mrf.mxu0
      %v589 = vadd.f32 0.0, %v588
      %590 = vmatmul.f32.gmra.mxu0 %v479
      %v591 = vpop.f32.mrf.mxu0
      %v592 = vadd.f32 0.0, %v591
      %593 = vdwg.mxu0
      %594 = vmatpush.msra.mxu0 0.0
      %595 = vmatpush.msra.mxu0 0.0
      %596 = vmatpush.msra.mxu0 0.0
      %597 = vmatpush.msra.mxu0 0.0
      %598 = vmatpush.msra.mxu0 0.0
      %599 = vmatpush.msra.mxu0 0.0
      %600 = vmatpush.msra.mxu0 0.0
      %601 = vmatpush.msra.mxu0 0.0
      %602 = vmatpush.msra.mxu0 %v383
      %603 = vmatpush.msra.mxu0 %v381
      %604 = vmatpush.msra.mxu0 %v379
      %605 = vmatpush.msra.mxu0 %v377
      %606 = vmatpush.msra.mxu0 %v375
      %607 = vmatpush.msra.mxu0 %v373
      %608 = vmatpush.msra.mxu0 %v371
      %609 = vmatpush.msra.mxu0 %v369
      %610 = vmatmul.f32.gmra.mxu0 %v386
      %v611 = vpop.f32.mrf.mxu0
      %v612 = vadd.f32 0.0, %v611
      %613 = vmatmul.f32.gmra.mxu0 %v389
      %v614 = vpop.f32.mrf.mxu0
      %v615 = vadd.f32 0.0, %v614
      %616 = vmatmul.f32.gmra.mxu0 %v392
      %v617 = vpop.f32.mrf.mxu0
      %v618 = vadd.f32 0.0, %v617
      %619 = vmatmul.f32.gmra.mxu0 %v395
      %v620 = vpop.f32.mrf.mxu0
      %v621 = vadd.f32 0.0, %v620
      %622 = vmatmul.f32.gmra.mxu0 %v398
      %v623 = vpop.f32.mrf.mxu0
      %v624 = vadd.f32 0.0, %v623
      %625 = vmatmul.f32.gmra.mxu0 %v401
      %v626 = vpop.f32.mrf.mxu0
      %v627 = vadd.f32 0.0, %v626
      %628 = vmatmul.f32.gmra.mxu0 %v404
      %v629 = vpop.f32.mrf.mxu0
      %v630 = vadd.f32 0.0, %v629
      %631 = vmatmul.f32.gmra.mxu0 %v407
      %v632 = vpop.f32.mrf.mxu0
      %v633 = vadd.f32 0.0, %v632
      %634 = vmatmul.f32.gmra.mxu0 %v410
      %v635 = vpop.f32.mrf.mxu0
      %v636 = vadd.f32 0.0, %v635
      %637 = vmatmul.f32.gmra.mxu0 %v413
      %v638 = vpop.f32.mrf.mxu0
      %v639 = vadd.f32 0.0, %v638
      %640 = vmatmul.f32.gmra.mxu0 %v416
      %v641 = vpop.f32.mrf.mxu0
      %v642 = vadd.f32 0.0, %v641
      %643 = vmatmul.f32.gmra.mxu0 %v419
      %v644 = vpop.f32.mrf.mxu0
      %v645 = vadd.f32 0.0, %v644
      %646 = vmatmul.f32.gmra.mxu0 %v422
      %v647 = vpop.f32.mrf.mxu0
      %v648 = vadd.f32 0.0, %v647
      %649 = vmatmul.f32.gmra.mxu0 %v425
      %v650 = vpop.f32.mrf.mxu0
      %v651 = vadd.f32 0.0, %v650
      %652 = vmatmul.f32.gmra.mxu0 %v428
      %v653 = vpop.f32.mrf.mxu0
      %v654 = vadd.f32 0.0, %v653
      %655 = vmatmul.f32.gmra.mxu0 %v431
      %v656 = vpop.f32.mrf.mxu0
      %v657 = vadd.f32 0.0, %v656
      %658 = vmatmul.f32.gmra.mxu0 %v434
      %v659 = vpop.f32.mrf.mxu0
      %v660 = vadd.f32 0.0, %v659
      %661 = vmatmul.f32.gmra.mxu0 %v437
      %v662 = vpop.f32.mrf.mxu0
      %v663 = vadd.f32 0.0, %v662
      %664 = vmatmul.f32.gmra.mxu0 %v440
      %v665 = vpop.f32.mrf.mxu0
      %v666 = vadd.f32 0.0, %v665
      %667 = vmatmul.f32.gmra.mxu0 %v443
      %v668 = vpop.f32.mrf.mxu0
      %v669 = vadd.f32 0.0, %v668
      %670 = vmatmul.f32.gmra.mxu0 %v446
      %v671 = vpop.f32.mrf.mxu0
      %v672 = vadd.f32 0.0, %v671
      %673 = vmatmul.f32.gmra.mxu0 %v449
      %v674 = vpop.f32.mrf.mxu0
      %v675 = vadd.f32 0.0, %v674
      %676 = vmatmul.f32.gmra.mxu0 %v452
      %v677 = vpop.f32.mrf.mxu0
      %v678 = vadd.f32 0.0, %v677
      %679 = vmatmul.f32.gmra.mxu0 %v455
      %v680 = vpop.f32.mrf.mxu0
      %v681 = vadd.f32 0.0, %v680
      %682 = vmatmul.f32.gmra.mxu0 %v458
      %v683 = vpop.f32.mrf.mxu0
      %v684 = vadd.f32 0.0, %v683
      %685 = vmatmul.f32.gmra.mxu0 %v461
      %v686 = vpop.f32.mrf.mxu0
      %v687 = vadd.f32 0.0, %v686
      %688 = vmatmul.f32.gmra.mxu0 %v464
      %v689 = vpop.f32.mrf.mxu0
      %v690 = vadd.f32 0.0, %v689
      %691 = vmatmul.f32.gmra.mxu0 %v467
      %v692 = vpop.f32.mrf.mxu0
      %v693 = vadd.f32 0.0, %v692
      %694 = vmatmul.f32.gmra.mxu0 %v470
      %v695 = vpop.f32.mrf.mxu0
      %v696 = vadd.f32 0.0, %v695
      %697 = vmatmul.f32.gmra.mxu0 %v473
      %v698 = vpop.f32.mrf.mxu0
      %v699 = vadd.f32 0.0, %v698
      %700 = vmatmul.f32.gmra.mxu0 %v476
      %v701 = vpop.f32.mrf.mxu0
      %v702 = vadd.f32 0.0, %v701
      %703 = vmatmul.f32.gmra.mxu0 %v479
      %v704 = vpop.f32.mrf.mxu0
      %v705 = vadd.f32 0.0, %v704
      %706 = vdwg.mxu0
      %v707 = vld [vmem:[%s3] sm:$0xff]
      %v708 = vld [vmem:[%s3 + $0x8] sm:$0xff]
      %v709 = vld [vmem:[%s3 + $0x10] sm:$0xff]
      %v710 = vld [vmem:[%s3 + $0x18] sm:$0xff]
      %v711 = vld [vmem:[%s3 + $0x20] sm:$0xff]
      %v712 = vld [vmem:[%s3 + $0x28] sm:$0xff]
      %v713 = vld [vmem:[%s3 + $0x30] sm:$0xff]
      %v714 = vld [vmem:[%s3 + $0x38] sm:$0xff]
      %v715 = vld [vmem:[%s3 + $0x40] sm:$0xff]
      %v716 = vld [vmem:[%s3 + $0x48] sm:$0xff]
      %v717 = vld [vmem:[%s3 + $0x50] sm:$0xff]
      %v718 = vld [vmem:[%s3 + $0x58] sm:$0xff]
      %v719 = vld [vmem:[%s3 + $0x60] sm:$0xff]
      %v720 = vld [vmem:[%s3 + $0x68] sm:$0xff]
      %v721 = vld [vmem:[%s3 + $0x70] sm:$0xff]
      %v722 = vld [vmem:[%s3 + $0x78] sm:$0xff]
      %v723 = vld [vmem:[%s3 + $0x80] sm:$0xff]
      %v724 = vld [vmem:[%s3 + $0x88] sm:$0xff]
      %v725 = vld [vmem:[%s3 + $0x90] sm:$0xff]
      %v726 = vld [vmem:[%s3 + $0x98] sm:$0xff]
      %v727 = vld [vmem:[%s3 + $0xa0] sm:$0xff]
      %v728 = vld [vmem:[%s3 + $0xa8] sm:$0xff]
      %v729 = vld [vmem:[%s3 + $0xb0] sm:$0xff]
      %v730 = vld [vmem:[%s3 + $0xb8] sm:$0xff]
      %v731 = vld [vmem:[%s3 + $0xc0] sm:$0xff]
      %v732 = vld [vmem:[%s3 + $0xc8] sm:$0xff]
      %v733 = vld [vmem:[%s3 + $0xd0] sm:$0xff]
      %v734 = vld [vmem:[%s3 + $0xd8] sm:$0xff]
      %v735 = vld [vmem:[%s3 + $0xe0] sm:$0xff]
      %v736 = vld [vmem:[%s3 + $0xe8] sm:$0xff]
      %v737 = vld [vmem:[%s3 + $0xf0] sm:$0xff]
      %v738 = vld [vmem:[%s3 + $0xf8] sm:$0xff]
      %v739 = vld [vmem:[%s324] sm:$0xff]
      %v740 = vld [vmem:[%s324 + $0x8] sm:$0xff]
      %v741 = vld [vmem:[%s324 + $0x10] sm:$0xff]
      %v742 = vld [vmem:[%s324 + $0x18] sm:$0xff]
      %v743 = vld [vmem:[%s324 + $0x20] sm:$0xff]
      %v744 = vld [vmem:[%s324 + $0x28] sm:$0xff]
      %v745 = vld [vmem:[%s324 + $0x30] sm:$0xff]
      %v746 = vld [vmem:[%s324 + $0x38] sm:$0xff]
      %v747 = vld [vmem:[%s324 + $0x40] sm:$0xff]
      %v748 = vld [vmem:[%s324 + $0x48] sm:$0xff]
      %v749 = vld [vmem:[%s324 + $0x50] sm:$0xff]
      %v750 = vld [vmem:[%s324 + $0x58] sm:$0xff]
      %v751 = vld [vmem:[%s324 + $0x60] sm:$0xff]
      %v752 = vld [vmem:[%s324 + $0x68] sm:$0xff]
      %v753 = vld [vmem:[%s324 + $0x70] sm:$0xff]
      %v754 = vld [vmem:[%s324 + $0x78] sm:$0xff]
      %v755 = vld [vmem:[%s324 + $0x80] sm:$0xff]
      %v756 = vld [vmem:[%s324 + $0x88] sm:$0xff]
      %v757 = vld [vmem:[%s324 + $0x90] sm:$0xff]
      %v758 = vld [vmem:[%s324 + $0x98] sm:$0xff]
      %v759 = vld [vmem:[%s324 + $0xa0] sm:$0xff]
      %v760 = vld [vmem:[%s324 + $0xa8] sm:$0xff]
      %v761 = vld [vmem:[%s324 + $0xb0] sm:$0xff]
      %v762 = vld [vmem:[%s324 + $0xb8] sm:$0xff]
      %v763 = vld [vmem:[%s324 + $0xc0] sm:$0xff]
      %v764 = vld [vmem:[%s324 + $0xc8] sm:$0xff]
      %v765 = vld [vmem:[%s324 + $0xd0] sm:$0xff]
      %v766 = vld [vmem:[%s324 + $0xd8] sm:$0xff]
      %v767 = vld [vmem:[%s324 + $0xe0] sm:$0xff]
      %v768 = vld [vmem:[%s324 + $0xe8] sm:$0xff]
      %v769 = vld [vmem:[%s324 + $0xf0] sm:$0xff]
      %v770 = vld [vmem:[%s324 + $0xf8] sm:$0xff]
      %v771 = vld [vmem:[%s324 + $0x100] sm:$0xff]
      %v772 = vld [vmem:[%s324 + $0x108] sm:$0xff]
      %v773 = vld [vmem:[%s324 + $0x110] sm:$0xff]
      %v774 = vld [vmem:[%s324 + $0x118] sm:$0xff]
      %v775 = vld [vmem:[%s324 + $0x120] sm:$0xff]
      %v776 = vld [vmem:[%s324 + $0x128] sm:$0xff]
      %v777 = vld [vmem:[%s324 + $0x130] sm:$0xff]
      %v778 = vld [vmem:[%s324 + $0x138] sm:$0xff]
      %v779 = vld [vmem:[%s324 + $0x140] sm:$0xff]
      %v780 = vld [vmem:[%s324 + $0x148] sm:$0xff]
      %v781 = vld [vmem:[%s324 + $0x150] sm:$0xff]
      %v782 = vld [vmem:[%s324 + $0x158] sm:$0xff]
      %v783 = vld [vmem:[%s324 + $0x160] sm:$0xff]
      %v784 = vld [vmem:[%s324 + $0x168] sm:$0xff]
      %v785 = vld [vmem:[%s324 + $0x170] sm:$0xff]
      %v786 = vld [vmem:[%s324 + $0x178] sm:$0xff]
      %v787 = vld [vmem:[%s324 + $0x180] sm:$0xff]
      %v788 = vld [vmem:[%s324 + $0x188] sm:$0xff]
      %v789 = vld [vmem:[%s324 + $0x190] sm:$0xff]
      %v790 = vld [vmem:[%s324 + $0x198] sm:$0xff]
      %v791 = vld [vmem:[%s324 + $0x1a0] sm:$0xff]
      %v792 = vld [vmem:[%s324 + $0x1a8] sm:$0xff]
      %v793 = vld [vmem:[%s324 + $0x1b0] sm:$0xff]
      %v794 = vld [vmem:[%s324 + $0x1b8] sm:$0xff]
      %v795 = vld [vmem:[%s324 + $0x1c0] sm:$0xff]
      %v796 = vld [vmem:[%s324 + $0x1c8] sm:$0xff]
      %v797 = vld [vmem:[%s324 + $0x1d0] sm:$0xff]
      %v798 = vld [vmem:[%s324 + $0x1d8] sm:$0xff]
      %v799 = vld [vmem:[%s324 + $0x1e0] sm:$0xff]
      %v800 = vld [vmem:[%s324 + $0x1e8] sm:$0xff]
      %v801 = vld [vmem:[%s324 + $0x1f0] sm:$0xff]
      %v802 = vld [vmem:[%s324 + $0x1f8] sm:$0xff]
      %v803 = vld [vmem:[%s4] sm:$0xff]
      %v804 = vld [vmem:[%s4 + $0x8] sm:$0xff]
      %v805 = vld [vmem:[%s4 + $0x10] sm:$0xff]
      %v806 = vld [vmem:[%s4 + $0x18] sm:$0xff]
      %v807 = vld [vmem:[%s4 + $0x20] sm:$0xff]
      %v808 = vld [vmem:[%s4 + $0x28] sm:$0xff]
      %v809 = vld [vmem:[%s4 + $0x30] sm:$0xff]
      %v810 = vld [vmem:[%s4 + $0x38] sm:$0xff]
      %v811 = vld [vmem:[%s4 + $0x40] sm:$0xff]
      %v812 = vld [vmem:[%s4 + $0x48] sm:$0xff]
      %v813 = vld [vmem:[%s4 + $0x50] sm:$0xff]
      %v814 = vld [vmem:[%s4 + $0x58] sm:$0xff]
      %v815 = vld [vmem:[%s4 + $0x60] sm:$0xff]
      %v816 = vld [vmem:[%s4 + $0x68] sm:$0xff]
      %v817 = vld [vmem:[%s4 + $0x70] sm:$0xff]
      %v818 = vld [vmem:[%s4 + $0x78] sm:$0xff]
      %v819 = vld [vmem:[%s4 + $0x80] sm:$0xff]
      %v820 = vld [vmem:[%s4 + $0x88] sm:$0xff]
      %v821 = vld [vmem:[%s4 + $0x90] sm:$0xff]
      %v822 = vld [vmem:[%s4 + $0x98] sm:$0xff]
      %v823 = vld [vmem:[%s4 + $0xa0] sm:$0xff]
      %v824 = vld [vmem:[%s4 + $0xa8] sm:$0xff]
      %v825 = vld [vmem:[%s4 + $0xb0] sm:$0xff]
      %v826 = vld [vmem:[%s4 + $0xb8] sm:$0xff]
      %v827 = vld [vmem:[%s4 + $0xc0] sm:$0xff]
      %v828 = vld [vmem:[%s4 + $0xc8] sm:$0xff]
      %v829 = vld [vmem:[%s4 + $0xd0] sm:$0xff]
      %v830 = vld [vmem:[%s4 + $0xd8] sm:$0xff]
      %v831 = vld [vmem:[%s4 + $0xe0] sm:$0xff]
      %v832 = vld [vmem:[%s4 + $0xe8] sm:$0xff]
      %v833 = vld [vmem:[%s4 + $0xf0] sm:$0xff]
      %v834 = vld [vmem:[%s4 + $0xf8] sm:$0xff]
      %835 = vmatpush.msra.mxu0 %v818
      %836 = vmatpush.msra.mxu0 %v817
      %837 = vmatpush.msra.mxu0 %v816
      %838 = vmatpush.msra.mxu0 %v815
      %839 = vmatpush.msra.mxu0 %v814
      %840 = vmatpush.msra.mxu0 %v813
      %841 = vmatpush.msra.mxu0 %v812
      %842 = vmatpush.msra.mxu0 %v811
      %843 = vmatpush.msra.mxu0 %v810
      %844 = vmatpush.msra.mxu0 %v809
      %845 = vmatpush.msra.mxu0 %v808
      %846 = vmatpush.msra.mxu0 %v807
      %847 = vmatpush.msra.mxu0 %v806
      %848 = vmatpush.msra.mxu0 %v805
      %849 = vmatpush.msra.mxu0 %v804
      %850 = vmatpush.msra.mxu0 %v803
      %851 = vmatmul.f32.gmra.mxu0 %v739
      %v852 = vpop.f32.mrf.mxu0
      %v853 = vadd.f32 0.0, %v852
      %854 = vmatmul.f32.gmra.mxu0 %v741
      %v855 = vpop.f32.mrf.mxu0
      %v856 = vadd.f32 0.0, %v855
      %857 = vmatmul.f32.gmra.mxu0 %v743
      %v858 = vpop.f32.mrf.mxu0
      %v859 = vadd.f32 0.0, %v858
      %860 = vmatmul.f32.gmra.mxu0 %v745
      %v861 = vpop.f32.mrf.mxu0
      %v862 = vadd.f32 0.0, %v861
      %863 = vmatmul.f32.gmra.mxu0 %v747
      %v864 = vpop.f32.mrf.mxu0
      %v865 = vadd.f32 0.0, %v864
      %866 = vmatmul.f32.gmra.mxu0 %v749
      %v867 = vpop.f32.mrf.mxu0
      %v868 = vadd.f32 0.0, %v867
      %869 = vmatmul.f32.gmra.mxu0 %v751
      %v870 = vpop.f32.mrf.mxu0
      %v871 = vadd.f32 0.0, %v870
      %872 = vmatmul.f32.gmra.mxu0 %v753
      %v873 = vpop.f32.mrf.mxu0
      %v874 = vadd.f32 0.0, %v873
      %875 = vmatmul.f32.gmra.mxu0 %v755
      %v876 = vpop.f32.mrf.mxu0
      %v877 = vadd.f32 0.0, %v876
      %878 = vmatmul.f32.gmra.mxu0 %v757
      %v879 = vpop.f32.mrf.mxu0
      %v880 = vadd.f32 0.0, %v879
      %881 = vmatmul.f32.gmra.mxu0 %v759
      %v882 = vpop.f32.mrf.mxu0
      %v883 = vadd.f32 0.0, %v882
      %884 = vmatmul.f32.gmra.mxu0 %v761
      %v885 = vpop.f32.mrf.mxu0
      %v886 = vadd.f32 0.0, %v885
      %887 = vmatmul.f32.gmra.mxu0 %v763
      %v888 = vpop.f32.mrf.mxu0
      %v889 = vadd.f32 0.0, %v888
      %890 = vmatmul.f32.gmra.mxu0 %v765
      %v891 = vpop.f32.mrf.mxu0
      %v892 = vadd.f32 0.0, %v891
      %893 = vmatmul.f32.gmra.mxu0 %v767
      %v894 = vpop.f32.mrf.mxu0
      %v895 = vadd.f32 0.0, %v894
      %896 = vmatmul.f32.gmra.mxu0 %v769
      %v897 = vpop.f32.mrf.mxu0
      %v898 = vadd.f32 0.0, %v897
      %899 = vmatmul.f32.gmra.mxu0 %v771
      %v900 = vpop.f32.mrf.mxu0
      %v901 = vadd.f32 0.0, %v900
      %902 = vmatmul.f32.gmra.mxu0 %v773
      %v903 = vpop.f32.mrf.mxu0
      %v904 = vadd.f32 0.0, %v903
      %905 = vmatmul.f32.gmra.mxu0 %v775
      %v906 = vpop.f32.mrf.mxu0
      %v907 = vadd.f32 0.0, %v906
      %908 = vmatmul.f32.gmra.mxu0 %v777
      %v909 = vpop.f32.mrf.mxu0
      %v910 = vadd.f32 0.0, %v909
      %911 = vmatmul.f32.gmra.mxu0 %v779
      %v912 = vpop.f32.mrf.mxu0
      %v913 = vadd.f32 0.0, %v912
      %914 = vmatmul.f32.gmra.mxu0 %v781
      %v915 = vpop.f32.mrf.mxu0
      %v916 = vadd.f32 0.0, %v915
      %917 = vmatmul.f32.gmra.mxu0 %v783
      %v918 = vpop.f32.mrf.mxu0
      %v919 = vadd.f32 0.0, %v918
      %920 = vmatmul.f32.gmra.mxu0 %v785
      %v921 = vpop.f32.mrf.mxu0
      %v922 = vadd.f32 0.0, %v921
      %923 = vmatmul.f32.gmra.mxu0 %v787
      %v924 = vpop.f32.mrf.mxu0
      %v925 = vadd.f32 0.0, %v924
      %926 = vmatmul.f32.gmra.mxu0 %v789
      %v927 = vpop.f32.mrf.mxu0
      %v928 = vadd.f32 0.0, %v927
      %929 = vmatmul.f32.gmra.mxu0 %v791
      %v930 = vpop.f32.mrf.mxu0
      %v931 = vadd.f32 0.0, %v930
      %932 = vmatmul.f32.gmra.mxu0 %v793
      %v933 = vpop.f32.mrf.mxu0
      %v934 = vadd.f32 0.0, %v933
      %935 = vmatmul.f32.gmra.mxu0 %v795
      %v936 = vpop.f32.mrf.mxu0
      %v937 = vadd.f32 0.0, %v936
      %938 = vmatmul.f32.gmra.mxu0 %v797
      %v939 = vpop.f32.mrf.mxu0
      %v940 = vadd.f32 0.0, %v939
      %941 = vmatmul.f32.gmra.mxu0 %v799
      %v942 = vpop.f32.mrf.mxu0
      %v943 = vadd.f32 0.0, %v942
      %944 = vmatmul.f32.gmra.mxu0 %v801
      %v945 = vpop.f32.mrf.mxu0
      %v946 = vadd.f32 0.0, %v945
      %947 = vdwg.mxu0
      %948 = vmatpush.msra.mxu0 %v834
      %949 = vmatpush.msra.mxu0 %v833
      %950 = vmatpush.msra.mxu0 %v832
      %951 = vmatpush.msra.mxu0 %v831
      %952 = vmatpush.msra.mxu0 %v830
      %953 = vmatpush.msra.mxu0 %v829
      %954 = vmatpush.msra.mxu0 %v828
      %955 = vmatpush.msra.mxu0 %v827
      %956 = vmatpush.msra.mxu0 %v826
      %957 = vmatpush.msra.mxu0 %v825
      %958 = vmatpush.msra.mxu0 %v824
      %959 = vmatpush.msra.mxu0 %v823
      %960 = vmatpush.msra.mxu0 %v822
      %961 = vmatpush.msra.mxu0 %v821
      %962 = vmatpush.msra.mxu0 %v820
      %963 = vmatpush.msra.mxu0 %v819
      %964 = vmatmul.f32.gmra.mxu0 %v740
      %v965 = vpop.f32.mrf.mxu0
      %v966 = vadd.f32 %v853, %v965
      %967 = vmatmul.f32.gmra.mxu0 %v742
      %v968 = vpop.f32.mrf.mxu0
      %v969 = vadd.f32 %v856, %v968
      %970 = vmatmul.f32.gmra.mxu0 %v744
      %v971 = vpop.f32.mrf.mxu0
      %v972 = vadd.f32 %v859, %v971
      %973 = vmatmul.f32.gmra.mxu0 %v746
      %v974 = vpop.f32.mrf.mxu0
      %v975 = vadd.f32 %v862, %v974
      %976 = vmatmul.f32.gmra.mxu0 %v748
      %v977 = vpop.f32.mrf.mxu0
      %v978 = vadd.f32 %v865, %v977
      %979 = vmatmul.f32.gmra.mxu0 %v750
      %v980 = vpop.f32.mrf.mxu0
      %v981 = vadd.f32 %v868, %v980
      %982 = vmatmul.f32.gmra.mxu0 %v752
      %v983 = vpop.f32.mrf.mxu0
      %v984 = vadd.f32 %v871, %v983
      %985 = vmatmul.f32.gmra.mxu0 %v754
      %v986 = vpop.f32.mrf.mxu0
      %v987 = vadd.f32 %v874, %v986
      %988 = vmatmul.f32.gmra.mxu0 %v756
      %v989 = vpop.f32.mrf.mxu0
      %v990 = vadd.f32 %v877, %v989
      %991 = vmatmul.f32.gmra.mxu0 %v758
      %v992 = vpop.f32.mrf.mxu0
      %v993 = vadd.f32 %v880, %v992
      %994 = vmatmul.f32.gmra.mxu0 %v760
      %v995 = vpop.f32.mrf.mxu0
      %v996 = vadd.f32 %v883, %v995
      %997 = vmatmul.f32.gmra.mxu0 %v762
      %v998 = vpop.f32.mrf.mxu0
      %v999 = vadd.f32 %v886, %v998
      %1000 = vmatmul.f32.gmra.mxu0 %v764
      %v1001 = vpop.f32.mrf.mxu0
      %v1002 = vadd.f32 %v889, %v1001
      %1003 = vmatmul.f32.gmra.mxu0 %v766
      %v1004 = vpop.f32.mrf.mxu0
      %v1005 = vadd.f32 %v892, %v1004
      %1006 = vmatmul.f32.gmra.mxu0 %v768
      %v1007 = vpop.f32.mrf.mxu0
      %v1008 = vadd.f32 %v895, %v1007
      %1009 = vmatmul.f32.gmra.mxu0 %v770
      %v1010 = vpop.f32.mrf.mxu0
      %v1011 = vadd.f32 %v898, %v1010
      %1012 = vmatmul.f32.gmra.mxu0 %v772
      %v1013 = vpop.f32.mrf.mxu0
      %v1014 = vadd.f32 %v901, %v1013
      %1015 = vmatmul.f32.gmra.mxu0 %v774
      %v1016 = vpop.f32.mrf.mxu0
      %v1017 = vadd.f32 %v904, %v1016
      %1018 = vmatmul.f32.gmra.mxu0 %v776
      %v1019 = vpop.f32.mrf.mxu0
      %v1020 = vadd.f32 %v907, %v1019
      %1021 = vmatmul.f32.gmra.mxu0 %v778
      %v1022 = vpop.f32.mrf.mxu0
      %v1023 = vadd.f32 %v910, %v1022
      %1024 = vmatmul.f32.gmra.mxu0 %v780
      %v1025 = vpop.f32.mrf.mxu0
      %v1026 = vadd.f32 %v913, %v1025
      %1027 = vmatmul.f32.gmra.mxu0 %v782
      %v1028 = vpop.f32.mrf.mxu0
      %v1029 = vadd.f32 %v916, %v1028
      %1030 = vmatmul.f32.gmra.mxu0 %v784
      %v1031 = vpop.f32.mrf.mxu0
      %v1032 = vadd.f32 %v919, %v1031
      %1033 = vmatmul.f32.gmra.mxu0 %v786
      %v1034 = vpop.f32.mrf.mxu0
      %v1035 = vadd.f32 %v922, %v1034
      %1036 = vmatmul.f32.gmra.mxu0 %v788
      %v1037 = vpop.f32.mrf.mxu0
      %v1038 = vadd.f32 %v925, %v1037
      %1039 = vmatmul.f32.gmra.mxu0 %v790
      %v1040 = vpop.f32.mrf.mxu0
      %v1041 = vadd.f32 %v928, %v1040
      %1042 = vmatmul.f32.gmra.mxu0 %v792
      %v1043 = vpop.f32.mrf.mxu0
      %v1044 = vadd.f32 %v931, %v1043
      %1045 = vmatmul.f32.gmra.mxu0 %v794
      %v1046 = vpop.f32.mrf.mxu0
      %v1047 = vadd.f32 %v934, %v1046
      %1048 = vmatmul.f32.gmra.mxu0 %v796
      %v1049 = vpop.f32.mrf.mxu0
      %v1050 = vadd.f32 %v937, %v1049
      %1051 = vmatmul.f32.gmra.mxu0 %v798
      %v1052 = vpop.f32.mrf.mxu0
      %v1053 = vadd.f32 %v940, %v1052
      %1054 = vmatmul.f32.gmra.mxu0 %v800
      %v1055 = vpop.f32.mrf.mxu0
      %v1056 = vadd.f32 %v943, %v1055
      %1057 = vmatmul.f32.gmra.mxu0 %v802
      %v1058 = vpop.f32.mrf.mxu0
      %v1059 = vadd.f32 %v946, %v1058
      %1060 = vdwg.mxu0
      %1061 = vmatpush.msra.mxu0 %v722
      %1062 = vmatpush.msra.mxu0 %v721
      %1063 = vmatpush.msra.mxu0 %v720
      %1064 = vmatpush.msra.mxu0 %v719
      %1065 = vmatpush.msra.mxu0 %v718
      %1066 = vmatpush.msra.mxu0 %v717
      %1067 = vmatpush.msra.mxu0 %v716
      %1068 = vmatpush.msra.mxu0 %v715
      %1069 = vmatpush.msra.mxu0 %v714
      %1070 = vmatpush.msra.mxu0 %v713
      %1071 = vmatpush.msra.mxu0 %v712
      %1072 = vmatpush.msra.mxu0 %v711
      %1073 = vmatpush.msra.mxu0 %v710
      %1074 = vmatpush.msra.mxu0 %v709
      %1075 = vmatpush.msra.mxu0 %v708
      %1076 = vmatpush.msra.mxu0 %v707
      %1077 = vmatmul.f32.gmra.mxu0 %v499
      %v1078 = vpop.f32.mrf.mxu0
      %v1079 = vadd.f32 %v966, %v1078
      %1080 = vmatmul.f32.gmra.mxu0 %v502
      %v1081 = vpop.f32.mrf.mxu0
      %v1082 = vadd.f32 %v969, %v1081
      %1083 = vmatmul.f32.gmra.mxu0 %v505
      %v1084 = vpop.f32.mrf.mxu0
      %v1085 = vadd.f32 %v972, %v1084
      %1086 = vmatmul.f32.gmra.mxu0 %v508
      %v1087 = vpop.f32.mrf.mxu0
      %v1088 = vadd.f32 %v975, %v1087
      %1089 = vmatmul.f32.gmra.mxu0 %v511
      %v1090 = vpop.f32.mrf.mxu0
      %v1091 = vadd.f32 %v978, %v1090
      %1092 = vmatmul.f32.gmra.mxu0 %v514
      %v1093 = vpop.f32.mrf.mxu0
      %v1094 = vadd.f32 %v981, %v1093
      %1095 = vmatmul.f32.gmra.mxu0 %v517
      %v1096 = vpop.f32.mrf.mxu0
      %v1097 = vadd.f32 %v984, %v1096
      %1098 = vmatmul.f32.gmra.mxu0 %v520
      %v1099 = vpop.f32.mrf.mxu0
      %v1100 = vadd.f32 %v987, %v1099
      %1101 = vmatmul.f32.gmra.mxu0 %v523
      %v1102 = vpop.f32.mrf.mxu0
      %v1103 = vadd.f32 %v990, %v1102
      %1104 = vmatmul.f32.gmra.mxu0 %v526
      %v1105 = vpop.f32.mrf.mxu0
      %v1106 = vadd.f32 %v993, %v1105
      %1107 = vmatmul.f32.gmra.mxu0 %v529
      %v1108 = vpop.f32.mrf.mxu0
      %v1109 = vadd.f32 %v996, %v1108
      %1110 = vmatmul.f32.gmra.mxu0 %v532
      %v1111 = vpop.f32.mrf.mxu0
      %v1112 = vadd.f32 %v999, %v1111
      %1113 = vmatmul.f32.gmra.mxu0 %v535
      %v1114 = vpop.f32.mrf.mxu0
      %v1115 = vadd.f32 %v1002, %v1114
      %1116 = vmatmul.f32.gmra.mxu0 %v538
      %v1117 = vpop.f32.mrf.mxu0
      %v1118 = vadd.f32 %v1005, %v1117
      %1119 = vmatmul.f32.gmra.mxu0 %v541
      %v1120 = vpop.f32.mrf.mxu0
      %v1121 = vadd.f32 %v1008, %v1120
      %1122 = vmatmul.f32.gmra.mxu0 %v544
      %v1123 = vpop.f32.mrf.mxu0
      %v1124 = vadd.f32 %v1011, %v1123
      %1125 = vmatmul.f32.gmra.mxu0 %v547
      %v1126 = vpop.f32.mrf.mxu0
      %v1127 = vadd.f32 %v1014, %v1126
      %1128 = vmatmul.f32.gmra.mxu0 %v550
      %v1129 = vpop.f32.mrf.mxu0
      %v1130 = vadd.f32 %v1017, %v1129
      %1131 = vmatmul.f32.gmra.mxu0 %v553
      %v1132 = vpop.f32.mrf.mxu0
      %v1133 = vadd.f32 %v1020, %v1132
      %1134 = vmatmul.f32.gmra.mxu0 %v556
      %v1135 = vpop.f32.mrf.mxu0
      %v1136 = vadd.f32 %v1023, %v1135
      %1137 = vmatmul.f32.gmra.mxu0 %v559
      %v1138 = vpop.f32.mrf.mxu0
      %v1139 = vadd.f32 %v1026, %v1138
      %1140 = vmatmul.f32.gmra.mxu0 %v562
      %v1141 = vpop.f32.mrf.mxu0
      %v1142 = vadd.f32 %v1029, %v1141
      %1143 = vmatmul.f32.gmra.mxu0 %v565
      %v1144 = vpop.f32.mrf.mxu0
      %v1145 = vadd.f32 %v1032, %v1144
      %1146 = vmatmul.f32.gmra.mxu0 %v568
      %v1147 = vpop.f32.mrf.mxu0
      %v1148 = vadd.f32 %v1035, %v1147
      %1149 = vmatmul.f32.gmra.mxu0 %v571
      %v1150 = vpop.f32.mrf.mxu0
      %v1151 = vadd.f32 %v1038, %v1150
      %1152 = vmatmul.f32.gmra.mxu0 %v574
      %v1153 = vpop.f32.mrf.mxu0
      %v1154 = vadd.f32 %v1041, %v1153
      %1155 = vmatmul.f32.gmra.mxu0 %v577
      %v1156 = vpop.f32.mrf.mxu0
      %v1157 = vadd.f32 %v1044, %v1156
      %1158 = vmatmul.f32.gmra.mxu0 %v580
      %v1159 = vpop.f32.mrf.mxu0
      %v1160 = vadd.f32 %v1047, %v1159
      %1161 = vmatmul.f32.gmra.mxu0 %v583
      %v1162 = vpop.f32.mrf.mxu0
      %v1163 = vadd.f32 %v1050, %v1162
      %1164 = vmatmul.f32.gmra.mxu0 %v586
      %v1165 = vpop.f32.mrf.mxu0
      %v1166 = vadd.f32 %v1053, %v1165
      %1167 = vmatmul.f32.gmra.mxu0 %v589
      %v1168 = vpop.f32.mrf.mxu0
      %v1169 = vadd.f32 %v1056, %v1168
      %1170 = vmatmul.f32.gmra.mxu0 %v592
      %v1171 = vpop.f32.mrf.mxu0
      %v1172 = vadd.f32 %v1059, %v1171
      %1173 = vdwg.mxu0
      %1174 = vmatpush.msra.mxu0 %v738
      %1175 = vmatpush.msra.mxu0 %v737
      %1176 = vmatpush.msra.mxu0 %v736
      %1177 = vmatpush.msra.mxu0 %v735
      %1178 = vmatpush.msra.mxu0 %v734
      %1179 = vmatpush.msra.mxu0 %v733
      %1180 = vmatpush.msra.mxu0 %v732
      %1181 = vmatpush.msra.mxu0 %v731
      %1182 = vmatpush.msra.mxu0 %v730
      %1183 = vmatpush.msra.mxu0 %v729
      %1184 = vmatpush.msra.mxu0 %v728
      %1185 = vmatpush.msra.mxu0 %v727
      %1186 = vmatpush.msra.mxu0 %v726
      %1187 = vmatpush.msra.mxu0 %v725
      %1188 = vmatpush.msra.mxu0 %v724
      %1189 = vmatpush.msra.mxu0 %v723
      %1190 = vmatmul.f32.gmra.mxu0 %v612
      %v1191 = vpop.f32.mrf.mxu0
      %v1192 = vadd.f32 %v1079, %v1191
      %1193 = vmatmul.f32.gmra.mxu0 %v615
      %v1194 = vpop.f32.mrf.mxu0
      %v1195 = vadd.f32 %v1082, %v1194
      %1196 = vmatmul.f32.gmra.mxu0 %v618
      %v1197 = vpop.f32.mrf.mxu0
      %v1198 = vadd.f32 %v1085, %v1197
      %1199 = vmatmul.f32.gmra.mxu0 %v621
      %v1200 = vpop.f32.mrf.mxu0
      %v1201 = vadd.f32 %v1088, %v1200
      %1202 = vmatmul.f32.gmra.mxu0 %v624
      %v1203 = vpop.f32.mrf.mxu0
      %v1204 = vadd.f32 %v1091, %v1203
      %1205 = vmatmul.f32.gmra.mxu0 %v627
      %v1206 = vpop.f32.mrf.mxu0
      %v1207 = vadd.f32 %v1094, %v1206
      %1208 = vmatmul.f32.gmra.mxu0 %v630
      %v1209 = vpop.f32.mrf.mxu0
      %v1210 = vadd.f32 %v1097, %v1209
      %1211 = vmatmul.f32.gmra.mxu0 %v633
      %v1212 = vpop.f32.mrf.mxu0
      %v1213 = vadd.f32 %v1100, %v1212
      %1214 = vmatmul.f32.gmra.mxu0 %v636
      %v1215 = vpop.f32.mrf.mxu0
      %v1216 = vadd.f32 %v1103, %v1215
      %1217 = vmatmul.f32.gmra.mxu0 %v639
      %v1218 = vpop.f32.mrf.mxu0
      %v1219 = vadd.f32 %v1106, %v1218
      %1220 = vmatmul.f32.gmra.mxu0 %v642
      %v1221 = vpop.f32.mrf.mxu0
      %v1222 = vadd.f32 %v1109, %v1221
      %1223 = vmatmul.f32.gmra.mxu0 %v645
      %v1224 = vpop.f32.mrf.mxu0
      %v1225 = vadd.f32 %v1112, %v1224
      %1226 = vmatmul.f32.gmra.mxu0 %v648
      %v1227 = vpop.f32.mrf.mxu0
      %v1228 = vadd.f32 %v1115, %v1227
      %1229 = vmatmul.f32.gmra.mxu0 %v651
      %v1230 = vpop.f32.mrf.mxu0
      %v1231 = vadd.f32 %v1118, %v1230
      %1232 = vmatmul.f32.gmra.mxu0 %v654
      %v1233 = vpop.f32.mrf.mxu0
      %v1234 = vadd.f32 %v1121, %v1233
      %1235 = vmatmul.f32.gmra.mxu0 %v657
      %v1236 = vpop.f32.mrf.mxu0
      %v1237 = vadd.f32 %v1124, %v1236
      %1238 = vmatmul.f32.gmra.mxu0 %v660
      %v1239 = vpop.f32.mrf.mxu0
      %v1240 = vadd.f32 %v1127, %v1239
      %1241 = vmatmul.f32.gmra.mxu0 %v663
      %v1242 = vpop.f32.mrf.mxu0
      %v1243 = vadd.f32 %v1130, %v1242
      %1244 = vmatmul.f32.gmra.mxu0 %v666
      %v1245 = vpop.f32.mrf.mxu0
      %v1246 = vadd.f32 %v1133, %v1245
      %1247 = vmatmul.f32.gmra.mxu0 %v669
      %v1248 = vpop.f32.mrf.mxu0
      %v1249 = vadd.f32 %v1136, %v1248
      %1250 = vmatmul.f32.gmra.mxu0 %v672
      %v1251 = vpop.f32.mrf.mxu0
      %v1252 = vadd.f32 %v1139, %v1251
      %1253 = vmatmul.f32.gmra.mxu0 %v675
      %v1254 = vpop.f32.mrf.mxu0
      %v1255 = vadd.f32 %v1142, %v1254
      %1256 = vmatmul.f32.gmra.mxu0 %v678
      %v1257 = vpop.f32.mrf.mxu0
      %v1258 = vadd.f32 %v1145, %v1257
      %1259 = vmatmul.f32.gmra.mxu0 %v681
      %v1260 = vpop.f32.mrf.mxu0
      %v1261 = vadd.f32 %v1148, %v1260
      %1262 = vmatmul.f32.gmra.mxu0 %v684
      %v1263 = vpop.f32.mrf.mxu0
      %v1264 = vadd.f32 %v1151, %v1263
      %1265 = vmatmul.f32.gmra.mxu0 %v687
      %v1266 = vpop.f32.mrf.mxu0
      %v1267 = vadd.f32 %v1154, %v1266
      %1268 = vmatmul.f32.gmra.mxu0 %v690
      %v1269 = vpop.f32.mrf.mxu0
      %v1270 = vadd.f32 %v1157, %v1269
      %1271 = vmatmul.f32.gmra.mxu0 %v693
      %v1272 = vpop.f32.mrf.mxu0
      %v1273 = vadd.f32 %v1160, %v1272
      %1274 = vmatmul.f32.gmra.mxu0 %v696
      %v1275 = vpop.f32.mrf.mxu0
      %v1276 = vadd.f32 %v1163, %v1275
      %1277 = vmatmul.f32.gmra.mxu0 %v699
      %v1278 = vpop.f32.mrf.mxu0
      %v1279 = vadd.f32 %v1166, %v1278
      %1280 = vmatmul.f32.gmra.mxu0 %v702
      %v1281 = vpop.f32.mrf.mxu0
      %v1282 = vadd.f32 %v1169, %v1281
      %1283 = vmatmul.f32.gmra.mxu0 %v705
      %v1284 = vpop.f32.mrf.mxu0
      %v1285 = vadd.f32 %v1172, %v1284
      %1286 = vdwg.mxu0
      %v1287 = vld [vmem:[%s5] sm:$0x1]
      %v1289 = vperm.slane %v1287, 0
      %v1291 = vadd.f32 %v1192, %v1289
      %v1292 = vadd.f32 %v1195, %v1289
      %v1293 = vadd.f32 %v1198, %v1289
      %v1294 = vadd.f32 %v1201, %v1289
      %v1295 = vadd.f32 %v1204, %v1289
      %v1296 = vadd.f32 %v1207, %v1289
      %v1297 = vadd.f32 %v1210, %v1289
      %v1298 = vadd.f32 %v1213, %v1289
      %v1299 = vadd.f32 %v1216, %v1289
      %v1300 = vadd.f32 %v1219, %v1289
      %v1301 = vadd.f32 %v1222, %v1289
      %v1302 = vadd.f32 %v1225, %v1289
      %v1303 = vadd.f32 %v1228, %v1289
      %v1304 = vadd.f32 %v1231, %v1289
      %v1305 = vadd.f32 %v1234, %v1289
      %v1306 = vadd.f32 %v1237, %v1289
      %v1307 = vadd.f32 %v1240, %v1289
      %v1308 = vadd.f32 %v1243, %v1289
      %v1309 = vadd.f32 %v1246, %v1289
      %v1310 = vadd.f32 %v1249, %v1289
      %v1311 = vadd.f32 %v1252, %v1289
      %v1312 = vadd.f32 %v1255, %v1289
      %v1313 = vadd.f32 %v1258, %v1289
      %v1314 = vadd.f32 %v1261, %v1289
      %v1315 = vadd.f32 %v1264, %v1289
      %v1316 = vadd.f32 %v1267, %v1289
      %v1317 = vadd.f32 %v1270, %v1289
      %v1318 = vadd.f32 %v1273, %v1289
      %v1319 = vadd.f32 %v1276, %v1289
      %v1320 = vadd.f32 %v1279, %v1289
      %v1321 = vadd.f32 %v1282, %v1289
      %v1322 = vadd.f32 %v1285, %v1289
      %v1323 = vmax.f32 %v1291, 0.0
      %v1324 = vmax.f32 %v1292, 0.0
      %v1325 = vmax.f32 %v1293, 0.0
      %v1326 = vmax.f32 %v1294, 0.0
      %v1327 = vmax.f32 %v1295, 0.0
      %v1328 = vmax.f32 %v1296, 0.0
      %v1329 = vmax.f32 %v1297, 0.0
      %v1330 = vmax.f32 %v1298, 0.0
      %v1331 = vmax.f32 %v1299, 0.0
      %v1332 = vmax.f32 %v1300, 0.0
      %v1333 = vmax.f32 %v1301, 0.0
      %v1334 = vmax.f32 %v1302, 0.0
      %v1335 = vmax.f32 %v1303, 0.0
      %v1336 = vmax.f32 %v1304, 0.0
      %v1337 = vmax.f32 %v1305, 0.0
      %v1338 = vmax.f32 %v1306, 0.0
      %v1339 = vmax.f32 %v1307, 0.0
      %v1340 = vmax.f32 %v1308, 0.0
      %v1341 = vmax.f32 %v1309, 0.0
      %v1342 = vmax.f32 %v1310, 0.0
      %v1343 = vmax.f32 %v1311, 0.0
      %v1344 = vmax.f32 %v1312, 0.0
      %v1345 = vmax.f32 %v1313, 0.0
      %v1346 = vmax.f32 %v1314, 0.0
      %v1347 = vmax.f32 %v1315, 0.0
      %v1348 = vmax.f32 %v1316, 0.0
      %v1349 = vmax.f32 %v1317, 0.0
      %v1350 = vmax.f32 %v1318, 0.0
      %v1351 = vmax.f32 %v1319, 0.0
      %v1352 = vmax.f32 %v1320, 0.0
      %v1353 = vmax.f32 %v1321, 0.0
      %v1354 = vmax.f32 %v1322, 0.0
      %1355 = vst [vmem:[%s334] sm:$0xff] %v1323
      %1356 = vst [vmem:[%s334 + $0x8] sm:$0xff] %v1324
      %1357 = vst [vmem:[%s334 + $0x10] sm:$0xff] %v1325
      %1358 = vst [vmem:[%s334 + $0x18] sm:$0xff] %v1326
      %1359 = vst [vmem:[%s334 + $0x20] sm:$0xff] %v1327
      %1360 = vst [vmem:[%s334 + $0x28] sm:$0xff] %v1328
      %1361 = vst [vmem:[%s334 + $0x30] sm:$0xff] %v1329
      %1362 = vst [vmem:[%s334 + $0x38] sm:$0xff] %v1330
      %1363 = vst [vmem:[%s334 + $0x40] sm:$0xff] %v1331
      %1364 = vst [vmem:[%s334 + $0x48] sm:$0xff] %v1332
      %1365 = vst [vmem:[%s334 + $0x50] sm:$0xff] %v1333
      %1366 = vst [vmem:[%s334 + $0x58] sm:$0xff] %v1334
      %1367 = vst [vmem:[%s334 + $0x60] sm:$0xff] %v1335
      %1368 = vst [vmem:[%s334 + $0x68] sm:$0xff] %v1336
      %1369 = vst [vmem:[%s334 + $0x70] sm:$0xff] %v1337
      %1370 = vst [vmem:[%s334 + $0x78] sm:$0xff] %v1338
      %1371 = vst [vmem:[%s334 + $0x80] sm:$0xff] %v1339
      %1372 = vst [vmem:[%s334 + $0x88] sm:$0xff] %v1340
      %1373 = vst [vmem:[%s334 + $0x90] sm:$0xff] %v1341
      %1374 = vst [vmem:[%s334 + $0x98] sm:$0xff] %v1342
      %1375 = vst [vmem:[%s334 + $0xa0] sm:$0xff] %v1343
      %1376 = vst [vmem:[%s334 + $0xa8] sm:$0xff] %v1344
      %1377 = vst [vmem:[%s334 + $0xb0] sm:$0xff] %v1345
      %1378 = vst [vmem:[%s334 + $0xb8] sm:$0xff] %v1346
      %1379 = vst [vmem:[%s334 + $0xc0] sm:$0xff] %v1347
      %1380 = vst [vmem:[%s334 + $0xc8] sm:$0xff] %v1348
      %1381 = vst [vmem:[%s334 + $0xd0] sm:$0xff] %v1349
      %1382 = vst [vmem:[%s334 + $0xd8] sm:$0xff] %v1350
      %1383 = vst [vmem:[%s334 + $0xe0] sm:$0xff] %v1351
      %1384 = vst [vmem:[%s334 + $0xe8] sm:$0xff] %v1352
      %1385 = vst [vmem:[%s334 + $0xf0] sm:$0xff] %v1353
      %1386 = vst [vmem:[%s334 + $0xf8] sm:$0xff] %v1354
      %s1387 = smul.u32 32, %s22
      %p1388 = scmp.lt.s32.totalorder %s21, 1
      %s1389 = scalar_select %p1388, %s21, 1
      %p1390 = scmp.lt.s32.totalorder %s1387, 31
      %s1391 = scalar_select %p1390, %s1387, 31
      %s1392 = smul.addr %s1389, 32
      %s1393 = sadd.s32 %s1391, %s1392
      %s1394 = smul.addr %s1393, 8
      %s1395 = scalar_lea.vmem %s6, %s1394
      // Predicated region
      $region45: #{base22_forward.2} parent=43 // pred_check
        %p1396 = pneg %p192
      $region46: #{base22_forward.2} parent=43 // pred_check_branch
        %1398 = sbr.rel (%p1396) target = $region48
      $region47: #{base22_forward.2} parent=43 // pred_region
        %s1399 = smul.u32 32, %s22
      $region48: #{base22_forward.2} parent=43 // pred_fallthru
        _
    $region44: #{base22_forward.2} parent=5 // pred_fallthru
      _
    %p1400 = scmp.le.s32.totalorder 2, %s12
    // Predicated region
    $region49: #{base22_forward.2} parent=5 // pred_check
      %p1401 = pneg %p1400
    $region50: #{base22_forward.2} parent=5 // pred_check_branch
      %1403 = sbr.rel (%p1401) target = $region52
    $region51: #{base22_forward.2} parent=5 // pred_region
      %s1404 = ssub.s32 %s12, 2
      // Predicated region
      $region53: #{base22_forward.2} parent=51 // pred_check
        %p1405 = pneg %p198
      $region54: #{base22_forward.2} parent=51 // pred_check_branch
        %1407 = sbr.rel (%p1405) target = $region56
      $region55: #{base22_forward.2} parent=51 // pred_region
        %s1408 = smul.u32 32, %s24
        %p1409 = scmp.lt.s32.totalorder %s23, 1
        %s1410 = scalar_select %p1409, %s23, 1
        %p1411 = scmp.lt.s32.totalorder %s1408, 31
        %s1412 = scalar_select %p1411, %s1408, 31
        %s1413 = smul.addr %s1410, 32
        %s1414 = sadd.s32 %s1412, %s1413
        %s1415 = smul.addr %s1414, 8
        %s1416 = scalar_lea.vmem %s6, %s1415
      $region56: #{base22_forward.2} parent=51 // pred_fallthru
        _
    $region52: #{base22_forward.2} parent=5 // pred_fallthru
      _
  $region6: #{base22_forward.2} parent=0 // loop_footer
    %s16 = sadd.s32 1, %s12
  $region7: #{base22_forward.2} parent=0 // loop_footer_branch
    %11 = sbr.rel target = $region3
  $region8: #{base22_forward.2} parent=0 // loop_exit
    _

// kernel: base22_forward.3
$region0: #{base22_forward.3}
  #allocation0 [shape = 'u32[]', space=smem, size = 0x4, offset = 0x4, fixed_abs, tag = 'smem constant byte address 0x4 - core index']
  #allocation1 [shape = 'u32[72,128]{1,0:T(1,128)}', space=vmem, size = 0x9000, scoped, tag = 'internal scratch']
  %s0 = inlined_call_operand.vmem [shape: f32[2,342,128], index: 0, kind: input, shape index: {}]
  %s1 = inlined_call_operand.vmem [shape: f32[9,128,128], index: 1, kind: input, shape index: {}]
  %s2 = inlined_call_operand.vmem [shape: f32[1,128], index: 2, kind: input, shape index: {}]
  %s3 = inlined_call_operand.vmem [shape: f32[2,288,128], index: 3, kind: output, shape index: {}]
  %s4 = sld [smem:[#allocation0]]
  $region45: #{base22_forward.3} parent=0
    _
  %s6 = ssub.s32 1, %s4
  %s7 = scalar_select 0, %s6, %s4
  loop: start=0, step=1, limit=4
  $region2: #{base22_forward.3} parent=0 // loop_pre_header
    _
  $region3: #{base22_forward.3} parent=0 // loop_header
    %s9 = sphi 0, %s13
    %p10 = scmp.ge.s32.totalorder %s9, 4
    %s19 = sphi 0, %s21
    %s22 = sphi 0, %s19
    %s23 = sphi 0, %s22
    %s39 = sphi 0, %s23
    %s43 = sphi 0, %s43
    %s45 = sphi 0, %s43
    %s46 = sphi 0, %s45
    %s60 = sphi 0, %s46
    %s64 = sphi 0, %s64
    %s66 = sphi 0, %s64
    %s67 = sphi 0, %s66
    %s81 = sphi 0, %s67
    %s87 = sphi 0, %s89
    %s90 = sphi 0, %s87
    %s91 = sphi 0, %s90
    %s107 = sphi 0, %s91
  $region4: #{base22_forward.3} parent=0 // loop_header_branch
    %12 = sbr.rel (%p10) target = $region8
  $region5: #{base22_forward.3} parent=0 // loop_body
    %s14 = ssub.s32 %s9, 1
    %s15 = ssub.s32 %s9, 2
    %s16 = sadd.s32 %s9, 1
    %s17 = ssub.s32 %s9, %s16
    %p18 = scmp.eq.s32.totalorder %s17, 0
    %s20 = sadd.s32 %s19, 1
    %s21 = scalar_select %p18, %s19, %s20
    %p24 = pneg %p18
    %p25 = scmp.eq.s32.totalorder %s9, 1
    %p26 = por %p24, %p25
    %p27 = scmp.ne.s32.totalorder %s19, %s22
    %p28 = scmp.eq.s32.totalorder %s9, 0
    %p29 = por %p27, %p28
    %p30 = scmp.ne.s32.totalorder %s19, %s22
    %p31 = scmp.eq.s32.totalorder %s14, 1
    %p32 = por %p30, %p31
    %p33 = scmp.ne.s32.totalorder %s22, %s23
    %p34 = scmp.eq.s32.totalorder %s14, 0
    %p35 = por %p33, %p34
    %p36 = scmp.ne.s32.totalorder %s22, %s23
    %p37 = scmp.eq.s32.totalorder %s15, 1
    %p38 = por %p36, %p37
    %p40 = scmp.ne.s32.totalorder %s23, %s39
    %p41 = scmp.eq.s32.totalorder %s15, 0
    %p42 = por %p40, %p41
    %s44 = sadd.s32 %s43, 1
    %p47 = scmp.eq.s32.totalorder %s9, 1
    %p48 = scmp.ne.s32.totalorder %s43, %s45
    %p49 = scmp.eq.s32.totalorder %s9, 0
    %p50 = por %p48, %p49
    %p51 = scmp.ne.s32.totalorder %s43, %s45
    %p52 = scmp.eq.s32.totalorder %s14, 1
    %p53 = por %p51, %p52
    %p54 = scmp.ne.s32.totalorder %s45, %s46
    %p55 = scmp.eq.s32.totalorder %s14, 0
    %p56 = por %p54, %p55
    %p57 = scmp.ne.s32.totalorder %s45, %s46
    %p58 = scmp.eq.s32.totalorder %s15, 1
    %p59 = por %p57, %p58
    %p61 = scmp.ne.s32.totalorder %s46, %s60
    %p62 = scmp.eq.s32.totalorder %s15, 0
    %p63 = por %p61, %p62
    %s65 = sadd.s32 %s64, 1
    %p68 = scmp.eq.s32.totalorder %s9, 1
    %p69 = scmp.ne.s32.totalorder %s64, %s66
    %p70 = scmp.eq.s32.totalorder %s9, 0
    %p71 = por %p69, %p70
    %p72 = scmp.ne.s32.totalorder %s64, %s66
    %p73 = scmp.eq.s32.totalorder %s14, 1
    %p74 = por %p72, %p73
    %p75 = scmp.ne.s32.totalorder %s66, %s67
    %p76 = scmp.eq.s32.totalorder %s14, 0
    %p77 = por %p75, %p76
    %p78 = scmp.ne.s32.totalorder %s66, %s67
    %p79 = scmp.eq.s32.totalorder %s15, 1
    %p80 = por %p78, %p79
    %p82 = scmp.ne.s32.totalorder %s67, %s81
    %p83 = scmp.eq.s32.totalorder %s15, 0
    %p84 = por %p82, %p83
    %s85 = ssub.s32 %s9, %s16
    %p86 = scmp.eq.s32.totalorder %s85, 0
    %s88 = sadd.s32 %s87, 1
    %s89 = scalar_select %p86, %s87, %s88
    %p92 = pneg %p86
    %p93 = scmp.eq.s32.totalorder %s9, 1
    %p94 = por %p92, %p93
    %p95 = scmp.ne.s32.totalorder %s87, %s90
    %p96 = scmp.eq.s32.totalorder %s9, 0
    %p97 = por %p95, %p96
    %p98 = scmp.ne.s32.totalorder %s87, %s90
    %p99 = scmp.eq.s32.totalorder %s14, 1
    %p100 = por %p98, %p99
    %p101 = scmp.ne.s32.totalorder %s90, %s91
    %p102 = scmp.eq.s32.totalorder %s14, 0
    %p103 = por %p101, %p102
    %p104 = scmp.ne.s32.totalorder %s90, %s91
    %p105 = scmp.eq.s32.totalorder %s15, 1
    %p106 = por %p104, %p105
    %p108 = scmp.ne.s32.totalorder %s91, %s107
    %p109 = scmp.eq.s32.totalorder %s15, 0
    %p110 = por %p108, %p109
    %p111 = scmp.le.s32.totalorder 1, %s9
    %p112 = scmp.lt.s32.totalorder %s9, 3
    %p113 = pnand %p111, %p112
    %p114 = pneg %p113
    // Predicated region
    $region9: #{base22_forward.3} parent=5 // pred_check
      _
    $region10: #{base22_forward.3} parent=5 // pred_check_branch
      %116 = sbr.rel (%p113) target = $region12
    $region11: #{base22_forward.3} parent=5 // pred_region
      %s117 = ssub.s32 %s9, 1
      // Predicated region
      $region13: #{base22_forward.3} parent=11 // pred_check
        %p118 = pneg %p56
      $region14: #{base22_forward.3} parent=11 // pred_check_branch
        %120 = sbr.rel (%p118) target = $region16
      $region15: #{base22_forward.3} parent=11 // pred_region
        _
      $region16: #{base22_forward.3} parent=11 // pred_fallthru
        _
      // Predicated region
      $region17: #{base22_forward.3} parent=11 // pred_check
        %p121 = pneg %p77
      $region18: #{base22_forward.3} parent=11 // pred_check_branch
        %123 = sbr.rel (%p121) target = $region20
      $region19: #{base22_forward.3} parent=11 // pred_region
        _
      $region20: #{base22_forward.3} parent=11 // pred_fallthru
        _
    $region12: #{base22_forward.3} parent=5 // pred_fallthru
      _
    %p124 = scmp.lt.s32.totalorder %s9, 2
    // Predicated region
    $region21: #{base22_forward.3} parent=5 // pred_check
      %p125 = pneg %p124
    $region22: #{base22_forward.3} parent=5 // pred_check_branch
      %127 = sbr.rel (%p125) target = $region24
    $region23: #{base22_forward.3} parent=5 // pred_region
      // Predicated region
      $region25: #{base22_forward.3} parent=23 // pred_check
        %p128 = pneg %p29
      $region26: #{base22_forward.3} parent=23 // pred_check_branch
        %130 = sbr.rel (%p128) target = $region28
      $region27: #{base22_forward.3} parent=23 // pred_region
        %p131 = scmp.lt.s32.totalorder %s9, 1
        %s132 = scalar_select %p131, %s9, 1
        %s133 = smul.addr %s132, 43
        %s134 = smul.addr %s133, 8
        %s135 = scalar_lea.vmem %s0, %s134
      $region28: #{base22_forward.3} parent=23 // pred_fallthru
        _
    $region24: #{base22_forward.3} parent=5 // pred_fallthru
      _
    %p136 = scmp.le.s32.totalorder 1, %s9
    %p137 = scmp.lt.s32.totalorder %s9, 3
    %p138 = pnand %p136, %p137
    %p139 = pneg %p138
    // Predicated region
    $region29: #{base22_forward.3} parent=5 // pred_check
      _
    $region30: #{base22_forward.3} parent=5 // pred_check_branch
      %141 = sbr.rel (%p138) target = $region32
    $region31: #{base22_forward.3} parent=5 // pred_region
      %s142 = ssub.s32 %s9, 1
      %p143 = scmp.lt.s32.totalorder %s14, 1
      %s144 = scalar_select %p143, %s14, 1
      %s145 = smul.addr %s144, 43
      %s146 = smul.addr %s145, 8
      %s147 = scalar_lea.vmem %s0, %s146
      %p148 = pneg %p35
      %p149 = pneg %p32
      %p150 = pneg %p56
      %p151 = pneg %p53
      %p152 = pneg %p77
      %p153 = pneg %p74
      %p154 = pneg %p103
      %p155 = pneg %p100
      %p156 = scmp.lt.s32.totalorder %s14, 1
      %s157 = scalar_select %p156, %s14, 1
      %s158 = smul.addr %s157, 36
      %s159 = smul.addr %s158, 8
      %s160 = scalar_lea.vmem %s3, %s159
      %p161 = scmp.lt.s32.totalorder %s14, 1
      %s162 = scalar_select %p161, %s14, 1
      %s163 = smul.addr %s162, 43
      %s164 = smul.addr %s163, 8
      %s165 = scalar_lea.vmem %s0, %s164
      %p166 = scmp.lt.s32.totalorder %s14, 1
      %s167 = scalar_select %p166, %s14, 1
      %s168 = smul.addr %s167, 36
      %s169 = smul.addr %s168, 8
      %s170 = scalar_lea.vmem %s3, %s169
      %v171 = vld [vmem:[%s165] sm:$0xff]
      %v172 = vld [vmem:[%s165 + $0x8] sm:$0xff]
      %v173 = vld [vmem:[%s165 + $0x10] sm:$0xff]
      %v174 = vld [vmem:[%s165 + $0x18] sm:$0xff]
      %v175 = vld [vmem:[%s165 + $0x20] sm:$0xff]
      %v176 = vld [vmem:[%s165 + $0x28] sm:$0xff]
      %v177 = vld [vmem:[%s165 + $0x30] sm:$0xff]
      %v178 = vld [vmem:[%s165 + $0x38] sm:$0xff]
      %v179 = vld [vmem:[%s165 + $0x40] sm:$0xff]
      %v180 = vld [vmem:[%s165 + $0x48] sm:$0xff]
      %v181 = vld [vmem:[%s165 + $0x50] sm:$0xff]
      %v182 = vld [vmem:[%s165 + $0x58] sm:$0xff]
      %v183 = vld [vmem:[%s165 + $0x60] sm:$0xff]
      %v184 = vld [vmem:[%s165 + $0x68] sm:$0xff]
      %v185 = vld [vmem:[%s165 + $0x70] sm:$0xff]
      %v186 = vld [vmem:[%s165 + $0x78] sm:$0xff]
      %v187 = vld [vmem:[%s165 + $0x80] sm:$0xff]
      %v188 = vld [vmem:[%s165 + $0x88] sm:$0xff]
      %v189 = vld [vmem:[%s165 + $0x90] sm:$0xff]
      %v190 = vld [vmem:[%s165 + $0x98] sm:$0xff]
      %v191 = vld [vmem:[%s165 + $0xa0] sm:$0xff]
      %v192 = vld [vmem:[%s165 + $0xa8] sm:$0xff]
      %v193 = vld [vmem:[%s165 + $0xb0] sm:$0xff]
      %v194 = vld [vmem:[%s165 + $0xb8] sm:$0xff]
      %v195 = vld [vmem:[%s165 + $0xc0] sm:$0xff]
      %v196 = vld [vmem:[%s165 + $0xc8] sm:$0xff]
      %v197 = vld [vmem:[%s165 + $0xd0] sm:$0xff]
      %v198 = vld [vmem:[%s165 + $0xd8] sm:$0xff]
      %v199 = vld [vmem:[%s165 + $0xe0] sm:$0xff]
      %v200 = vld [vmem:[%s165 + $0xe8] sm:$0xff]
      %v201 = vld [vmem:[%s165 + $0xf0] sm:$0xff]
      %v202 = vld [vmem:[%s165 + $0xf8] sm:$0xff]
      %v203 = vld [vmem:[%s165 + $0x100] sm:$0xff]
      %v204 = vld [vmem:[%s165 + $0x108] sm:$0xff]
      %v205 = vld [vmem:[%s165 + $0x110] sm:$0xff]
      %v206 = vld [vmem:[%s165 + $0x118] sm:$0xff]
      %v207 = vld [vmem:[%s165 + $0x120] sm:$0xff]
      %v208 = vld [vmem:[%s165 + $0x128] sm:$0xff]
      %v209 = vld [vmem:[%s165 + $0x130] sm:$0xff]
      %v210 = vld [vmem:[%s165 + $0x138] sm:$0xff]
      %v211 = vld [vmem:[%s165 + $0x140] sm:$0xff]
      %v212 = vld [vmem:[%s1] sm:$0xff]
      %v213 = vld [vmem:[%s1 + $0x8] sm:$0xff]
      %v214 = vld [vmem:[%s1 + $0x10] sm:$0xff]
      %v215 = vld [vmem:[%s1 + $0x18] sm:$0xff]
      %v216 = vld [vmem:[%s1 + $0x20] sm:$0xff]
      %v217 = vld [vmem:[%s1 + $0x28] sm:$0xff]
      %v218 = vld [vmem:[%s1 + $0x30] sm:$0xff]
      %v219 = vld [vmem:[%s1 + $0x38] sm:$0xff]
      %v220 = vld [vmem:[%s1 + $0x40] sm:$0xff]
      %v221 = vld [vmem:[%s1 + $0x48] sm:$0xff]
      %v222 = vld [vmem:[%s1 + $0x50] sm:$0xff]
      %v223 = vld [vmem:[%s1 + $0x58] sm:$0xff]
      %v224 = vld [vmem:[%s1 + $0x60] sm:$0xff]
      %v225 = vld [vmem:[%s1 + $0x68] sm:$0xff]
      %v226 = vld [vmem:[%s1 + $0x70] sm:$0xff]
      %v227 = vld [vmem:[%s1 + $0x78] sm:$0xff]
      %s228 = scalar_lea.vmem %s1, 128
      %v229 = vld [vmem:[%s228] sm:$0xff]
      %v230 = vld [vmem:[%s228 + $0x8] sm:$0xff]
      %v231 = vld [vmem:[%s228 + $0x10] sm:$0xff]
      %v232 = vld [vmem:[%s228 + $0x18] sm:$0xff]
      %v233 = vld [vmem:[%s228 + $0x20] sm:$0xff]
      %v234 = vld [vmem:[%s228 + $0x28] sm:$0xff]
      %v235 = vld [vmem:[%s228 + $0x30] sm:$0xff]
      %v236 = vld [vmem:[%s228 + $0x38] sm:$0xff]
      %v237 = vld [vmem:[%s228 + $0x40] sm:$0xff]
      %v238 = vld [vmem:[%s228 + $0x48] sm:$0xff]
      %v239 = vld [vmem:[%s228 + $0x50] sm:$0xff]
      %v240 = vld [vmem:[%s228 + $0x58] sm:$0xff]
      %v241 = vld [vmem:[%s228 + $0x60] sm:$0xff]
      %v242 = vld [vmem:[%s228 + $0x68] sm:$0xff]
      %v243 = vld [vmem:[%s228 + $0x70] sm:$0xff]
      %v244 = vld [vmem:[%s228 + $0x78] sm:$0xff]
      %vm282 = vcmask 1046528
      %v283 = vrot.slane %v171, 1
      %v284 = vrot.slane %v172, 1
      %v285 = vsel %vm282, %v283, %v284
      %v286 = vrot.slane %v173, 1
      %v287 = vsel %vm282, %v284, %v286
      %v288 = vrot.slane %v174, 1
      %v289 = vsel %vm282, %v286, %v288
      %v290 = vrot.slane %v175, 1
      %v291 = vsel %vm282, %v288, %v290
      %v292 = vrot.slane %v176, 1
      %v293 = vsel %vm282, %v290, %v292
      %v294 = vrot.slane %v177, 1
      %v295 = vsel %vm282, %v292, %v294
      %v296 = vrot.slane %v178, 1
      %v297 = vsel %vm282, %v294, %v296
      %v298 = vrot.slane %v179, 1
      %v299 = vsel %vm282, %v296, %v298
      %v300 = vrot.slane %v180, 1
      %v301 = vsel %vm282, %v298, %v300
      %v302 = vrot.slane %v181, 1
      %v303 = vsel %vm282, %v300, %v302
      %v304 = vrot.slane %v182, 1
      %v305 = vsel %vm282, %v302, %v304
      %v306 = vrot.slane %v183, 1
      %v307 = vsel %vm282, %v304, %v306
      %v308 = vrot.slane %v184, 1
      %v309 = vsel %vm282, %v306, %v308
      %v310 = vrot.slane %v185, 1
      %v311 = vsel %vm282, %v308, %v310
      %v312 = vrot.slane %v186, 1
      %v313 = vsel %vm282, %v310, %v312
      %v314 = vrot.slane %v187, 1
      %v315 = vsel %vm282, %v312, %v314
      %v316 = vrot.slane %v188, 1
      %v317 = vsel %vm282, %v314, %v316
      %v318 = vrot.slane %v189, 1
      %v319 = vsel %vm282, %v316, %v318
      %v320 = vrot.slane %v190, 1
      %v321 = vsel %vm282, %v318, %v320
      %v322 = vrot.slane %v191, 1
      %v323 = vsel %vm282, %v320, %v322
      %v324 = vrot.slane %v192, 1
      %v325 = vsel %vm282, %v322, %v324
      %v326 = vrot.slane %v193, 1
      %v327 = vsel %vm282, %v324, %v326
      %v328 = vrot.slane %v194, 1
      %v329 = vsel %vm282, %v326, %v328
      %v330 = vrot.slane %v195, 1
      %v331 = vsel %vm282, %v328, %v330
      %v332 = vrot.slane %v196, 1
      %v333 = vsel %vm282, %v330, %v332
      %v334 = vrot.slane %v197, 1
      %v335 = vsel %vm282, %v332, %v334
      %v336 = vrot.slane %v198, 1
      %v337 = vsel %vm282, %v334, %v336
      %v338 = vrot.slane %v199, 1
      %v339 = vsel %vm282, %v336, %v338
      %v340 = vrot.slane %v200, 1
      %v341 = vsel %vm282, %v338, %v340
      %v342 = vrot.slane %v201, 1
      %v343 = vsel %vm282, %v340, %v342
      %v344 = vrot.slane %v202, 1
      %v345 = vsel %vm282, %v342, %v344
      %v346 = vrot.slane %v203, 1
      %v347 = vsel %vm282, %v344, %v346
      %v348 = vrot.slane %v204, 1
      %v349 = vsel %vm282, %v346, %v348
      %v350 = vrot.slane %v205, 1
      %v351 = vsel %vm282, %v348, %v350
      %v352 = vrot.slane %v206, 1
      %v353 = vsel %vm282, %v350, %v352
      %v354 = vrot.slane %v207, 1
      %v355 = vsel %vm282, %v352, %v354
      %392 = vmatpush.msra.mxu0 %v244
      %393 = vmatpush.msra.mxu0 %v243
      %394 = vmatpush.msra.mxu0 %v242
      %395 = vmatpush.msra.mxu0 %v241
      %396 = vmatpush.msra.mxu0 %v240
      %397 = vmatpush.msra.mxu0 %v239
      %398 = vmatpush.msra.mxu0 %v238
      %399 = vmatpush.msra.mxu0 %v237
      %400 = vmatpush.msra.mxu0 %v236
      %401 = vmatpush.msra.mxu0 %v235
      %402 = vmatpush.msra.mxu0 %v234
      %403 = vmatpush.msra.mxu0 %v233
      %404 = vmatpush.msra.mxu0 %v232
      %405 = vmatpush.msra.mxu0 %v231
      %406 = vmatpush.msra.mxu0 %v230
      %407 = vmatpush.msra.mxu0 %v229
      %408 = vmatmul.f32.gmra.mxu0 %v285
      %v409 = vpop.f32.mrf.mxu0
      %v410 = vadd.f32 0.0, %v409
      %411 = vmatmul.f32.gmra.mxu0 %v287
      %v412 = vpop.f32.mrf.mxu0
      %v413 = vadd.f32 0.0, %v412
      %414 = vmatmul.f32.gmra.mxu0 %v289
      %v415 = vpop.f32.mrf.mxu0
      %v416 = vadd.f32 0.0, %v415
      %417 = vmatmul.f32.gmra.mxu0 %v291
      %v418 = vpop.f32.mrf.mxu0
      %v419 = vadd.f32 0.0, %v418
      %420 = vmatmul.f32.gmra.mxu0 %v293
      %v421 = vpop.f32.mrf.mxu0
      %v422 = vadd.f32 0.0, %v421
      %423 = vmatmul.f32.gmra.mxu0 %v295
      %v424 = vpop.f32.mrf.mxu0
      %v425 = vadd.f32 0.0, %v424
      %426 = vmatmul.f32.gmra.mxu0 %v297
      %v427 = vpop.f32.mrf.mxu0
      %v428 = vadd.f32 0.0, %v427
      %429 = vmatmul.f32.gmra.mxu0 %v299
      %v430 = vpop.f32.mrf.mxu0
      %v431 = vadd.f32 0.0, %v430
      %432 = vmatmul.f32.gmra.mxu0 %v301
      %v433 = vpop.f32.mrf.mxu0
      %v434 = vadd.f32 0.0, %v433
      %435 = vmatmul.f32.gmra.mxu0 %v303
      %v436 = vpop.f32.mrf.mxu0
      %v437 = vadd.f32 0.0, %v436
      %438 = vmatmul.f32.gmra.mxu0 %v305
      %v439 = vpop.f32.mrf.mxu0
      %v440 = vadd.f32 0.0, %v439
      %441 = vmatmul.f32.gmra.mxu0 %v307
      %v442 = vpop.f32.mrf.mxu0
      %v443 = vadd.f32 0.0, %v442
      %444 = vmatmul.f32.gmra.mxu0 %v309
      %v445 = vpop.f32.mrf.mxu0
      %v446 = vadd.f32 0.0, %v445
      %447 = vmatmul.f32.gmra.mxu0 %v311
      %v448 = vpop.f32.mrf.mxu0
      %v449 = vadd.f32 0.0, %v448
      %450 = vmatmul.f32.gmra.mxu0 %v313
      %v451 = vpop.f32.mrf.mxu0
      %v452 = vadd.f32 0.0, %v451
      %453 = vmatmul.f32.gmra.mxu0 %v315
      %v454 = vpop.f32.mrf.mxu0
      %v455 = vadd.f32 0.0, %v454
      %456 = vmatmul.f32.gmra.mxu0 %v317
      %v457 = vpop.f32.mrf.mxu0
      %v458 = vadd.f32 0.0, %v457
      %459 = vmatmul.f32.gmra.mxu0 %v319
      %v460 = vpop.f32.mrf.mxu0
      %v461 = vadd.f32 0.0, %v460
      %462 = vmatmul.f32.gmra.mxu0 %v321
      %v463 = vpop.f32.mrf.mxu0
      %v464 = vadd.f32 0.0, %v463
      %465 = vmatmul.f32.gmra.mxu0 %v323
      %v466 = vpop.f32.mrf.mxu0
      %v467 = vadd.f32 0.0, %v466
      %468 = vmatmul.f32.gmra.mxu0 %v325
      %v469 = vpop.f32.mrf.mxu0
      %v470 = vadd.f32 0.0, %v469
      %471 = vmatmul.f32.gmra.mxu0 %v327
      %v472 = vpop.f32.mrf.mxu0
      %v473 = vadd.f32 0.0, %v472
      %474 = vmatmul.f32.gmra.mxu0 %v329
      %v475 = vpop.f32.mrf.mxu0
      %v476 = vadd.f32 0.0, %v475
      %477 = vmatmul.f32.gmra.mxu0 %v331
      %v478 = vpop.f32.mrf.mxu0
      %v479 = vadd.f32 0.0, %v478
      %480 = vmatmul.f32.gmra.mxu0 %v333
      %v481 = vpop.f32.mrf.mxu0
      %v482 = vadd.f32 0.0, %v481
      %483 = vmatmul.f32.gmra.mxu0 %v335
      %v484 = vpop.f32.mrf.mxu0
      %v485 = vadd.f32 0.0, %v484
      %486 = vmatmul.f32.gmra.mxu0 %v337
      %v487 = vpop.f32.mrf.mxu0
      %v488 = vadd.f32 0.0, %v487
      %489 = vmatmul.f32.gmra.mxu0 %v339
      %v490 = vpop.f32.mrf.mxu0
      %v491 = vadd.f32 0.0, %v490
      %492 = vmatmul.f32.gmra.mxu0 %v341
      %v493 = vpop.f32.mrf.mxu0
      %v494 = vadd.f32 0.0, %v493
      %495 = vmatmul.f32.gmra.mxu0 %v343
      %v496 = vpop.f32.mrf.mxu0
      %v497 = vadd.f32 0.0, %v496
      %498 = vmatmul.f32.gmra.mxu0 %v345
      %v499 = vpop.f32.mrf.mxu0
      %v500 = vadd.f32 0.0, %v499
      %501 = vmatmul.f32.gmra.mxu0 %v347
      %v502 = vpop.f32.mrf.mxu0
      %v503 = vadd.f32 0.0, %v502
      %504 = vmatmul.f32.gmra.mxu0 %v349
      %v505 = vpop.f32.mrf.mxu0
      %v506 = vadd.f32 0.0, %v505
      %507 = vmatmul.f32.gmra.mxu0 %v351
      %v508 = vpop.f32.mrf.mxu0
      %v509 = vadd.f32 0.0, %v508
      %510 = vmatmul.f32.gmra.mxu0 %v353
      %v511 = vpop.f32.mrf.mxu0
      %v512 = vadd.f32 0.0, %v511
      %513 = vmatmul.f32.gmra.mxu0 %v355
      %v514 = vpop.f32.mrf.mxu0
      %v515 = vadd.f32 0.0, %v514
      %516 = vdwg.mxu0
      %517 = vmatpush.msra.mxu0 %v227
      %518 = vmatpush.msra.mxu0 %v226
      %519 = vmatpush.msra.mxu0 %v225
      %520 = vmatpush.msra.mxu0 %v224
      %521 = vmatpush.msra.mxu0 %v223
      %522 = vmatpush.msra.mxu0 %v222
      %523 = vmatpush.msra.mxu0 %v221
      %524 = vmatpush.msra.mxu0 %v220
      %525 = vmatpush.msra.mxu0 %v219
      %526 = vmatpush.msra.mxu0 %v218
      %527 = vmatpush.msra.mxu0 %v217
      %528 = vmatpush.msra.mxu0 %v216
      %529 = vmatpush.msra.mxu0 %v215
      %530 = vmatpush.msra.mxu0 %v214
      %531 = vmatpush.msra.mxu0 %v213
      %532 = vmatpush.msra.mxu0 %v212
      %533 = vmatmul.f32.gmra.mxu0 %v171
      %v534 = vpop.f32.mrf.mxu0
      %v535 = vadd.f32 %v410, %v534
      %536 = vmatmul.f32.gmra.mxu0 %v172
      %v537 = vpop.f32.mrf.mxu0
      %v538 = vadd.f32 %v413, %v537
      %539 = vmatmul.f32.gmra.mxu0 %v173
      %v540 = vpop.f32.mrf.mxu0
      %v541 = vadd.f32 %v416, %v540
      %542 = vmatmul.f32.gmra.mxu0 %v174
      %v543 = vpop.f32.mrf.mxu0
      %v544 = vadd.f32 %v419, %v543
      %545 = vmatmul.f32.gmra.mxu0 %v175
      %v546 = vpop.f32.mrf.mxu0
      %v547 = vadd.f32 %v422, %v546
      %548 = vmatmul.f32.gmra.mxu0 %v176
      %v549 = vpop.f32.mrf.mxu0
      %v550 = vadd.f32 %v425, %v549
      %551 = vmatmul.f32.gmra.mxu0 %v177
      %v552 = vpop.f32.mrf.mxu0
      %v553 = vadd.f32 %v428, %v552
      %554 = vmatmul.f32.gmra.mxu0 %v178
      %v555 = vpop.f32.mrf.mxu0
      %v556 = vadd.f32 %v431, %v555
      %557 = vmatmul.f32.gmra.mxu0 %v179
      %v558 = vpop.f32.mrf.mxu0
      %v559 = vadd.f32 %v434, %v558
      %560 = vmatmul.f32.gmra.mxu0 %v180
      %v561 = vpop.f32.mrf.mxu0
      %v562 = vadd.f32 %v437, %v561
      %563 = vmatmul.f32.gmra.mxu0 %v181
      %v564 = vpop.f32.mrf.mxu0
      %v565 = vadd.f32 %v440, %v564
      %566 = vmatmul.f32.gmra.mxu0 %v182
      %v567 = vpop.f32.mrf.mxu0
      %v568 = vadd.f32 %v443, %v567
      %569 = vmatmul.f32.gmra.mxu0 %v183
      %v570 = vpop.f32.mrf.mxu0
      %v571 = vadd.f32 %v446, %v570
      %572 = vmatmul.f32.gmra.mxu0 %v184
      %v573 = vpop.f32.mrf.mxu0
      %v574 = vadd.f32 %v449, %v573
      %575 = vmatmul.f32.gmra.mxu0 %v185
      %v576 = vpop.f32.mrf.mxu0
      %v577 = vadd.f32 %v452, %v576
      %578 = vmatmul.f32.gmra.mxu0 %v186
      %v579 = vpop.f32.mrf.mxu0
      %v580 = vadd.f32 %v455, %v579
      %581 = vmatmul.f32.gmra.mxu0 %v187
      %v582 = vpop.f32.mrf.mxu0
      %v583 = vadd.f32 %v458, %v582
      %584 = vmatmul.f32.gmra.mxu0 %v188
      %v585 = vpop.f32.mrf.mxu0
      %v586 = vadd.f32 %v461, %v585
      %587 = vmatmul.f32.gmra.mxu0 %v189
      %v588 = vpop.f32.mrf.mxu0
      %v589 = vadd.f32 %v464, %v588
      %590 = vmatmul.f32.gmra.mxu0 %v190
      %v591 = vpop.f32.mrf.mxu0
      %v592 = vadd.f32 %v467, %v591
      %593 = vmatmul.f32.gmra.mxu0 %v191
      %v594 = vpop.f32.mrf.mxu0
      %v595 = vadd.f32 %v470, %v594
      %596 = vmatmul.f32.gmra.mxu0 %v192
      %v597 = vpop.f32.mrf.mxu0
      %v598 = vadd.f32 %v473, %v597
      %599 = vmatmul.f32.gmra.mxu0 %v193
      %v600 = vpop.f32.mrf.mxu0
      %v601 = vadd.f32 %v476, %v600
      %602 = vmatmul.f32.gmra.mxu0 %v194
      %v603 = vpop.f32.mrf.mxu0
      %v604 = vadd.f32 %v479, %v603
      %605 = vmatmul.f32.gmra.mxu0 %v195
      %v606 = vpop.f32.mrf.mxu0
      %v607 = vadd.f32 %v482, %v606
      %608 = vmatmul.f32.gmra.mxu0 %v196
      %v609 = vpop.f32.mrf.mxu0
      %v610 = vadd.f32 %v485, %v609
      %611 = vmatmul.f32.gmra.mxu0 %v197
      %v612 = vpop.f32.mrf.mxu0
      %v613 = vadd.f32 %v488, %v612
      %614 = vmatmul.f32.gmra.mxu0 %v198
      %v615 = vpop.f32.mrf.mxu0
      %v616 = vadd.f32 %v491, %v615
      %617 = vmatmul.f32.gmra.mxu0 %v199
      %v618 = vpop.f32.mrf.mxu0
      %v619 = vadd.f32 %v494, %v618
      %620 = vmatmul.f32.gmra.mxu0 %v200
      %v621 = vpop.f32.mrf.mxu0
      %v622 = vadd.f32 %v497, %v621
      %623 = vmatmul.f32.gmra.mxu0 %v201
      %v624 = vpop.f32.mrf.mxu0
      %v625 = vadd.f32 %v500, %v624
      %626 = vmatmul.f32.gmra.mxu0 %v202
      %v627 = vpop.f32.mrf.mxu0
      %v628 = vadd.f32 %v503, %v627
      %629 = vmatmul.f32.gmra.mxu0 %v203
      %v630 = vpop.f32.mrf.mxu0
      %v631 = vadd.f32 %v506, %v630
      %632 = vmatmul.f32.gmra.mxu0 %v204
      %v633 = vpop.f32.mrf.mxu0
      %v634 = vadd.f32 %v509, %v633
      %635 = vmatmul.f32.gmra.mxu0 %v205
      %v636 = vpop.f32.mrf.mxu0
      %v637 = vadd.f32 %v512, %v636
      %638 = vmatmul.f32.gmra.mxu0 %v206
      %v639 = vpop.f32.mrf.mxu0
      %v640 = vadd.f32 %v515, %v639
      %641 = vdwg.mxu0
      %s642 = scalar_lea.vmem %s1, 256
      %v643 = vld [vmem:[%s642] sm:$0xff]
      %v644 = vld [vmem:[%s642 + $0x8] sm:$0xff]
      %v645 = vld [vmem:[%s642 + $0x10] sm:$0xff]
      %v646 = vld [vmem:[%s642 + $0x18] sm:$0xff]
      %v647 = vld [vmem:[%s642 + $0x20] sm:$0xff]
      %v648 = vld [vmem:[%s642 + $0x28] sm:$0xff]
      %v649 = vld [vmem:[%s642 + $0x30] sm:$0xff]
      %v650 = vld [vmem:[%s642 + $0x38] sm:$0xff]
      %v651 = vld [vmem:[%s642 + $0x40] sm:$0xff]
      %v652 = vld [vmem:[%s642 + $0x48] sm:$0xff]
      %v653 = vld [vmem:[%s642 + $0x50] sm:$0xff]
      %v654 = vld [vmem:[%s642 + $0x58] sm:$0xff]
      %v655 = vld [vmem:[%s642 + $0x60] sm:$0xff]
      %v656 = vld [vmem:[%s642 + $0x68] sm:$0xff]
      %v657 = vld [vmem:[%s642 + $0x70] sm:$0xff]
      %v658 = vld [vmem:[%s642 + $0x78] sm:$0xff]
      %vm659 = vcmask 1045504
      %v660 = vrot.slane %v171, 2
      %v661 = vrot.slane %v172, 2
      %v662 = vsel %vm659, %v660, %v661
      %v663 = vrot.slane %v173, 2
      %v664 = vsel %vm659, %v661, %v663
      %v665 = vrot.slane %v174, 2
      %v666 = vsel %vm659, %v663, %v665
      %v667 = vrot.slane %v175, 2
      %v668 = vsel %vm659, %v665, %v667
      %v669 = vrot.slane %v176, 2
      %v670 = vsel %vm659, %v667, %v669
      %v671 = vrot.slane %v177, 2
      %v672 = vsel %vm659, %v669, %v671
      %v673 = vrot.slane %v178, 2
      %v674 = vsel %vm659, %v671, %v673
      %v675 = vrot.slane %v179, 2
      %v676 = vsel %vm659, %v673, %v675
      %v677 = vrot.slane %v180, 2
      %v678 = vsel %vm659, %v675, %v677
      %v679 = vrot.slane %v181, 2
      %v680 = vsel %vm659, %v677, %v679
      %v681 = vrot.slane %v182, 2
      %v682 = vsel %vm659, %v679, %v681
      %v683 = vrot.slane %v183, 2
      %v684 = vsel %vm659, %v681, %v683
      %v685 = vrot.slane %v184, 2
      %v686 = vsel %vm659, %v683, %v685
      %v687 = vrot.slane %v185, 2
      %v688 = vsel %vm659, %v685, %v687
      %v689 = vrot.slane %v186, 2
      %v690 = vsel %vm659, %v687, %v689
      %v691 = vrot.slane %v187, 2
      %v692 = vsel %vm659, %v689, %v691
      %v693 = vrot.slane %v188, 2
      %v694 = vsel %vm659, %v691, %v693
      %v695 = vrot.slane %v189, 2
      %v696 = vsel %vm659, %v693, %v695
      %v697 = vrot.slane %v190, 2
      %v698 = vsel %vm659, %v695, %v697
      %v699 = vrot.slane %v191, 2
      %v700 = vsel %vm659, %v697, %v699
      %v701 = vrot.slane %v192, 2
      %v702 = vsel %vm659, %v699, %v701
      %v703 = vrot.slane %v193, 2
      %v704 = vsel %vm659, %v701, %v703
      %v705 = vrot.slane %v194, 2
      %v706 = vsel %vm659, %v703, %v705
      %v707 = vrot.slane %v195, 2
      %v708 = vsel %vm659, %v705, %v707
      %v709 = vrot.slane %v196, 2
      %v710 = vsel %vm659, %v707, %v709
      %v711 = vrot.slane %v197, 2
      %v712 = vsel %vm659, %v709, %v711
      %v713 = vrot.slane %v198, 2
      %v714 = vsel %vm659, %v711, %v713
      %v715 = vrot.slane %v199, 2
      %v716 = vsel %vm659, %v713, %v715
      %v717 = vrot.slane %v200, 2
      %v718 = vsel %vm659, %v715, %v717
      %v719 = vrot.slane %v201, 2
      %v720 = vsel %vm659, %v717, %v719
      %v721 = vrot.slane %v202, 2
      %v722 = vsel %vm659, %v719, %v721
      %v723 = vrot.slane %v203, 2
      %v724 = vsel %vm659, %v721, %v723
      %v725 = vrot.slane %v204, 2
      %v726 = vsel %vm659, %v723, %v725
      %v727 = vrot.slane %v205, 2
      %v728 = vsel %vm659, %v725, %v727
      %v729 = vrot.slane %v206, 2
      %v730 = vsel %vm659, %v727, %v729
      %v731 = vrot.slane %v207, 2
      %v732 = vsel %vm659, %v729, %v731
      %769 = vmatpush.msra.mxu0 %v658
      %770 = vmatpush.msra.mxu0 %v657
      %771 = vmatpush.msra.mxu0 %v656
      %772 = vmatpush.msra.mxu0 %v655
      %773 = vmatpush.msra.mxu0 %v654
      %774 = vmatpush.msra.mxu0 %v653
      %775 = vmatpush.msra.mxu0 %v652
      %776 = vmatpush.msra.mxu0 %v651
      %777 = vmatpush.msra.mxu0 %v650
      %778 = vmatpush.msra.mxu0 %v649
      %779 = vmatpush.msra.mxu0 %v648
      %780 = vmatpush.msra.mxu0 %v647
      %781 = vmatpush.msra.mxu0 %v646
      %782 = vmatpush.msra.mxu0 %v645
      %783 = vmatpush.msra.mxu0 %v644
      %784 = vmatpush.msra.mxu0 %v643
      %785 = vmatmul.f32.gmra.mxu0 %v662
      %v786 = vpop.f32.mrf.mxu0
      %v787 = vadd.f32 0.0, %v786
      %788 = vmatmul.f32.gmra.mxu0 %v664
      %v789 = vpop.f32.mrf.mxu0
      %v790 = vadd.f32 0.0, %v789
      %791 = vmatmul.f32.gmra.mxu0 %v666
      %v792 = vpop.f32.mrf.mxu0
      %v793 = vadd.f32 0.0, %v792
      %794 = vmatmul.f32.gmra.mxu0 %v668
      %v795 = vpop.f32.mrf.mxu0
      %v796 = vadd.f32 0.0, %v795
      %797 = vmatmul.f32.gmra.mxu0 %v670
      %v798 = vpop.f32.mrf.mxu0
      %v799 = vadd.f32 0.0, %v798
      %800 = vmatmul.f32.gmra.mxu0 %v672
      %v801 = vpop.f32.mrf.mxu0
      %v802 = vadd.f32 0.0, %v801
      %803 = vmatmul.f32.gmra.mxu0 %v674
      %v804 = vpop.f32.mrf.mxu0
      %v805 = vadd.f32 0.0, %v804
      %806 = vmatmul.f32.gmra.mxu0 %v676
      %v807 = vpop.f32.mrf.mxu0
      %v808 = vadd.f32 0.0, %v807
      %809 = vmatmul.f32.gmra.mxu0 %v678
      %v810 = vpop.f32.mrf.mxu0
      %v811 = vadd.f32 0.0, %v810
      %812 = vmatmul.f32.gmra.mxu0 %v680
      %v813 = vpop.f32.mrf.mxu0
      %v814 = vadd.f32 0.0, %v813
      %815 = vmatmul.f32.gmra.mxu0 %v682
      %v816 = vpop.f32.mrf.mxu0
      %v817 = vadd.f32 0.0, %v816
      %818 = vmatmul.f32.gmra.mxu0 %v684
      %v819 = vpop.f32.mrf.mxu0
      %v820 = vadd.f32 0.0, %v819
      %821 = vmatmul.f32.gmra.mxu0 %v686
      %v822 = vpop.f32.mrf.mxu0
      %v823 = vadd.f32 0.0, %v822
      %824 = vmatmul.f32.gmra.mxu0 %v688
      %v825 = vpop.f32.mrf.mxu0
      %v826 = vadd.f32 0.0, %v825
      %827 = vmatmul.f32.gmra.mxu0 %v690
      %v828 = vpop.f32.mrf.mxu0
      %v829 = vadd.f32 0.0, %v828
      %830 = vmatmul.f32.gmra.mxu0 %v692
      %v831 = vpop.f32.mrf.mxu0
      %v832 = vadd.f32 0.0, %v831
      %833 = vmatmul.f32.gmra.mxu0 %v694
      %v834 = vpop.f32.mrf.mxu0
      %v835 = vadd.f32 0.0, %v834
      %836 = vmatmul.f32.gmra.mxu0 %v696
      %v837 = vpop.f32.mrf.mxu0
      %v838 = vadd.f32 0.0, %v837
      %839 = vmatmul.f32.gmra.mxu0 %v698
      %v840 = vpop.f32.mrf.mxu0
      %v841 = vadd.f32 0.0, %v840
      %842 = vmatmul.f32.gmra.mxu0 %v700
      %v843 = vpop.f32.mrf.mxu0
      %v844 = vadd.f32 0.0, %v843
      %845 = vmatmul.f32.gmra.mxu0 %v702
      %v846 = vpop.f32.mrf.mxu0
      %v847 = vadd.f32 0.0, %v846
      %848 = vmatmul.f32.gmra.mxu0 %v704
      %v849 = vpop.f32.mrf.mxu0
      %v850 = vadd.f32 0.0, %v849
      %851 = vmatmul.f32.gmra.mxu0 %v706
      %v852 = vpop.f32.mrf.mxu0
      %v853 = vadd.f32 0.0, %v852
      %854 = vmatmul.f32.gmra.mxu0 %v708
      %v855 = vpop.f32.mrf.mxu0
      %v856 = vadd.f32 0.0, %v855
      %857 = vmatmul.f32.gmra.mxu0 %v710
      %v858 = vpop.f32.mrf.mxu0
      %v859 = vadd.f32 0.0, %v858
      %860 = vmatmul.f32.gmra.mxu0 %v712
      %v861 = vpop.f32.mrf.mxu0
      %v862 = vadd.f32 0.0, %v861
      %863 = vmatmul.f32.gmra.mxu0 %v714
      %v864 = vpop.f32.mrf.mxu0
      %v865 = vadd.f32 0.0, %v864
      %866 = vmatmul.f32.gmra.mxu0 %v716
      %v867 = vpop.f32.mrf.mxu0
      %v868 = vadd.f32 0.0, %v867
      %869 = vmatmul.f32.gmra.mxu0 %v718
      %v870 = vpop.f32.mrf.mxu0
      %v871 = vadd.f32 0.0, %v870
      %872 = vmatmul.f32.gmra.mxu0 %v720
      %v873 = vpop.f32.mrf.mxu0
      %v874 = vadd.f32 0.0, %v873
      %875 = vmatmul.f32.gmra.mxu0 %v722
      %v876 = vpop.f32.mrf.mxu0
      %v877 = vadd.f32 0.0, %v876
      %878 = vmatmul.f32.gmra.mxu0 %v724
      %v879 = vpop.f32.mrf.mxu0
      %v880 = vadd.f32 0.0, %v879
      %881 = vmatmul.f32.gmra.mxu0 %v726
      %v882 = vpop.f32.mrf.mxu0
      %v883 = vadd.f32 0.0, %v882
      %884 = vmatmul.f32.gmra.mxu0 %v728
      %v885 = vpop.f32.mrf.mxu0
      %v886 = vadd.f32 0.0, %v885
      %887 = vmatmul.f32.gmra.mxu0 %v730
      %v888 = vpop.f32.mrf.mxu0
      %v889 = vadd.f32 0.0, %v888
      %890 = vmatmul.f32.gmra.mxu0 %v732
      %v891 = vpop.f32.mrf.mxu0
      %v892 = vadd.f32 0.0, %v891
      %893 = vdwg.mxu0
      %v894 = vadd.f32 %v535, %v787
      %v895 = vadd.f32 %v538, %v790
      %v896 = vadd.f32 %v541, %v793
      %v897 = vadd.f32 %v544, %v796
      %v898 = vadd.f32 %v547, %v799
      %v899 = vadd.f32 %v550, %v802
      %v900 = vadd.f32 %v553, %v805
      %v901 = vadd.f32 %v556, %v808
      %v902 = vadd.f32 %v559, %v811
      %v903 = vadd.f32 %v562, %v814
      %v904 = vadd.f32 %v565, %v817
      %v905 = vadd.f32 %v568, %v820
      %v906 = vadd.f32 %v571, %v823
      %v907 = vadd.f32 %v574, %v826
      %v908 = vadd.f32 %v577, %v829
      %v909 = vadd.f32 %v580, %v832
      %v910 = vadd.f32 %v583, %v835
      %v911 = vadd.f32 %v586, %v838
      %v912 = vadd.f32 %v589, %v841
      %v913 = vadd.f32 %v592, %v844
      %v914 = vadd.f32 %v595, %v847
      %v915 = vadd.f32 %v598, %v850
      %v916 = vadd.f32 %v601, %v853
      %v917 = vadd.f32 %v604, %v856
      %v918 = vadd.f32 %v607, %v859
      %v919 = vadd.f32 %v610, %v862
      %v920 = vadd.f32 %v613, %v865
      %v921 = vadd.f32 %v616, %v868
      %v922 = vadd.f32 %v619, %v871
      %v923 = vadd.f32 %v622, %v874
      %v924 = vadd.f32 %v625, %v877
      %v925 = vadd.f32 %v628, %v880
      %v926 = vadd.f32 %v631, %v883
      %v927 = vadd.f32 %v634, %v886
      %v928 = vadd.f32 %v637, %v889
      %v929 = vadd.f32 %v640, %v892
      %s930 = scalar_lea.vmem %s1, 384
      %v931 = vld [vmem:[%s930] sm:$0xff]
      %v932 = vld [vmem:[%s930 + $0x8] sm:$0xff]
      %v933 = vld [vmem:[%s930 + $0x10] sm:$0xff]
      %v934 = vld [vmem:[%s930 + $0x18] sm:$0xff]
      %v935 = vld [vmem:[%s930 + $0x20] sm:$0xff]
      %v936 = vld [vmem:[%s930 + $0x28] sm:$0xff]
      %v937 = vld [vmem:[%s930 + $0x30] sm:$0xff]
      %v938 = vld [vmem:[%s930 + $0x38] sm:$0xff]
      %v939 = vld [vmem:[%s930 + $0x40] sm:$0xff]
      %v940 = vld [vmem:[%s930 + $0x48] sm:$0xff]
      %v941 = vld [vmem:[%s930 + $0x50] sm:$0xff]
      %v942 = vld [vmem:[%s930 + $0x58] sm:$0xff]
      %v943 = vld [vmem:[%s930 + $0x60] sm:$0xff]
      %v944 = vld [vmem:[%s930 + $0x68] sm:$0xff]
      %v945 = vld [vmem:[%s930 + $0x70] sm:$0xff]
      %v946 = vld [vmem:[%s930 + $0x78] sm:$0xff]
      %v949 = vrot.slane %v208, 2
      %v950 = vsel %vm659, %v731, %v949
      %v951 = vrot.slane %v209, 2
      %v952 = vsel %vm659, %v949, %v951
      %955 = vmatpush.msra.mxu0 %v946
      %956 = vmatpush.msra.mxu0 %v945
      %957 = vmatpush.msra.mxu0 %v944
      %958 = vmatpush.msra.mxu0 %v943
      %959 = vmatpush.msra.mxu0 %v942
      %960 = vmatpush.msra.mxu0 %v941
      %961 = vmatpush.msra.mxu0 %v940
      %962 = vmatpush.msra.mxu0 %v939
      %963 = vmatpush.msra.mxu0 %v938
      %964 = vmatpush.msra.mxu0 %v937
      %965 = vmatpush.msra.mxu0 %v936
      %966 = vmatpush.msra.mxu0 %v935
      %967 = vmatpush.msra.mxu0 %v934
      %968 = vmatpush.msra.mxu0 %v933
      %969 = vmatpush.msra.mxu0 %v932
      %970 = vmatpush.msra.mxu0 %v931
      %971 = vmatmul.f32.gmra.mxu0 %v666
      %v972 = vpop.f32.mrf.mxu0
      %v973 = vadd.f32 0.0, %v972
      %974 = vmatmul.f32.gmra.mxu0 %v668
      %v975 = vpop.f32.mrf.mxu0
      %v976 = vadd.f32 0.0, %v975
      %977 = vmatmul.f32.gmra.mxu0 %v670
      %v978 = vpop.f32.mrf.mxu0
      %v979 = vadd.f32 0.0, %v978
      %980 = vmatmul.f32.gmra.mxu0 %v672
      %v981 = vpop.f32.mrf.mxu0
      %v982 = vadd.f32 0.0, %v981
      %983 = vmatmul.f32.gmra.mxu0 %v674
      %v984 = vpop.f32.mrf.mxu0
      %v985 = vadd.f32 0.0, %v984
      %986 = vmatmul.f32.gmra.mxu0 %v676
      %v987 = vpop.f32.mrf.mxu0
      %v988 = vadd.f32 0.0, %v987
      %989 = vmatmul.f32.gmra.mxu0 %v678
      %v990 = vpop.f32.mrf.mxu0
      %v991 = vadd.f32 0.0, %v990
      %992 = vmatmul.f32.gmra.mxu0 %v680
      %v993 = vpop.f32.mrf.mxu0
      %v994 = vadd.f32 0.0, %v993
      %995 = vmatmul.f32.gmra.mxu0 %v682
      %v996 = vpop.f32.mrf.mxu0
      %v997 = vadd.f32 0.0, %v996
      %998 = vmatmul.f32.gmra.mxu0 %v684
      %v999 = vpop.f32.mrf.mxu0
      %v1000 = vadd.f32 0.0, %v999
      %1001 = vmatmul.f32.gmra.mxu0 %v686
      %v1002 = vpop.f32.mrf.mxu0
      %v1003 = vadd.f32 0.0, %v1002
      %1004 = vmatmul.f32.gmra.mxu0 %v688
      %v1005 = vpop.f32.mrf.mxu0
      %v1006 = vadd.f32 0.0, %v1005
      %1007 = vmatmul.f32.gmra.mxu0 %v690
      %v1008 = vpop.f32.mrf.mxu0
      %v1009 = vadd.f32 0.0, %v1008
      %1010 = vmatmul.f32.gmra.mxu0 %v692
      %v1011 = vpop.f32.mrf.mxu0
      %v1012 = vadd.f32 0.0, %v1011
      %1013 = vmatmul.f32.gmra.mxu0 %v694
      %v1014 = vpop.f32.mrf.mxu0
      %v1015 = vadd.f32 0.0, %v1014
      %1016 = vmatmul.f32.gmra.mxu0 %v696
      %v1017 = vpop.f32.mrf.mxu0
      %v1018 = vadd.f32 0.0, %v1017
      %1019 = vmatmul.f32.gmra.mxu0 %v698
      %v1020 = vpop.f32.mrf.mxu0
      %v1021 = vadd.f32 0.0, %v1020
      %1022 = vmatmul.f32.gmra.mxu0 %v700
      %v1023 = vpop.f32.mrf.mxu0
      %v1024 = vadd.f32 0.0, %v1023
      %1025 = vmatmul.f32.gmra.mxu0 %v702
      %v1026 = vpop.f32.mrf.mxu0
      %v1027 = vadd.f32 0.0, %v1026
      %1028 = vmatmul.f32.gmra.mxu0 %v704
      %v1029 = vpop.f32.mrf.mxu0
      %v1030 = vadd.f32 0.0, %v1029
      %1031 = vmatmul.f32.gmra.mxu0 %v706
      %v1032 = vpop.f32.mrf.mxu0
      %v1033 = vadd.f32 0.0, %v1032
      %1034 = vmatmul.f32.gmra.mxu0 %v708
      %v1035 = vpop.f32.mrf.mxu0
      %v1036 = vadd.f32 0.0, %v1035
      %1037 = vmatmul.f32.gmra.mxu0 %v710
      %v1038 = vpop.f32.mrf.mxu0
      %v1039 = vadd.f32 0.0, %v1038
      %1040 = vmatmul.f32.gmra.mxu0 %v712
      %v1041 = vpop.f32.mrf.mxu0
      %v1042 = vadd.f32 0.0, %v1041
      %1043 = vmatmul.f32.gmra.mxu0 %v714
      %v1044 = vpop.f32.mrf.mxu0
      %v1045 = vadd.f32 0.0, %v1044
      %1046 = vmatmul.f32.gmra.mxu0 %v716
      %v1047 = vpop.f32.mrf.mxu0
      %v1048 = vadd.f32 0.0, %v1047
      %1049 = vmatmul.f32.gmra.mxu0 %v718
      %v1050 = vpop.f32.mrf.mxu0
      %v1051 = vadd.f32 0.0, %v1050
      %1052 = vmatmul.f32.gmra.mxu0 %v720
      %v1053 = vpop.f32.mrf.mxu0
      %v1054 = vadd.f32 0.0, %v1053
      %1055 = vmatmul.f32.gmra.mxu0 %v722
      %v1056 = vpop.f32.mrf.mxu0
      %v1057 = vadd.f32 0.0, %v1056
      %1058 = vmatmul.f32.gmra.mxu0 %v724
      %v1059 = vpop.f32.mrf.mxu0
      %v1060 = vadd.f32 0.0, %v1059
      %1061 = vmatmul.f32.gmra.mxu0 %v726
      %v1062 = vpop.f32.mrf.mxu0
      %v1063 = vadd.f32 0.0, %v1062
      %1064 = vmatmul.f32.gmra.mxu0 %v728
      %v1065 = vpop.f32.mrf.mxu0
      %v1066 = vadd.f32 0.0, %v1065
      %1067 = vmatmul.f32.gmra.mxu0 %v730
      %v1068 = vpop.f32.mrf.mxu0
      %v1069 = vadd.f32 0.0, %v1068
      %1070 = vmatmul.f32.gmra.mxu0 %v732
      %v1071 = vpop.f32.mrf.mxu0
      %v1072 = vadd.f32 0.0, %v1071
      %1073 = vmatmul.f32.gmra.mxu0 %v950
      %v1074 = vpop.f32.mrf.mxu0
      %v1075 = vadd.f32 0.0, %v1074
      %1076 = vmatmul.f32.gmra.mxu0 %v952
      %v1077 = vpop.f32.mrf.mxu0
      %v1078 = vadd.f32 0.0, %v1077
      %1079 = vdwg.mxu0
      %v1080 = vadd.f32 %v894, %v973
      %v1081 = vadd.f32 %v895, %v976
      %v1082 = vadd.f32 %v896, %v979
      %v1083 = vadd.f32 %v897, %v982
      %v1084 = vadd.f32 %v898, %v985
      %v1085 = vadd.f32 %v899, %v988
      %v1086 = vadd.f32 %v900, %v991
      %v1087 = vadd.f32 %v901, %v994
      %v1088 = vadd.f32 %v902, %v997
      %v1089 = vadd.f32 %v903, %v1000
      %v1090 = vadd.f32 %v904, %v1003
      %v1091 = vadd.f32 %v905, %v1006
      %v1092 = vadd.f32 %v906, %v1009
      %v1093 = vadd.f32 %v907, %v1012
      %v1094 = vadd.f32 %v908, %v1015
      %v1095 = vadd.f32 %v909, %v1018
      %v1096 = vadd.f32 %v910, %v1021
      %v1097 = vadd.f32 %v911, %v1024
      %v1098 = vadd.f32 %v912, %v1027
      %v1099 = vadd.f32 %v913, %v1030
      %v1100 = vadd.f32 %v914, %v1033
      %v1101 = vadd.f32 %v915, %v1036
      %v1102 = vadd.f32 %v916, %v1039
      %v1103 = vadd.f32 %v917, %v1042
      %v1104 = vadd.f32 %v918, %v1045
      %v1105 = vadd.f32 %v919, %v1048
      %v1106 = vadd.f32 %v920, %v1051
      %v1107 = vadd.f32 %v921, %v1054
      %v1108 = vadd.f32 %v922, %v1057
      %v1109 = vadd.f32 %v923, %v1060
      %v1110 = vadd.f32 %v924, %v1063
      %v1111 = vadd.f32 %v925, %v1066
      %v1112 = vadd.f32 %v926, %v1069
      %v1113 = vadd.f32 %v927, %v1072
      %v1114 = vadd.f32 %v928, %v1075
      %v1115 = vadd.f32 %v929, %v1078
      %s1116 = scalar_lea.vmem %s1, 512
      %v1117 = vld [vmem:[%s1116] sm:$0xff]
      %v1118 = vld [vmem:[%s1116 + $0x8] sm:$0xff]
      %v1119 = vld [vmem:[%s1116 + $0x10] sm:$0xff]
      %v1120 = vld [vmem:[%s1116 + $0x18] sm:$0xff]
      %v1121 = vld [vmem:[%s1116 + $0x20] sm:$0xff]
      %v1122 = vld [vmem:[%s1116 + $0x28] sm:$0xff]
      %v1123 = vld [vmem:[%s1116 + $0x30] sm:$0xff]
      %v1124 = vld [vmem:[%s1116 + $0x38] sm:$0xff]
      %v1125 = vld [vmem:[%s1116 + $0x40] sm:$0xff]
      %v1126 = vld [vmem:[%s1116 + $0x48] sm:$0xff]
      %v1127 = vld [vmem:[%s1116 + $0x50] sm:$0xff]
      %v1128 = vld [vmem:[%s1116 + $0x58] sm:$0xff]
      %v1129 = vld [vmem:[%s1116 + $0x60] sm:$0xff]
      %v1130 = vld [vmem:[%s1116 + $0x68] sm:$0xff]
      %v1131 = vld [vmem:[%s1116 + $0x70] sm:$0xff]
      %v1132 = vld [vmem:[%s1116 + $0x78] sm:$0xff]
      %vm1133 = vcmask 1044480
      %v1134 = vrot.slane %v173, 3
      %v1135 = vrot.slane %v174, 3
      %v1136 = vsel %vm1133, %v1134, %v1135
      %v1137 = vrot.slane %v175, 3
      %v1138 = vsel %vm1133, %v1135, %v1137
      %v1139 = vrot.slane %v176, 3
      %v1140 = vsel %vm1133, %v1137, %v1139
      %v1141 = vrot.slane %v177, 3
      %v1142 = vsel %vm1133, %v1139, %v1141
      %v1143 = vrot.slane %v178, 3
      %v1144 = vsel %vm1133, %v1141, %v1143
      %v1145 = vrot.slane %v179, 3
      %v1146 = vsel %vm1133, %v1143, %v1145
      %v1147 = vrot.slane %v180, 3
      %v1148 = vsel %vm1133, %v1145, %v1147
      %v1149 = vrot.slane %v181, 3
      %v1150 = vsel %vm1133, %v1147, %v1149
      %v1151 = vrot.slane %v182, 3
      %v1152 = vsel %vm1133, %v1149, %v1151
      %v1153 = vrot.slane %v183, 3
      %v1154 = vsel %vm1133, %v1151, %v1153
      %v1155 = vrot.slane %v184, 3
      %v1156 = vsel %vm1133, %v1153, %v1155
      %v1157 = vrot.slane %v185, 3
      %v1158 = vsel %vm1133, %v1155, %v1157
      %v1159 = vrot.slane %v186, 3
      %v1160 = vsel %vm1133, %v1157, %v1159
      %v1161 = vrot.slane %v187, 3
      %v1162 = vsel %vm1133, %v1159, %v1161
      %v1163 = vrot.slane %v188, 3
      %v1164 = vsel %vm1133, %v1161, %v1163
      %v1165 = vrot.slane %v189, 3
      %v1166 = vsel %vm1133, %v1163, %v1165
      %v1167 = vrot.slane %v190, 3
      %v1168 = vsel %vm1133, %v1165, %v1167
      %v1169 = vrot.slane %v191, 3
      %v1170 = vsel %vm1133, %v1167, %v1169
      %v1171 = vrot.slane %v192, 3
      %v1172 = vsel %vm1133, %v1169, %v1171
      %v1173 = vrot.slane %v193, 3
      %v1174 = vsel %vm1133, %v1171, %v1173
      %v1175 = vrot.slane %v194, 3
      %v1176 = vsel %vm1133, %v1173, %v1175
      %v1177 = vrot.slane %v195, 3
      %v1178 = vsel %vm1133, %v1175, %v1177
      %v1179 = vrot.slane %v196, 3
      %v1180 = vsel %vm1133, %v1177, %v1179
      %v1181 = vrot.slane %v197, 3
      %v1182 = vsel %vm1133, %v1179, %v1181
      %v1183 = vrot.slane %v198, 3
      %v1184 = vsel %vm1133, %v1181, %v1183
      %v1185 = vrot.slane %v199, 3
      %v1186 = vsel %vm1133, %v1183, %v1185
      %v1187 = vrot.slane %v200, 3
      %v1188 = vsel %vm1133, %v1185, %v1187
      %v1189 = vrot.slane %v201, 3
      %v1190 = vsel %vm1133, %v1187, %v1189
      %v1191 = vrot.slane %v202, 3
      %v1192 = vsel %vm1133, %v1189, %v1191
      %v1193 = vrot.slane %v203, 3
      %v1194 = vsel %vm1133, %v1191, %v1193
      %v1195 = vrot.slane %v204, 3
      %v1196 = vsel %vm1133, %v1193, %v1195
      %v1197 = vrot.slane %v205, 3
      %v1198 = vsel %vm1133, %v1195, %v1197
      %v1199 = vrot.slane %v206, 3
      %v1200 = vsel %vm1133, %v1197, %v1199
      %v1201 = vrot.slane %v207, 3
      %v1202 = vsel %vm1133, %v1199, %v1201
      %v1203 = vrot.slane %v208, 3
      %v1204 = vsel %vm1133, %v1201, %v1203
      %v1205 = vrot.slane %v209, 3
      %v1206 = vsel %vm1133, %v1203, %v1205
      %1243 = vmatpush.msra.mxu0 %v1132
      %1244 = vmatpush.msra.mxu0 %v1131
      %1245 = vmatpush.msra.mxu0 %v1130
      %1246 = vmatpush.msra.mxu0 %v1129
      %1247 = vmatpush.msra.mxu0 %v1128
      %1248 = vmatpush.msra.mxu0 %v1127
      %1249 = vmatpush.msra.mxu0 %v1126
      %1250 = vmatpush.msra.mxu0 %v1125
      %1251 = vmatpush.msra.mxu0 %v1124
      %1252 = vmatpush.msra.mxu0 %v1123
      %1253 = vmatpush.msra.mxu0 %v1122
      %1254 = vmatpush.msra.mxu0 %v1121
      %1255 = vmatpush.msra.mxu0 %v1120
      %1256 = vmatpush.msra.mxu0 %v1119
      %1257 = vmatpush.msra.mxu0 %v1118
      %1258 = vmatpush.msra.mxu0 %v1117
      %1259 = vmatmul.f32.gmra.mxu0 %v1136
      %v1260 = vpop.f32.mrf.mxu0
      %v1261 = vadd.f32 0.0, %v1260
      %1262 = vmatmul.f32.gmra.mxu0 %v1138
      %v1263 = vpop.f32.mrf.mxu0
      %v1264 = vadd.f32 0.0, %v1263
      %1265 = vmatmul.f32.gmra.mxu0 %v1140
      %v1266 = vpop.f32.mrf.mxu0
      %v1267 = vadd.f32 0.0, %v1266
      %1268 = vmatmul.f32.gmra.mxu0 %v1142
      %v1269 = vpop.f32.mrf.mxu0
      %v1270 = vadd.f32 0.0, %v1269
      %1271 = vmatmul.f32.gmra.mxu0 %v1144
      %v1272 = vpop.f32.mrf.mxu0
      %v1273 = vadd.f32 0.0, %v1272
      %1274 = vmatmul.f32.gmra.mxu0 %v1146
      %v1275 = vpop.f32.mrf.mxu0
      %v1276 = vadd.f32 0.0, %v1275
      %1277 = vmatmul.f32.gmra.mxu0 %v1148
      %v1278 = vpop.f32.mrf.mxu0
      %v1279 = vadd.f32 0.0, %v1278
      %1280 = vmatmul.f32.gmra.mxu0 %v1150
      %v1281 = vpop.f32.mrf.mxu0
      %v1282 = vadd.f32 0.0, %v1281
      %1283 = vmatmul.f32.gmra.mxu0 %v1152
      %v1284 = vpop.f32.mrf.mxu0
      %v1285 = vadd.f32 0.0, %v1284
      %1286 = vmatmul.f32.gmra.mxu0 %v1154
      %v1287 = vpop.f32.mrf.mxu0
      %v1288 = vadd.f32 0.0, %v1287
      %1289 = vmatmul.f32.gmra.mxu0 %v1156
      %v1290 = vpop.f32.mrf.mxu0
      %v1291 = vadd.f32 0.0, %v1290
      %1292 = vmatmul.f32.gmra.mxu0 %v1158
      %v1293 = vpop.f32.mrf.mxu0
      %v1294 = vadd.f32 0.0, %v1293
      %1295 = vmatmul.f32.gmra.mxu0 %v1160
      %v1296 = vpop.f32.mrf.mxu0
      %v1297 = vadd.f32 0.0, %v1296
      %1298 = vmatmul.f32.gmra.mxu0 %v1162
      %v1299 = vpop.f32.mrf.mxu0
      %v1300 = vadd.f32 0.0, %v1299
      %1301 = vmatmul.f32.gmra.mxu0 %v1164
      %v1302 = vpop.f32.mrf.mxu0
      %v1303 = vadd.f32 0.0, %v1302
      %1304 = vmatmul.f32.gmra.mxu0 %v1166
      %v1305 = vpop.f32.mrf.mxu0
      %v1306 = vadd.f32 0.0, %v1305
      %1307 = vmatmul.f32.gmra.mxu0 %v1168
      %v1308 = vpop.f32.mrf.mxu0
      %v1309 = vadd.f32 0.0, %v1308
      %1310 = vmatmul.f32.gmra.mxu0 %v1170
      %v1311 = vpop.f32.mrf.mxu0
      %v1312 = vadd.f32 0.0, %v1311
      %1313 = vmatmul.f32.gmra.mxu0 %v1172
      %v1314 = vpop.f32.mrf.mxu0
      %v1315 = vadd.f32 0.0, %v1314
      %1316 = vmatmul.f32.gmra.mxu0 %v1174
      %v1317 = vpop.f32.mrf.mxu0
      %v1318 = vadd.f32 0.0, %v1317
      %1319 = vmatmul.f32.gmra.mxu0 %v1176
      %v1320 = vpop.f32.mrf.mxu0
      %v1321 = vadd.f32 0.0, %v1320
      %1322 = vmatmul.f32.gmra.mxu0 %v1178
      %v1323 = vpop.f32.mrf.mxu0
      %v1324 = vadd.f32 0.0, %v1323
      %1325 = vmatmul.f32.gmra.mxu0 %v1180
      %v1326 = vpop.f32.mrf.mxu0
      %v1327 = vadd.f32 0.0, %v1326
      %1328 = vmatmul.f32.gmra.mxu0 %v1182
      %v1329 = vpop.f32.mrf.mxu0
      %v1330 = vadd.f32 0.0, %v1329
      %1331 = vmatmul.f32.gmra.mxu0 %v1184
      %v1332 = vpop.f32.mrf.mxu0
      %v1333 = vadd.f32 0.0, %v1332
      %1334 = vmatmul.f32.gmra.mxu0 %v1186
      %v1335 = vpop.f32.mrf.mxu0
      %v1336 = vadd.f32 0.0, %v1335
      %1337 = vmatmul.f32.gmra.mxu0 %v1188
      %v1338 = vpop.f32.mrf.mxu0
      %v1339 = vadd.f32 0.0, %v1338
      %1340 = vmatmul.f32.gmra.mxu0 %v1190
      %v1341 = vpop.f32.mrf.mxu0
      %v1342 = vadd.f32 0.0, %v1341
      %1343 = vmatmul.f32.gmra.mxu0 %v1192
      %v1344 = vpop.f32.mrf.mxu0
      %v1345 = vadd.f32 0.0, %v1344
      %1346 = vmatmul.f32.gmra.mxu0 %v1194
      %v1347 = vpop.f32.mrf.mxu0
      %v1348 = vadd.f32 0.0, %v1347
      %1349 = vmatmul.f32.gmra.mxu0 %v1196
      %v1350 = vpop.f32.mrf.mxu0
      %v1351 = vadd.f32 0.0, %v1350
      %1352 = vmatmul.f32.gmra.mxu0 %v1198
      %v1353 = vpop.f32.mrf.mxu0
      %v1354 = vadd.f32 0.0, %v1353
      %1355 = vmatmul.f32.gmra.mxu0 %v1200
      %v1356 = vpop.f32.mrf.mxu0
      %v1357 = vadd.f32 0.0, %v1356
      %1358 = vmatmul.f32.gmra.mxu0 %v1202
      %v1359 = vpop.f32.mrf.mxu0
      %v1360 = vadd.f32 0.0, %v1359
      %1361 = vmatmul.f32.gmra.mxu0 %v1204
      %v1362 = vpop.f32.mrf.mxu0
      %v1363 = vadd.f32 0.0, %v1362
      %1364 = vmatmul.f32.gmra.mxu0 %v1206
      %v1365 = vpop.f32.mrf.mxu0
      %v1366 = vadd.f32 0.0, %v1365
      %1367 = vdwg.mxu0
      %v1368 = vadd.f32 %v1080, %v1261
      %v1369 = vadd.f32 %v1081, %v1264
      %v1370 = vadd.f32 %v1082, %v1267
      %v1371 = vadd.f32 %v1083, %v1270
      %v1372 = vadd.f32 %v1084, %v1273
      %v1373 = vadd.f32 %v1085, %v1276
      %v1374 = vadd.f32 %v1086, %v1279
      %v1375 = vadd.f32 %v1087, %v1282
      %v1376 = vadd.f32 %v1088, %v1285
      %v1377 = vadd.f32 %v1089, %v1288
      %v1378 = vadd.f32 %v1090, %v1291
      %v1379 = vadd.f32 %v1091, %v1294
      %v1380 = vadd.f32 %v1092, %v1297
      %v1381 = vadd.f32 %v1093, %v1300
      %v1382 = vadd.f32 %v1094, %v1303
      %v1383 = vadd.f32 %v1095, %v1306
      %v1384 = vadd.f32 %v1096, %v1309
      %v1385 = vadd.f32 %v1097, %v1312
      %v1386 = vadd.f32 %v1098, %v1315
      %v1387 = vadd.f32 %v1099, %v1318
      %v1388 = vadd.f32 %v1100, %v1321
      %v1389 = vadd.f32 %v1101, %v1324
      %v1390 = vadd.f32 %v1102, %v1327
      %v1391 = vadd.f32 %v1103, %v1330
      %v1392 = vadd.f32 %v1104, %v1333
      %v1393 = vadd.f32 %v1105, %v1336
      %v1394 = vadd.f32 %v1106, %v1339
      %v1395 = vadd.f32 %v1107, %v1342
      %v1396 = vadd.f32 %v1108, %v1345
      %v1397 = vadd.f32 %v1109, %v1348
      %v1398 = vadd.f32 %v1110, %v1351
      %v1399 = vadd.f32 %v1111, %v1354
      %v1400 = vadd.f32 %v1112, %v1357
      %v1401 = vadd.f32 %v1113, %v1360
      %v1402 = vadd.f32 %v1114, %v1363
      %v1403 = vadd.f32 %v1115, %v1366
      %s1404 = scalar_lea.vmem %s1, 640
      %v1405 = vld [vmem:[%s1404] sm:$0xff]
      %v1406 = vld [vmem:[%s1404 + $0x8] sm:$0xff]
      %v1407 = vld [vmem:[%s1404 + $0x10] sm:$0xff]
      %v1408 = vld [vmem:[%s1404 + $0x18] sm:$0xff]
      %v1409 = vld [vmem:[%s1404 + $0x20] sm:$0xff]
      %v1410 = vld [vmem:[%s1404 + $0x28] sm:$0xff]
      %v1411 = vld [vmem:[%s1404 + $0x30] sm:$0xff]
      %v1412 = vld [vmem:[%s1404 + $0x38] sm:$0xff]
      %v1413 = vld [vmem:[%s1404 + $0x40] sm:$0xff]
      %v1414 = vld [vmem:[%s1404 + $0x48] sm:$0xff]
      %v1415 = vld [vmem:[%s1404 + $0x50] sm:$0xff]
      %v1416 = vld [vmem:[%s1404 + $0x58] sm:$0xff]
      %v1417 = vld [vmem:[%s1404 + $0x60] sm:$0xff]
      %v1418 = vld [vmem:[%s1404 + $0x68] sm:$0xff]
      %v1419 = vld [vmem:[%s1404 + $0x70] sm:$0xff]
      %v1420 = vld [vmem:[%s1404 + $0x78] sm:$0xff]
      %vm1421 = vcmask 1043456
      %v1422 = vrot.slane %v173, 4
      %v1423 = vrot.slane %v174, 4
      %v1424 = vsel %vm1421, %v1422, %v1423
      %v1425 = vrot.slane %v175, 4
      %v1426 = vsel %vm1421, %v1423, %v1425
      %v1427 = vrot.slane %v176, 4
      %v1428 = vsel %vm1421, %v1425, %v1427
      %v1429 = vrot.slane %v177, 4
      %v1430 = vsel %vm1421, %v1427, %v1429
      %v1431 = vrot.slane %v178, 4
      %v1432 = vsel %vm1421, %v1429, %v1431
      %v1433 = vrot.slane %v179, 4
      %v1434 = vsel %vm1421, %v1431, %v1433
      %v1435 = vrot.slane %v180, 4
      %v1436 = vsel %vm1421, %v1433, %v1435
      %v1437 = vrot.slane %v181, 4
      %v1438 = vsel %vm1421, %v1435, %v1437
      %v1439 = vrot.slane %v182, 4
      %v1440 = vsel %vm1421, %v1437, %v1439
      %v1441 = vrot.slane %v183, 4
      %v1442 = vsel %vm1421, %v1439, %v1441
      %v1443 = vrot.slane %v184, 4
      %v1444 = vsel %vm1421, %v1441, %v1443
      %v1445 = vrot.slane %v185, 4
      %v1446 = vsel %vm1421, %v1443, %v1445
      %v1447 = vrot.slane %v186, 4
      %v1448 = vsel %vm1421, %v1445, %v1447
      %v1449 = vrot.slane %v187, 4
      %v1450 = vsel %vm1421, %v1447, %v1449
      %v1451 = vrot.slane %v188, 4
      %v1452 = vsel %vm1421, %v1449, %v1451
      %v1453 = vrot.slane %v189, 4
      %v1454 = vsel %vm1421, %v1451, %v1453
      %v1455 = vrot.slane %v190, 4
      %v1456 = vsel %vm1421, %v1453, %v1455
      %v1457 = vrot.slane %v191, 4
      %v1458 = vsel %vm1421, %v1455, %v1457
      %v1459 = vrot.slane %v192, 4
      %v1460 = vsel %vm1421, %v1457, %v1459
      %v1461 = vrot.slane %v193, 4
      %v1462 = vsel %vm1421, %v1459, %v1461
      %v1463 = vrot.slane %v194, 4
      %v1464 = vsel %vm1421, %v1461, %v1463
      %v1465 = vrot.slane %v195, 4
      %v1466 = vsel %vm1421, %v1463, %v1465
      %v1467 = vrot.slane %v196, 4
      %v1468 = vsel %vm1421, %v1465, %v1467
      %v1469 = vrot.slane %v197, 4
      %v1470 = vsel %vm1421, %v1467, %v1469
      %v1471 = vrot.slane %v198, 4
      %v1472 = vsel %vm1421, %v1469, %v1471
      %v1473 = vrot.slane %v199, 4
      %v1474 = vsel %vm1421, %v1471, %v1473
      %v1475 = vrot.slane %v200, 4
      %v1476 = vsel %vm1421, %v1473, %v1475
      %v1477 = vrot.slane %v201, 4
      %v1478 = vsel %vm1421, %v1475, %v1477
      %v1479 = vrot.slane %v202, 4
      %v1480 = vsel %vm1421, %v1477, %v1479
      %v1481 = vrot.slane %v203, 4
      %v1482 = vsel %vm1421, %v1479, %v1481
      %v1483 = vrot.slane %v204, 4
      %v1484 = vsel %vm1421, %v1481, %v1483
      %v1485 = vrot.slane %v205, 4
      %v1486 = vsel %vm1421, %v1483, %v1485
      %v1487 = vrot.slane %v206, 4
      %v1488 = vsel %vm1421, %v1485, %v1487
      %v1489 = vrot.slane %v207, 4
      %v1490 = vsel %vm1421, %v1487, %v1489
      %v1491 = vrot.slane %v208, 4
      %v1492 = vsel %vm1421, %v1489, %v1491
      %v1493 = vrot.slane %v209, 4
      %v1494 = vsel %vm1421, %v1491, %v1493
      %1531 = vmatpush.msra.mxu0 %v1420
      %1532 = vmatpush.msra.mxu0 %v1419
      %1533 = vmatpush.msra.mxu0 %v1418
      %1534 = vmatpush.msra.mxu0 %v1417
      %1535 = vmatpush.msra.mxu0 %v1416
      %1536 = vmatpush.msra.mxu0 %v1415
      %1537 = vmatpush.msra.mxu0 %v1414
      %1538 = vmatpush.msra.mxu0 %v1413
      %1539 = vmatpush.msra.mxu0 %v1412
      %1540 = vmatpush.msra.mxu0 %v1411
      %1541 = vmatpush.msra.mxu0 %v1410
      %1542 = vmatpush.msra.mxu0 %v1409
      %1543 = vmatpush.msra.mxu0 %v1408
      %1544 = vmatpush.msra.mxu0 %v1407
      %1545 = vmatpush.msra.mxu0 %v1406
      %1546 = vmatpush.msra.mxu0 %v1405
      %1547 = vmatmul.f32.gmra.mxu0 %v1424
      %v1548 = vpop.f32.mrf.mxu0
      %v1549 = vadd.f32 0.0, %v1548
      %1550 = vmatmul.f32.gmra.mxu0 %v1426
      %v1551 = vpop.f32.mrf.mxu0
      %v1552 = vadd.f32 0.0, %v1551
      %1553 = vmatmul.f32.gmra.mxu0 %v1428
      %v1554 = vpop.f32.mrf.mxu0
      %v1555 = vadd.f32 0.0, %v1554
      %1556 = vmatmul.f32.gmra.mxu0 %v1430
      %v1557 = vpop.f32.mrf.mxu0
      %v1558 = vadd.f32 0.0, %v1557
      %1559 = vmatmul.f32.gmra.mxu0 %v1432
      %v1560 = vpop.f32.mrf.mxu0
      %v1561 = vadd.f32 0.0, %v1560
      %1562 = vmatmul.f32.gmra.mxu0 %v1434
      %v1563 = vpop.f32.mrf.mxu0
      %v1564 = vadd.f32 0.0, %v1563
      %1565 = vmatmul.f32.gmra.mxu0 %v1436
      %v1566 = vpop.f32.mrf.mxu0
      %v1567 = vadd.f32 0.0, %v1566
      %1568 = vmatmul.f32.gmra.mxu0 %v1438
      %v1569 = vpop.f32.mrf.mxu0
      %v1570 = vadd.f32 0.0, %v1569
      %1571 = vmatmul.f32.gmra.mxu0 %v1440
      %v1572 = vpop.f32.mrf.mxu0
      %v1573 = vadd.f32 0.0, %v1572
      %1574 = vmatmul.f32.gmra.mxu0 %v1442
      %v1575 = vpop.f32.mrf.mxu0
      %v1576 = vadd.f32 0.0, %v1575
      %1577 = vmatmul.f32.gmra.mxu0 %v1444
      %v1578 = vpop.f32.mrf.mxu0
      %v1579 = vadd.f32 0.0, %v1578
      %1580 = vmatmul.f32.gmra.mxu0 %v1446
      %v1581 = vpop.f32.mrf.mxu0
      %v1582 = vadd.f32 0.0, %v1581
      %1583 = vmatmul.f32.gmra.mxu0 %v1448
      %v1584 = vpop.f32.mrf.mxu0
      %v1585 = vadd.f32 0.0, %v1584
      %1586 = vmatmul.f32.gmra.mxu0 %v1450
      %v1587 = vpop.f32.mrf.mxu0
      %v1588 = vadd.f32 0.0, %v1587
      %1589 = vmatmul.f32.gmra.mxu0 %v1452
      %v1590 = vpop.f32.mrf.mxu0
      %v1591 = vadd.f32 0.0, %v1590
      %1592 = vmatmul.f32.gmra.mxu0 %v1454
      %v1593 = vpop.f32.mrf.mxu0
      %v1594 = vadd.f32 0.0, %v1593
      %1595 = vmatmul.f32.gmra.mxu0 %v1456
      %v1596 = vpop.f32.mrf.mxu0
      %v1597 = vadd.f32 0.0, %v1596
      %1598 = vmatmul.f32.gmra.mxu0 %v1458
      %v1599 = vpop.f32.mrf.mxu0
      %v1600 = vadd.f32 0.0, %v1599
      %1601 = vmatmul.f32.gmra.mxu0 %v1460
      %v1602 = vpop.f32.mrf.mxu0
      %v1603 = vadd.f32 0.0, %v1602
      %1604 = vmatmul.f32.gmra.mxu0 %v1462
      %v1605 = vpop.f32.mrf.mxu0
      %v1606 = vadd.f32 0.0, %v1605
      %1607 = vmatmul.f32.gmra.mxu0 %v1464
      %v1608 = vpop.f32.mrf.mxu0
      %v1609 = vadd.f32 0.0, %v1608
      %1610 = vmatmul.f32.gmra.mxu0 %v1466
      %v1611 = vpop.f32.mrf.mxu0
      %v1612 = vadd.f32 0.0, %v1611
      %1613 = vmatmul.f32.gmra.mxu0 %v1468
      %v1614 = vpop.f32.mrf.mxu0
      %v1615 = vadd.f32 0.0, %v1614
      %1616 = vmatmul.f32.gmra.mxu0 %v1470
      %v1617 = vpop.f32.mrf.mxu0
      %v1618 = vadd.f32 0.0, %v1617
      %1619 = vmatmul.f32.gmra.mxu0 %v1472
      %v1620 = vpop.f32.mrf.mxu0
      %v1621 = vadd.f32 0.0, %v1620
      %1622 = vmatmul.f32.gmra.mxu0 %v1474
      %v1623 = vpop.f32.mrf.mxu0
      %v1624 = vadd.f32 0.0, %v1623
      %1625 = vmatmul.f32.gmra.mxu0 %v1476
      %v1626 = vpop.f32.mrf.mxu0
      %v1627 = vadd.f32 0.0, %v1626
      %1628 = vmatmul.f32.gmra.mxu0 %v1478
      %v1629 = vpop.f32.mrf.mxu0
      %v1630 = vadd.f32 0.0, %v1629
      %1631 = vmatmul.f32.gmra.mxu0 %v1480
      %v1632 = vpop.f32.mrf.mxu0
      %v1633 = vadd.f32 0.0, %v1632
      %1634 = vmatmul.f32.gmra.mxu0 %v1482
      %v1635 = vpop.f32.mrf.mxu0
      %v1636 = vadd.f32 0.0, %v1635
      %1637 = vmatmul.f32.gmra.mxu0 %v1484
      %v1638 = vpop.f32.mrf.mxu0
      %v1639 = vadd.f32 0.0, %v1638
      %1640 = vmatmul.f32.gmra.mxu0 %v1486
      %v1641 = vpop.f32.mrf.mxu0
      %v1642 = vadd.f32 0.0, %v1641
      %1643 = vmatmul.f32.gmra.mxu0 %v1488
      %v1644 = vpop.f32.mrf.mxu0
      %v1645 = vadd.f32 0.0, %v1644
      %1646 = vmatmul.f32.gmra.mxu0 %v1490
      %v1647 = vpop.f32.mrf.mxu0
      %v1648 = vadd.f32 0.0, %v1647
      %1649 = vmatmul.f32.gmra.mxu0 %v1492
      %v1650 = vpop.f32.mrf.mxu0
      %v1651 = vadd.f32 0.0, %v1650
      %1652 = vmatmul.f32.gmra.mxu0 %v1494
      %v1653 = vpop.f32.mrf.mxu0
      %v1654 = vadd.f32 0.0, %v1653
      %1655 = vdwg.mxu0
      %v1656 = vadd.f32 %v1368, %v1549
      %v1657 = vadd.f32 %v1369, %v1552
      %v1658 = vadd.f32 %v1370, %v1555
      %v1659 = vadd.f32 %v1371, %v1558
      %v1660 = vadd.f32 %v1372, %v1561
      %v1661 = vadd.f32 %v1373, %v1564
      %v1662 = vadd.f32 %v1374, %v1567
      %v1663 = vadd.f32 %v1375, %v1570
      %v1664 = vadd.f32 %v1376, %v1573
      %v1665 = vadd.f32 %v1377, %v1576
      %v1666 = vadd.f32 %v1378, %v1579
      %v1667 = vadd.f32 %v1379, %v1582
      %v1668 = vadd.f32 %v1380, %v1585
      %v1669 = vadd.f32 %v1381, %v1588
      %v1670 = vadd.f32 %v1382, %v1591
      %v1671 = vadd.f32 %v1383, %v1594
      %v1672 = vadd.f32 %v1384, %v1597
      %v1673 = vadd.f32 %v1385, %v1600
      %v1674 = vadd.f32 %v1386, %v1603
      %v1675 = vadd.f32 %v1387, %v1606
      %v1676 = vadd.f32 %v1388, %v1609
      %v1677 = vadd.f32 %v1389, %v1612
      %v1678 = vadd.f32 %v1390, %v1615
      %v1679 = vadd.f32 %v1391, %v1618
      %v1680 = vadd.f32 %v1392, %v1621
      %v1681 = vadd.f32 %v1393, %v1624
      %v1682 = vadd.f32 %v1394, %v1627
      %v1683 = vadd.f32 %v1395, %v1630
      %v1684 = vadd.f32 %v1396, %v1633
      %v1685 = vadd.f32 %v1397, %v1636
      %v1686 = vadd.f32 %v1398, %v1639
      %v1687 = vadd.f32 %v1399, %v1642
      %v1688 = vadd.f32 %v1400, %v1645
      %v1689 = vadd.f32 %v1401, %v1648
      %v1690 = vadd.f32 %v1402, %v1651
      %v1691 = vadd.f32 %v1403, %v1654
      %s1692 = scalar_lea.vmem %s1, 768
      %v1693 = vld [vmem:[%s1692] sm:$0xff]
      %v1694 = vld [vmem:[%s1692 + $0x8] sm:$0xff]
      %v1695 = vld [vmem:[%s1692 + $0x10] sm:$0xff]
      %v1696 = vld [vmem:[%s1692 + $0x18] sm:$0xff]
      %v1697 = vld [vmem:[%s1692 + $0x20] sm:$0xff]
      %v1698 = vld [vmem:[%s1692 + $0x28] sm:$0xff]
      %v1699 = vld [vmem:[%s1692 + $0x30] sm:$0xff]
      %v1700 = vld [vmem:[%s1692 + $0x38] sm:$0xff]
      %v1701 = vld [vmem:[%s1692 + $0x40] sm:$0xff]
      %v1702 = vld [vmem:[%s1692 + $0x48] sm:$0xff]
      %v1703 = vld [vmem:[%s1692 + $0x50] sm:$0xff]
      %v1704 = vld [vmem:[%s1692 + $0x58] sm:$0xff]
      %v1705 = vld [vmem:[%s1692 + $0x60] sm:$0xff]
      %v1706 = vld [vmem:[%s1692 + $0x68] sm:$0xff]
      %v1707 = vld [vmem:[%s1692 + $0x70] sm:$0xff]
      %v1708 = vld [vmem:[%s1692 + $0x78] sm:$0xff]
      %v1711 = vrot.slane %v210, 4
      %v1712 = vsel %vm1421, %v1493, %v1711
      %v1713 = vrot.slane %v211, 4
      %v1714 = vsel %vm1421, %v1711, %v1713
      %1717 = vmatpush.msra.mxu0 %v1708
      %1718 = vmatpush.msra.mxu0 %v1707
      %1719 = vmatpush.msra.mxu0 %v1706
      %1720 = vmatpush.msra.mxu0 %v1705
      %1721 = vmatpush.msra.mxu0 %v1704
      %1722 = vmatpush.msra.mxu0 %v1703
      %1723 = vmatpush.msra.mxu0 %v1702
      %1724 = vmatpush.msra.mxu0 %v1701
      %1725 = vmatpush.msra.mxu0 %v1700
      %1726 = vmatpush.msra.mxu0 %v1699
      %1727 = vmatpush.msra.mxu0 %v1698
      %1728 = vmatpush.msra.mxu0 %v1697
      %1729 = vmatpush.msra.mxu0 %v1696
      %1730 = vmatpush.msra.mxu0 %v1695
      %1731 = vmatpush.msra.mxu0 %v1694
      %1732 = vmatpush.msra.mxu0 %v1693
      %1733 = vmatmul.f32.gmra.mxu0 %v1428
      %v1734 = vpop.f32.mrf.mxu0
      %v1735 = vadd.f32 0.0, %v1734
      %1736 = vmatmul.f32.gmra.mxu0 %v1430
      %v1737 = vpop.f32.mrf.mxu0
      %v1738 = vadd.f32 0.0, %v1737
      %1739 = vmatmul.f32.gmra.mxu0 %v1432
      %v1740 = vpop.f32.mrf.mxu0
      %v1741 = vadd.f32 0.0, %v1740
      %1742 = vmatmul.f32.gmra.mxu0 %v1434
      %v1743 = vpop.f32.mrf.mxu0
      %v1744 = vadd.f32 0.0, %v1743
      %1745 = vmatmul.f32.gmra.mxu0 %v1436
      %v1746 = vpop.f32.mrf.mxu0
      %v1747 = vadd.f32 0.0, %v1746
      %1748 = vmatmul.f32.gmra.mxu0 %v1438
      %v1749 = vpop.f32.mrf.mxu0
      %v1750 = vadd.f32 0.0, %v1749
      %1751 = vmatmul.f32.gmra.mxu0 %v1440
      %v1752 = vpop.f32.mrf.mxu0
      %v1753 = vadd.f32 0.0, %v1752
      %1754 = vmatmul.f32.gmra.mxu0 %v1442
      %v1755 = vpop.f32.mrf.mxu0
      %v1756 = vadd.f32 0.0, %v1755
      %1757 = vmatmul.f32.gmra.mxu0 %v1444
      %v1758 = vpop.f32.mrf.mxu0
      %v1759 = vadd.f32 0.0, %v1758
      %1760 = vmatmul.f32.gmra.mxu0 %v1446
      %v1761 = vpop.f32.mrf.mxu0
      %v1762 = vadd.f32 0.0, %v1761
      %1763 = vmatmul.f32.gmra.mxu0 %v1448
      %v1764 = vpop.f32.mrf.mxu0
      %v1765 = vadd.f32 0.0, %v1764
      %1766 = vmatmul.f32.gmra.mxu0 %v1450
      %v1767 = vpop.f32.mrf.mxu0
      %v1768 = vadd.f32 0.0, %v1767
      %1769 = vmatmul.f32.gmra.mxu0 %v1452
      %v1770 = vpop.f32.mrf.mxu0
      %v1771 = vadd.f32 0.0, %v1770
      %1772 = vmatmul.f32.gmra.mxu0 %v1454
      %v1773 = vpop.f32.mrf.mxu0
      %v1774 = vadd.f32 0.0, %v1773
      %1775 = vmatmul.f32.gmra.mxu0 %v1456
      %v1776 = vpop.f32.mrf.mxu0
      %v1777 = vadd.f32 0.0, %v1776
      %1778 = vmatmul.f32.gmra.mxu0 %v1458
      %v1779 = vpop.f32.mrf.mxu0
      %v1780 = vadd.f32 0.0, %v1779
      %1781 = vmatmul.f32.gmra.mxu0 %v1460
      %v1782 = vpop.f32.mrf.mxu0
      %v1783 = vadd.f32 0.0, %v1782
      %1784 = vmatmul.f32.gmra.mxu0 %v1462
      %v1785 = vpop.f32.mrf.mxu0
      %v1786 = vadd.f32 0.0, %v1785
      %1787 = vmatmul.f32.gmra.mxu0 %v1464
      %v1788 = vpop.f32.mrf.mxu0
      %v1789 = vadd.f32 0.0, %v1788
      %1790 = vmatmul.f32.gmra.mxu0 %v1466
      %v1791 = vpop.f32.mrf.mxu0
      %v1792 = vadd.f32 0.0, %v1791
      %1793 = vmatmul.f32.gmra.mxu0 %v1468
      %v1794 = vpop.f32.mrf.mxu0
      %v1795 = vadd.f32 0.0, %v1794
      %1796 = vmatmul.f32.gmra.mxu0 %v1470
      %v1797 = vpop.f32.mrf.mxu0
      %v1798 = vadd.f32 0.0, %v1797
      %1799 = vmatmul.f32.gmra.mxu0 %v1472
      %v1800 = vpop.f32.mrf.mxu0
      %v1801 = vadd.f32 0.0, %v1800
      %1802 = vmatmul.f32.gmra.mxu0 %v1474
      %v1803 = vpop.f32.mrf.mxu0
      %v1804 = vadd.f32 0.0, %v1803
      %1805 = vmatmul.f32.gmra.mxu0 %v1476
      %v1806 = vpop.f32.mrf.mxu0
      %v1807 = vadd.f32 0.0, %v1806
      %1808 = vmatmul.f32.gmra.mxu0 %v1478
      %v1809 = vpop.f32.mrf.mxu0
      %v1810 = vadd.f32 0.0, %v1809
      %1811 = vmatmul.f32.gmra.mxu0 %v1480
      %v1812 = vpop.f32.mrf.mxu0
      %v1813 = vadd.f32 0.0, %v1812
      %1814 = vmatmul.f32.gmra.mxu0 %v1482
      %v1815 = vpop.f32.mrf.mxu0
      %v1816 = vadd.f32 0.0, %v1815
      %1817 = vmatmul.f32.gmra.mxu0 %v1484
      %v1818 = vpop.f32.mrf.mxu0
      %v1819 = vadd.f32 0.0, %v1818
      %1820 = vmatmul.f32.gmra.mxu0 %v1486
      %v1821 = vpop.f32.mrf.mxu0
      %v1822 = vadd.f32 0.0, %v1821
      %1823 = vmatmul.f32.gmra.mxu0 %v1488
      %v1824 = vpop.f32.mrf.mxu0
      %v1825 = vadd.f32 0.0, %v1824
      %1826 = vmatmul.f32.gmra.mxu0 %v1490
      %v1827 = vpop.f32.mrf.mxu0
      %v1828 = vadd.f32 0.0, %v1827
      %1829 = vmatmul.f32.gmra.mxu0 %v1492
      %v1830 = vpop.f32.mrf.mxu0
      %v1831 = vadd.f32 0.0, %v1830
      %1832 = vmatmul.f32.gmra.mxu0 %v1494
      %v1833 = vpop.f32.mrf.mxu0
      %v1834 = vadd.f32 0.0, %v1833
      %1835 = vmatmul.f32.gmra.mxu0 %v1712
      %v1836 = vpop.f32.mrf.mxu0
      %v1837 = vadd.f32 0.0, %v1836
      %1838 = vmatmul.f32.gmra.mxu0 %v1714
      %v1839 = vpop.f32.mrf.mxu0
      %v1840 = vadd.f32 0.0, %v1839
      %1841 = vdwg.mxu0
      %v1842 = vadd.f32 %v1656, %v1735
      %v1843 = vadd.f32 %v1657, %v1738
      %v1844 = vadd.f32 %v1658, %v1741
      %v1845 = vadd.f32 %v1659, %v1744
      %v1846 = vadd.f32 %v1660, %v1747
      %v1847 = vadd.f32 %v1661, %v1750
      %v1848 = vadd.f32 %v1662, %v1753
      %v1849 = vadd.f32 %v1663, %v1756
      %v1850 = vadd.f32 %v1664, %v1759
      %v1851 = vadd.f32 %v1665, %v1762
      %v1852 = vadd.f32 %v1666, %v1765
      %v1853 = vadd.f32 %v1667, %v1768
      %v1854 = vadd.f32 %v1668, %v1771
      %v1855 = vadd.f32 %v1669, %v1774
      %v1856 = vadd.f32 %v1670, %v1777
      %v1857 = vadd.f32 %v1671, %v1780
      %v1858 = vadd.f32 %v1672, %v1783
      %v1859 = vadd.f32 %v1673, %v1786
      %v1860 = vadd.f32 %v1674, %v1789
      %v1861 = vadd.f32 %v1675, %v1792
      %v1862 = vadd.f32 %v1676, %v1795
      %v1863 = vadd.f32 %v1677, %v1798
      %v1864 = vadd.f32 %v1678, %v1801
      %v1865 = vadd.f32 %v1679, %v1804
      %v1866 = vadd.f32 %v1680, %v1807
      %v1867 = vadd.f32 %v1681, %v1810
      %v1868 = vadd.f32 %v1682, %v1813
      %v1869 = vadd.f32 %v1683, %v1816
      %v1870 = vadd.f32 %v1684, %v1819
      %v1871 = vadd.f32 %v1685, %v1822
      %v1872 = vadd.f32 %v1686, %v1825
      %v1873 = vadd.f32 %v1687, %v1828
      %v1874 = vadd.f32 %v1688, %v1831
      %v1875 = vadd.f32 %v1689, %v1834
      %v1876 = vadd.f32 %v1690, %v1837
      %v1877 = vadd.f32 %v1691, %v1840
      %s1878 = scalar_lea.vmem %s1, 896
      %v1879 = vld [vmem:[%s1878] sm:$0xff]
      %v1880 = vld [vmem:[%s1878 + $0x8] sm:$0xff]
      %v1881 = vld [vmem:[%s1878 + $0x10] sm:$0xff]
      %v1882 = vld [vmem:[%s1878 + $0x18] sm:$0xff]
      %v1883 = vld [vmem:[%s1878 + $0x20] sm:$0xff]
      %v1884 = vld [vmem:[%s1878 + $0x28] sm:$0xff]
      %v1885 = vld [vmem:[%s1878 + $0x30] sm:$0xff]
      %v1886 = vld [vmem:[%s1878 + $0x38] sm:$0xff]
      %v1887 = vld [vmem:[%s1878 + $0x40] sm:$0xff]
      %v1888 = vld [vmem:[%s1878 + $0x48] sm:$0xff]
      %v1889 = vld [vmem:[%s1878 + $0x50] sm:$0xff]
      %v1890 = vld [vmem:[%s1878 + $0x58] sm:$0xff]
      %v1891 = vld [vmem:[%s1878 + $0x60] sm:$0xff]
      %v1892 = vld [vmem:[%s1878 + $0x68] sm:$0xff]
      %v1893 = vld [vmem:[%s1878 + $0x70] sm:$0xff]
      %v1894 = vld [vmem:[%s1878 + $0x78] sm:$0xff]
      %vm1895 = vcmask 1042432
      %v1896 = vrot.slane %v175, 5
      %v1897 = vrot.slane %v176, 5
      %v1898 = vsel %vm1895, %v1896, %v1897
      %v1899 = vrot.slane %v177, 5
      %v1900 = vsel %vm1895, %v1897, %v1899
      %v1901 = vrot.slane %v178, 5
      %v1902 = vsel %vm1895, %v1899, %v1901
      %v1903 = vrot.slane %v179, 5
      %v1904 = vsel %vm1895, %v1901, %v1903
      %v1905 = vrot.slane %v180, 5
      %v1906 = vsel %vm1895, %v1903, %v1905
      %v1907 = vrot.slane %v181, 5
      %v1908 = vsel %vm1895, %v1905, %v1907
      %v1909 = vrot.slane %v182, 5
      %v1910 = vsel %vm1895, %v1907, %v1909
      %v1911 = vrot.slane %v183, 5
      %v1912 = vsel %vm1895, %v1909, %v1911
      %v1913 = vrot.slane %v184, 5
      %v1914 = vsel %vm1895, %v1911, %v1913
      %v1915 = vrot.slane %v185, 5
      %v1916 = vsel %vm1895, %v1913, %v1915
      %v1917 = vrot.slane %v186, 5
      %v1918 = vsel %vm1895, %v1915, %v1917
      %v1919 = vrot.slane %v187, 5
      %v1920 = vsel %vm1895, %v1917, %v1919
      %v1921 = vrot.slane %v188, 5
      %v1922 = vsel %vm1895, %v1919, %v1921
      %v1923 = vrot.slane %v189, 5
      %v1924 = vsel %vm1895, %v1921, %v1923
      %v1925 = vrot.slane %v190, 5
      %v1926 = vsel %vm1895, %v1923, %v1925
      %v1927 = vrot.slane %v191, 5
      %v1928 = vsel %vm1895, %v1925, %v1927
      %v1929 = vrot.slane %v192, 5
      %v1930 = vsel %vm1895, %v1927, %v1929
      %v1931 = vrot.slane %v193, 5
      %v1932 = vsel %vm1895, %v1929, %v1931
      %v1933 = vrot.slane %v194, 5
      %v1934 = vsel %vm1895, %v1931, %v1933
      %v1935 = vrot.slane %v195, 5
      %v1936 = vsel %vm1895, %v1933, %v1935
      %v1937 = vrot.slane %v196, 5
      %v1938 = vsel %vm1895, %v1935, %v1937
      %v1939 = vrot.slane %v197, 5
      %v1940 = vsel %vm1895, %v1937, %v1939
      %v1941 = vrot.slane %v198, 5
      %v1942 = vsel %vm1895, %v1939, %v1941
      %v1943 = vrot.slane %v199, 5
      %v1944 = vsel %vm1895, %v1941, %v1943
      %v1945 = vrot.slane %v200, 5
      %v1946 = vsel %vm1895, %v1943, %v1945
      %v1947 = vrot.slane %v201, 5
      %v1948 = vsel %vm1895, %v1945, %v1947
      %v1949 = vrot.slane %v202, 5
      %v1950 = vsel %vm1895, %v1947, %v1949
      %v1951 = vrot.slane %v203, 5
      %v1952 = vsel %vm1895, %v1949, %v1951
      %v1953 = vrot.slane %v204, 5
      %v1954 = vsel %vm1895, %v1951, %v1953
      %v1955 = vrot.slane %v205, 5
      %v1956 = vsel %vm1895, %v1953, %v1955
      %v1957 = vrot.slane %v206, 5
      %v1958 = vsel %vm1895, %v1955, %v1957
      %v1959 = vrot.slane %v207, 5
      %v1960 = vsel %vm1895, %v1957, %v1959
      %v1961 = vrot.slane %v208, 5
      %v1962 = vsel %vm1895, %v1959, %v1961
      %v1963 = vrot.slane %v209, 5
      %v1964 = vsel %vm1895, %v1961, %v1963
      %v1965 = vrot.slane %v210, 5
      %v1966 = vsel %vm1895, %v1963, %v1965
      %v1967 = vrot.slane %v211, 5
      %v1968 = vsel %vm1895, %v1965, %v1967
      %2005 = vmatpush.msra.mxu0 %v1894
      %2006 = vmatpush.msra.mxu0 %v1893
      %2007 = vmatpush.msra.mxu0 %v1892
      %2008 = vmatpush.msra.mxu0 %v1891
      %2009 = vmatpush.msra.mxu0 %v1890
      %2010 = vmatpush.msra.mxu0 %v1889
      %2011 = vmatpush.msra.mxu0 %v1888
      %2012 = vmatpush.msra.mxu0 %v1887
      %2013 = vmatpush.msra.mxu0 %v1886
      %2014 = vmatpush.msra.mxu0 %v1885
      %2015 = vmatpush.msra.mxu0 %v1884
      %2016 = vmatpush.msra.mxu0 %v1883
      %2017 = vmatpush.msra.mxu0 %v1882
      %2018 = vmatpush.msra.mxu0 %v1881
      %2019 = vmatpush.msra.mxu0 %v1880
      %2020 = vmatpush.msra.mxu0 %v1879
      %2021 = vmatmul.f32.gmra.mxu0 %v1898
      %v2022 = vpop.f32.mrf.mxu0
      %v2023 = vadd.f32 0.0, %v2022
      %2024 = vmatmul.f32.gmra.mxu0 %v1900
      %v2025 = vpop.f32.mrf.mxu0
      %v2026 = vadd.f32 0.0, %v2025
      %2027 = vmatmul.f32.gmra.mxu0 %v1902
      %v2028 = vpop.f32.mrf.mxu0
      %v2029 = vadd.f32 0.0, %v2028
      %2030 = vmatmul.f32.gmra.mxu0 %v1904
      %v2031 = vpop.f32.mrf.mxu0
      %v2032 = vadd.f32 0.0, %v2031
      %2033 = vmatmul.f32.gmra.mxu0 %v1906
      %v2034 = vpop.f32.mrf.mxu0
      %v2035 = vadd.f32 0.0, %v2034
      %2036 = vmatmul.f32.gmra.mxu0 %v1908
      %v2037 = vpop.f32.mrf.mxu0
      %v2038 = vadd.f32 0.0, %v2037
      %2039 = vmatmul.f32.gmra.mxu0 %v1910
      %v2040 = vpop.f32.mrf.mxu0
      %v2041 = vadd.f32 0.0, %v2040
      %2042 = vmatmul.f32.gmra.mxu0 %v1912
      %v2043 = vpop.f32.mrf.mxu0
      %v2044 = vadd.f32 0.0, %v2043
      %2045 = vmatmul.f32.gmra.mxu0 %v1914
      %v2046 = vpop.f32.mrf.mxu0
      %v2047 = vadd.f32 0.0, %v2046
      %2048 = vmatmul.f32.gmra.mxu0 %v1916
      %v2049 = vpop.f32.mrf.mxu0
      %v2050 = vadd.f32 0.0, %v2049
      %2051 = vmatmul.f32.gmra.mxu0 %v1918
      %v2052 = vpop.f32.mrf.mxu0
      %v2053 = vadd.f32 0.0, %v2052
      %2054 = vmatmul.f32.gmra.mxu0 %v1920
      %v2055 = vpop.f32.mrf.mxu0
      %v2056 = vadd.f32 0.0, %v2055
      %2057 = vmatmul.f32.gmra.mxu0 %v1922
      %v2058 = vpop.f32.mrf.mxu0
      %v2059 = vadd.f32 0.0, %v2058
      %2060 = vmatmul.f32.gmra.mxu0 %v1924
      %v2061 = vpop.f32.mrf.mxu0
      %v2062 = vadd.f32 0.0, %v2061
      %2063 = vmatmul.f32.gmra.mxu0 %v1926
      %v2064 = vpop.f32.mrf.mxu0
      %v2065 = vadd.f32 0.0, %v2064
      %2066 = vmatmul.f32.gmra.mxu0 %v1928
      %v2067 = vpop.f32.mrf.mxu0
      %v2068 = vadd.f32 0.0, %v2067
      %2069 = vmatmul.f32.gmra.mxu0 %v1930
      %v2070 = vpop.f32.mrf.mxu0
      %v2071 = vadd.f32 0.0, %v2070
      %2072 = vmatmul.f32.gmra.mxu0 %v1932
      %v2073 = vpop.f32.mrf.mxu0
      %v2074 = vadd.f32 0.0, %v2073
      %2075 = vmatmul.f32.gmra.mxu0 %v1934
      %v2076 = vpop.f32.mrf.mxu0
      %v2077 = vadd.f32 0.0, %v2076
      %2078 = vmatmul.f32.gmra.mxu0 %v1936
      %v2079 = vpop.f32.mrf.mxu0
      %v2080 = vadd.f32 0.0, %v2079
      %2081 = vmatmul.f32.gmra.mxu0 %v1938
      %v2082 = vpop.f32.mrf.mxu0
      %v2083 = vadd.f32 0.0, %v2082
      %2084 = vmatmul.f32.gmra.mxu0 %v1940
      %v2085 = vpop.f32.mrf.mxu0
      %v2086 = vadd.f32 0.0, %v2085
      %2087 = vmatmul.f32.gmra.mxu0 %v1942
      %v2088 = vpop.f32.mrf.mxu0
      %v2089 = vadd.f32 0.0, %v2088
      %2090 = vmatmul.f32.gmra.mxu0 %v1944
      %v2091 = vpop.f32.mrf.mxu0
      %v2092 = vadd.f32 0.0, %v2091
      %2093 = vmatmul.f32.gmra.mxu0 %v1946
      %v2094 = vpop.f32.mrf.mxu0
      %v2095 = vadd.f32 0.0, %v2094
      %2096 = vmatmul.f32.gmra.mxu0 %v1948
      %v2097 = vpop.f32.mrf.mxu0
      %v2098 = vadd.f32 0.0, %v2097
      %2099 = vmatmul.f32.gmra.mxu0 %v1950
      %v2100 = vpop.f32.mrf.mxu0
      %v2101 = vadd.f32 0.0, %v2100
      %2102 = vmatmul.f32.gmra.mxu0 %v1952
      %v2103 = vpop.f32.mrf.mxu0
      %v2104 = vadd.f32 0.0, %v2103
      %2105 = vmatmul.f32.gmra.mxu0 %v1954
      %v2106 = vpop.f32.mrf.mxu0
      %v2107 = vadd.f32 0.0, %v2106
      %2108 = vmatmul.f32.gmra.mxu0 %v1956
      %v2109 = vpop.f32.mrf.mxu0
      %v2110 = vadd.f32 0.0, %v2109
      %2111 = vmatmul.f32.gmra.mxu0 %v1958
      %v2112 = vpop.f32.mrf.mxu0
      %v2113 = vadd.f32 0.0, %v2112
      %2114 = vmatmul.f32.gmra.mxu0 %v1960
      %v2115 = vpop.f32.mrf.mxu0
      %v2116 = vadd.f32 0.0, %v2115
      %2117 = vmatmul.f32.gmra.mxu0 %v1962
      %v2118 = vpop.f32.mrf.mxu0
      %v2119 = vadd.f32 0.0, %v2118
      %2120 = vmatmul.f32.gmra.mxu0 %v1964
      %v2121 = vpop.f32.mrf.mxu0
      %v2122 = vadd.f32 0.0, %v2121
      %2123 = vmatmul.f32.gmra.mxu0 %v1966
      %v2124 = vpop.f32.mrf.mxu0
      %v2125 = vadd.f32 0.0, %v2124
      %2126 = vmatmul.f32.gmra.mxu0 %v1968
      %v2127 = vpop.f32.mrf.mxu0
      %v2128 = vadd.f32 0.0, %v2127
      %2129 = vdwg.mxu0
      %v2130 = vadd.f32 %v1842, %v2023
      %v2131 = vadd.f32 %v1843, %v2026
      %v2132 = vadd.f32 %v1844, %v2029
      %v2133 = vadd.f32 %v1845, %v2032
      %v2134 = vadd.f32 %v1846, %v2035
      %v2135 = vadd.f32 %v1847, %v2038
      %v2136 = vadd.f32 %v1848, %v2041
      %v2137 = vadd.f32 %v1849, %v2044
      %v2138 = vadd.f32 %v1850, %v2047
      %v2139 = vadd.f32 %v1851, %v2050
      %v2140 = vadd.f32 %v1852, %v2053
      %v2141 = vadd.f32 %v1853, %v2056
      %v2142 = vadd.f32 %v1854, %v2059
      %v2143 = vadd.f32 %v1855, %v2062
      %v2144 = vadd.f32 %v1856, %v2065
      %v2145 = vadd.f32 %v1857, %v2068
      %v2146 = vadd.f32 %v1858, %v2071
      %v2147 = vadd.f32 %v1859, %v2074
      %v2148 = vadd.f32 %v1860, %v2077
      %v2149 = vadd.f32 %v1861, %v2080
      %v2150 = vadd.f32 %v1862, %v2083
      %v2151 = vadd.f32 %v1863, %v2086
      %v2152 = vadd.f32 %v1864, %v2089
      %v2153 = vadd.f32 %v1865, %v2092
      %v2154 = vadd.f32 %v1866, %v2095
      %v2155 = vadd.f32 %v1867, %v2098
      %v2156 = vadd.f32 %v1868, %v2101
      %v2157 = vadd.f32 %v1869, %v2104
      %v2158 = vadd.f32 %v1870, %v2107
      %v2159 = vadd.f32 %v1871, %v2110
      %v2160 = vadd.f32 %v1872, %v2113
      %v2161 = vadd.f32 %v1873, %v2116
      %v2162 = vadd.f32 %v1874, %v2119
      %v2163 = vadd.f32 %v1875, %v2122
      %v2164 = vadd.f32 %v1876, %v2125
      %v2165 = vadd.f32 %v1877, %v2128
      %s2166 = scalar_lea.vmem %s1, 1024
      %v2167 = vld [vmem:[%s2166] sm:$0xff]
      %v2168 = vld [vmem:[%s2166 + $0x8] sm:$0xff]
      %v2169 = vld [vmem:[%s2166 + $0x10] sm:$0xff]
      %v2170 = vld [vmem:[%s2166 + $0x18] sm:$0xff]
      %v2171 = vld [vmem:[%s2166 + $0x20] sm:$0xff]
      %v2172 = vld [vmem:[%s2166 + $0x28] sm:$0xff]
      %v2173 = vld [vmem:[%s2166 + $0x30] sm:$0xff]
      %v2174 = vld [vmem:[%s2166 + $0x38] sm:$0xff]
      %v2175 = vld [vmem:[%s2166 + $0x40] sm:$0xff]
      %v2176 = vld [vmem:[%s2166 + $0x48] sm:$0xff]
      %v2177 = vld [vmem:[%s2166 + $0x50] sm:$0xff]
      %v2178 = vld [vmem:[%s2166 + $0x58] sm:$0xff]
      %v2179 = vld [vmem:[%s2166 + $0x60] sm:$0xff]
      %v2180 = vld [vmem:[%s2166 + $0x68] sm:$0xff]
      %v2181 = vld [vmem:[%s2166 + $0x70] sm:$0xff]
      %v2182 = vld [vmem:[%s2166 + $0x78] sm:$0xff]
      %vm2183 = vcmask 1041408
      %v2184 = vrot.slane %v175, 6
      %v2185 = vrot.slane %v176, 6
      %v2186 = vsel %vm2183, %v2184, %v2185
      %v2187 = vrot.slane %v177, 6
      %v2188 = vsel %vm2183, %v2185, %v2187
      %v2189 = vrot.slane %v178, 6
      %v2190 = vsel %vm2183, %v2187, %v2189
      %v2191 = vrot.slane %v179, 6
      %v2192 = vsel %vm2183, %v2189, %v2191
      %v2193 = vrot.slane %v180, 6
      %v2194 = vsel %vm2183, %v2191, %v2193
      %v2195 = vrot.slane %v181, 6
      %v2196 = vsel %vm2183, %v2193, %v2195
      %v2197 = vrot.slane %v182, 6
      %v2198 = vsel %vm2183, %v2195, %v2197
      %v2199 = vrot.slane %v183, 6
      %v2200 = vsel %vm2183, %v2197, %v2199
      %v2201 = vrot.slane %v184, 6
      %v2202 = vsel %vm2183, %v2199, %v2201
      %v2203 = vrot.slane %v185, 6
      %v2204 = vsel %vm2183, %v2201, %v2203
      %v2205 = vrot.slane %v186, 6
      %v2206 = vsel %vm2183, %v2203, %v2205
      %v2207 = vrot.slane %v187, 6
      %v2208 = vsel %vm2183, %v2205, %v2207
      %v2209 = vrot.slane %v188, 6
      %v2210 = vsel %vm2183, %v2207, %v2209
      %v2211 = vrot.slane %v189, 6
      %v2212 = vsel %vm2183, %v2209, %v2211
      %v2213 = vrot.slane %v190, 6
      %v2214 = vsel %vm2183, %v2211, %v2213
      %v2215 = vrot.slane %v191, 6
      %v2216 = vsel %vm2183, %v2213, %v2215
      %v2217 = vrot.slane %v192, 6
      %v2218 = vsel %vm2183, %v2215, %v2217
      %v2219 = vrot.slane %v193, 6
      %v2220 = vsel %vm2183, %v2217, %v2219
      %v2221 = vrot.slane %v194, 6
      %v2222 = vsel %vm2183, %v2219, %v2221
      %v2223 = vrot.slane %v195, 6
      %v2224 = vsel %vm2183, %v2221, %v2223
      %v2225 = vrot.slane %v196, 6
      %v2226 = vsel %vm2183, %v2223, %v2225
      %v2227 = vrot.slane %v197, 6
      %v2228 = vsel %vm2183, %v2225, %v2227
      %v2229 = vrot.slane %v198, 6
      %v2230 = vsel %vm2183, %v2227, %v2229
      %v2231 = vrot.slane %v199, 6
      %v2232 = vsel %vm2183, %v2229, %v2231
      %v2233 = vrot.slane %v200, 6
      %v2234 = vsel %vm2183, %v2231, %v2233
      %v2235 = vrot.slane %v201, 6
      %v2236 = vsel %vm2183, %v2233, %v2235
      %v2237 = vrot.slane %v202, 6
      %v2238 = vsel %vm2183, %v2235, %v2237
      %v2239 = vrot.slane %v203, 6
      %v2240 = vsel %vm2183, %v2237, %v2239
      %v2241 = vrot.slane %v204, 6
      %v2242 = vsel %vm2183, %v2239, %v2241
      %v2243 = vrot.slane %v205, 6
      %v2244 = vsel %vm2183, %v2241, %v2243
      %v2245 = vrot.slane %v206, 6
      %v2246 = vsel %vm2183, %v2243, %v2245
      %v2247 = vrot.slane %v207, 6
      %v2248 = vsel %vm2183, %v2245, %v2247
      %v2249 = vrot.slane %v208, 6
      %v2250 = vsel %vm2183, %v2247, %v2249
      %v2251 = vrot.slane %v209, 6
      %v2252 = vsel %vm2183, %v2249, %v2251
      %v2253 = vrot.slane %v210, 6
      %v2254 = vsel %vm2183, %v2251, %v2253
      %v2255 = vrot.slane %v211, 6
      %v2256 = vsel %vm2183, %v2253, %v2255
      %2293 = vmatpush.msra.mxu0 %v2182
      %2294 = vmatpush.msra.mxu0 %v2181
      %2295 = vmatpush.msra.mxu0 %v2180
      %2296 = vmatpush.msra.mxu0 %v2179
      %2297 = vmatpush.msra.mxu0 %v2178
      %2298 = vmatpush.msra.mxu0 %v2177
      %2299 = vmatpush.msra.mxu0 %v2176
      %2300 = vmatpush.msra.mxu0 %v2175
      %2301 = vmatpush.msra.mxu0 %v2174
      %2302 = vmatpush.msra.mxu0 %v2173
      %2303 = vmatpush.msra.mxu0 %v2172
      %2304 = vmatpush.msra.mxu0 %v2171
      %2305 = vmatpush.msra.mxu0 %v2170
      %2306 = vmatpush.msra.mxu0 %v2169
      %2307 = vmatpush.msra.mxu0 %v2168
      %2308 = vmatpush.msra.mxu0 %v2167
      %2309 = vmatmul.f32.gmra.mxu0 %v2186
      %v2310 = vpop.f32.mrf.mxu0
      %v2311 = vadd.f32 0.0, %v2310
      %2312 = vmatmul.f32.gmra.mxu0 %v2188
      %v2313 = vpop.f32.mrf.mxu0
      %v2314 = vadd.f32 0.0, %v2313
      %2315 = vmatmul.f32.gmra.mxu0 %v2190
      %v2316 = vpop.f32.mrf.mxu0
      %v2317 = vadd.f32 0.0, %v2316
      %2318 = vmatmul.f32.gmra.mxu0 %v2192
      %v2319 = vpop.f32.mrf.mxu0
      %v2320 = vadd.f32 0.0, %v2319
      %2321 = vmatmul.f32.gmra.mxu0 %v2194
      %v2322 = vpop.f32.mrf.mxu0
      %v2323 = vadd.f32 0.0, %v2322
      %2324 = vmatmul.f32.gmra.mxu0 %v2196
      %v2325 = vpop.f32.mrf.mxu0
      %v2326 = vadd.f32 0.0, %v2325
      %2327 = vmatmul.f32.gmra.mxu0 %v2198
      %v2328 = vpop.f32.mrf.mxu0
      %v2329 = vadd.f32 0.0, %v2328
      %2330 = vmatmul.f32.gmra.mxu0 %v2200
      %v2331 = vpop.f32.mrf.mxu0
      %v2332 = vadd.f32 0.0, %v2331
      %2333 = vmatmul.f32.gmra.mxu0 %v2202
      %v2334 = vpop.f32.mrf.mxu0
      %v2335 = vadd.f32 0.0, %v2334
      %2336 = vmatmul.f32.gmra.mxu0 %v2204
      %v2337 = vpop.f32.mrf.mxu0
      %v2338 = vadd.f32 0.0, %v2337
      %2339 = vmatmul.f32.gmra.mxu0 %v2206
      %v2340 = vpop.f32.mrf.mxu0
      %v2341 = vadd.f32 0.0, %v2340
      %2342 = vmatmul.f32.gmra.mxu0 %v2208
      %v2343 = vpop.f32.mrf.mxu0
      %v2344 = vadd.f32 0.0, %v2343
      %2345 = vmatmul.f32.gmra.mxu0 %v2210
      %v2346 = vpop.f32.mrf.mxu0
      %v2347 = vadd.f32 0.0, %v2346
      %2348 = vmatmul.f32.gmra.mxu0 %v2212
      %v2349 = vpop.f32.mrf.mxu0
      %v2350 = vadd.f32 0.0, %v2349
      %2351 = vmatmul.f32.gmra.mxu0 %v2214
      %v2352 = vpop.f32.mrf.mxu0
      %v2353 = vadd.f32 0.0, %v2352
      %2354 = vmatmul.f32.gmra.mxu0 %v2216
      %v2355 = vpop.f32.mrf.mxu0
      %v2356 = vadd.f32 0.0, %v2355
      %2357 = vmatmul.f32.gmra.mxu0 %v2218
      %v2358 = vpop.f32.mrf.mxu0
      %v2359 = vadd.f32 0.0, %v2358
      %2360 = vmatmul.f32.gmra.mxu0 %v2220
      %v2361 = vpop.f32.mrf.mxu0
      %v2362 = vadd.f32 0.0, %v2361
      %2363 = vmatmul.f32.gmra.mxu0 %v2222
      %v2364 = vpop.f32.mrf.mxu0
      %v2365 = vadd.f32 0.0, %v2364
      %2366 = vmatmul.f32.gmra.mxu0 %v2224
      %v2367 = vpop.f32.mrf.mxu0
      %v2368 = vadd.f32 0.0, %v2367
      %2369 = vmatmul.f32.gmra.mxu0 %v2226
      %v2370 = vpop.f32.mrf.mxu0
      %v2371 = vadd.f32 0.0, %v2370
      %2372 = vmatmul.f32.gmra.mxu0 %v2228
      %v2373 = vpop.f32.mrf.mxu0
      %v2374 = vadd.f32 0.0, %v2373
      %2375 = vmatmul.f32.gmra.mxu0 %v2230
      %v2376 = vpop.f32.mrf.mxu0
      %v2377 = vadd.f32 0.0, %v2376
      %2378 = vmatmul.f32.gmra.mxu0 %v2232
      %v2379 = vpop.f32.mrf.mxu0
      %v2380 = vadd.f32 0.0, %v2379
      %2381 = vmatmul.f32.gmra.mxu0 %v2234
      %v2382 = vpop.f32.mrf.mxu0
      %v2383 = vadd.f32 0.0, %v2382
      %2384 = vmatmul.f32.gmra.mxu0 %v2236
      %v2385 = vpop.f32.mrf.mxu0
      %v2386 = vadd.f32 0.0, %v2385
      %2387 = vmatmul.f32.gmra.mxu0 %v2238
      %v2388 = vpop.f32.mrf.mxu0
      %v2389 = vadd.f32 0.0, %v2388
      %2390 = vmatmul.f32.gmra.mxu0 %v2240
      %v2391 = vpop.f32.mrf.mxu0
      %v2392 = vadd.f32 0.0, %v2391
      %2393 = vmatmul.f32.gmra.mxu0 %v2242
      %v2394 = vpop.f32.mrf.mxu0
      %v2395 = vadd.f32 0.0, %v2394
      %2396 = vmatmul.f32.gmra.mxu0 %v2244
      %v2397 = vpop.f32.mrf.mxu0
      %v2398 = vadd.f32 0.0, %v2397
      %2399 = vmatmul.f32.gmra.mxu0 %v2246
      %v2400 = vpop.f32.mrf.mxu0
      %v2401 = vadd.f32 0.0, %v2400
      %2402 = vmatmul.f32.gmra.mxu0 %v2248
      %v2403 = vpop.f32.mrf.mxu0
      %v2404 = vadd.f32 0.0, %v2403
      %2405 = vmatmul.f32.gmra.mxu0 %v2250
      %v2406 = vpop.f32.mrf.mxu0
      %v2407 = vadd.f32 0.0, %v2406
      %2408 = vmatmul.f32.gmra.mxu0 %v2252
      %v2409 = vpop.f32.mrf.mxu0
      %v2410 = vadd.f32 0.0, %v2409
      %2411 = vmatmul.f32.gmra.mxu0 %v2254
      %v2412 = vpop.f32.mrf.mxu0
      %v2413 = vadd.f32 0.0, %v2412
      %2414 = vmatmul.f32.gmra.mxu0 %v2256
      %v2415 = vpop.f32.mrf.mxu0
      %v2416 = vadd.f32 0.0, %v2415
      %2417 = vdwg.mxu0
      %v2418 = vadd.f32 %v2130, %v2311
      %v2419 = vadd.f32 %v2131, %v2314
      %v2420 = vadd.f32 %v2132, %v2317
      %v2421 = vadd.f32 %v2133, %v2320
      %v2422 = vadd.f32 %v2134, %v2323
      %v2423 = vadd.f32 %v2135, %v2326
      %v2424 = vadd.f32 %v2136, %v2329
      %v2425 = vadd.f32 %v2137, %v2332
      %v2426 = vadd.f32 %v2138, %v2335
      %v2427 = vadd.f32 %v2139, %v2338
      %v2428 = vadd.f32 %v2140, %v2341
      %v2429 = vadd.f32 %v2141, %v2344
      %v2430 = vadd.f32 %v2142, %v2347
      %v2431 = vadd.f32 %v2143, %v2350
      %v2432 = vadd.f32 %v2144, %v2353
      %v2433 = vadd.f32 %v2145, %v2356
      %v2434 = vadd.f32 %v2146, %v2359
      %v2435 = vadd.f32 %v2147, %v2362
      %v2436 = vadd.f32 %v2148, %v2365
      %v2437 = vadd.f32 %v2149, %v2368
      %v2438 = vadd.f32 %v2150, %v2371
      %v2439 = vadd.f32 %v2151, %v2374
      %v2440 = vadd.f32 %v2152, %v2377
      %v2441 = vadd.f32 %v2153, %v2380
      %v2442 = vadd.f32 %v2154, %v2383
      %v2443 = vadd.f32 %v2155, %v2386
      %v2444 = vadd.f32 %v2156, %v2389
      %v2445 = vadd.f32 %v2157, %v2392
      %v2446 = vadd.f32 %v2158, %v2395
      %v2447 = vadd.f32 %v2159, %v2398
      %v2448 = vadd.f32 %v2160, %v2401
      %v2449 = vadd.f32 %v2161, %v2404
      %v2450 = vadd.f32 %v2162, %v2407
      %v2451 = vadd.f32 %v2163, %v2410
      %v2452 = vadd.f32 %v2164, %v2413
      %v2453 = vadd.f32 %v2165, %v2416
      %v2454 = vld [vmem:[%s2] sm:$0x1]
      %v2456 = vperm.slane %v2454, 0
      %v2458 = vadd.f32 %v2418, %v2456
      %v2459 = vadd.f32 %v2419, %v2456
      %v2460 = vadd.f32 %v2420, %v2456
      %v2461 = vadd.f32 %v2421, %v2456
      %v2462 = vadd.f32 %v2422, %v2456
      %v2463 = vadd.f32 %v2423, %v2456
      %v2464 = vadd.f32 %v2424, %v2456
      %v2465 = vadd.f32 %v2425, %v2456
      %v2466 = vadd.f32 %v2426, %v2456
      %v2467 = vadd.f32 %v2427, %v2456
      %v2468 = vadd.f32 %v2428, %v2456
      %v2469 = vadd.f32 %v2429, %v2456
      %v2470 = vadd.f32 %v2430, %v2456
      %v2471 = vadd.f32 %v2431, %v2456
      %v2472 = vadd.f32 %v2432, %v2456
      %v2473 = vadd.f32 %v2433, %v2456
      %v2474 = vadd.f32 %v2434, %v2456
      %v2475 = vadd.f32 %v2435, %v2456
      %v2476 = vadd.f32 %v2436, %v2456
      %v2477 = vadd.f32 %v2437, %v2456
      %v2478 = vadd.f32 %v2438, %v2456
      %v2479 = vadd.f32 %v2439, %v2456
      %v2480 = vadd.f32 %v2440, %v2456
      %v2481 = vadd.f32 %v2441, %v2456
      %v2482 = vadd.f32 %v2442, %v2456
      %v2483 = vadd.f32 %v2443, %v2456
      %v2484 = vadd.f32 %v2444, %v2456
      %v2485 = vadd.f32 %v2445, %v2456
      %v2486 = vadd.f32 %v2446, %v2456
      %v2487 = vadd.f32 %v2447, %v2456
      %v2488 = vadd.f32 %v2448, %v2456
      %v2489 = vadd.f32 %v2449, %v2456
      %v2490 = vadd.f32 %v2450, %v2456
      %v2491 = vadd.f32 %v2451, %v2456
      %v2492 = vadd.f32 %v2452, %v2456
      %v2493 = vadd.f32 %v2453, %v2456
      %v2494 = vmax.f32 %v2458, 0.0
      %v2495 = vmax.f32 %v2459, 0.0
      %v2496 = vmax.f32 %v2460, 0.0
      %v2497 = vmax.f32 %v2461, 0.0
      %v2498 = vmax.f32 %v2462, 0.0
      %v2499 = vmax.f32 %v2463, 0.0
      %v2500 = vmax.f32 %v2464, 0.0
      %v2501 = vmax.f32 %v2465, 0.0
      %v2502 = vmax.f32 %v2466, 0.0
      %v2503 = vmax.f32 %v2467, 0.0
      %v2504 = vmax.f32 %v2468, 0.0
      %v2505 = vmax.f32 %v2469, 0.0
      %v2506 = vmax.f32 %v2470, 0.0
      %v2507 = vmax.f32 %v2471, 0.0
      %v2508 = vmax.f32 %v2472, 0.0
      %v2509 = vmax.f32 %v2473, 0.0
      %v2510 = vmax.f32 %v2474, 0.0
      %v2511 = vmax.f32 %v2475, 0.0
      %v2512 = vmax.f32 %v2476, 0.0
      %v2513 = vmax.f32 %v2477, 0.0
      %v2514 = vmax.f32 %v2478, 0.0
      %v2515 = vmax.f32 %v2479, 0.0
      %v2516 = vmax.f32 %v2480, 0.0
      %v2517 = vmax.f32 %v2481, 0.0
      %v2518 = vmax.f32 %v2482, 0.0
      %v2519 = vmax.f32 %v2483, 0.0
      %v2520 = vmax.f32 %v2484, 0.0
      %v2521 = vmax.f32 %v2485, 0.0
      %v2522 = vmax.f32 %v2486, 0.0
      %v2523 = vmax.f32 %v2487, 0.0
      %v2524 = vmax.f32 %v2488, 0.0
      %v2525 = vmax.f32 %v2489, 0.0
      %v2526 = vmax.f32 %v2490, 0.0
      %v2527 = vmax.f32 %v2491, 0.0
      %v2528 = vmax.f32 %v2492, 0.0
      %v2529 = vmax.f32 %v2493, 0.0
      %2530 = vst [vmem:[%s170] sm:$0xff] %v2494
      %2531 = vst [vmem:[%s170 + $0x8] sm:$0xff] %v2495
      %2532 = vst [vmem:[%s170 + $0x10] sm:$0xff] %v2496
      %2533 = vst [vmem:[%s170 + $0x18] sm:$0xff] %v2497
      %2534 = vst [vmem:[%s170 + $0x20] sm:$0xff] %v2498
      %2535 = vst [vmem:[%s170 + $0x28] sm:$0xff] %v2499
      %2536 = vst [vmem:[%s170 + $0x30] sm:$0xff] %v2500
      %2537 = vst [vmem:[%s170 + $0x38] sm:$0xff] %v2501
      %2538 = vst [vmem:[%s170 + $0x40] sm:$0xff] %v2502
      %2539 = vst [vmem:[%s170 + $0x48] sm:$0xff] %v2503
      %2540 = vst [vmem:[%s170 + $0x50] sm:$0xff] %v2504
      %2541 = vst [vmem:[%s170 + $0x58] sm:$0xff] %v2505
      %2542 = vst [vmem:[%s170 + $0x60] sm:$0xff] %v2506
      %2543 = vst [vmem:[%s170 + $0x68] sm:$0xff] %v2507
      %2544 = vst [vmem:[%s170 + $0x70] sm:$0xff] %v2508
      %2545 = vst [vmem:[%s170 + $0x78] sm:$0xff] %v2509
      %2546 = vst [vmem:[%s170 + $0x80] sm:$0xff] %v2510
      %2547 = vst [vmem:[%s170 + $0x88] sm:$0xff] %v2511
      %2548 = vst [vmem:[%s170 + $0x90] sm:$0xff] %v2512
      %2549 = vst [vmem:[%s170 + $0x98] sm:$0xff] %v2513
      %2550 = vst [vmem:[%s170 + $0xa0] sm:$0xff] %v2514
      %2551 = vst [vmem:[%s170 + $0xa8] sm:$0xff] %v2515
      %2552 = vst [vmem:[%s170 + $0xb0] sm:$0xff] %v2516
      %2553 = vst [vmem:[%s170 + $0xb8] sm:$0xff] %v2517
      %2554 = vst [vmem:[%s170 + $0xc0] sm:$0xff] %v2518
      %2555 = vst [vmem:[%s170 + $0xc8] sm:$0xff] %v2519
      %2556 = vst [vmem:[%s170 + $0xd0] sm:$0xff] %v2520
      %2557 = vst [vmem:[%s170 + $0xd8] sm:$0xff] %v2521
      %2558 = vst [vmem:[%s170 + $0xe0] sm:$0xff] %v2522
      %2559 = vst [vmem:[%s170 + $0xe8] sm:$0xff] %v2523
      %2560 = vst [vmem:[%s170 + $0xf0] sm:$0xff] %v2524
      %2561 = vst [vmem:[%s170 + $0xf8] sm:$0xff] %v2525
      %2562 = vst [vmem:[%s170 + $0x100] sm:$0xff] %v2526
      %2563 = vst [vmem:[%s170 + $0x108] sm:$0xff] %v2527
      %2564 = vst [vmem:[%s170 + $0x110] sm:$0xff] %v2528
      %2565 = vst [vmem:[%s170 + $0x118] sm:$0xff] %v2529
      %p2566 = scmp.lt.s32.totalorder %s14, 1
      %s2567 = scalar_select %p2566, %s14, 1
      %s2568 = smul.addr %s2567, 36
      %s2569 = smul.addr %s2568, 8
      %s2570 = scalar_lea.vmem %s3, %s2569
      // Predicated region
      $region33: #{base22_forward.3} parent=31 // pred_check
        %p2571 = pneg %p100
      $region34: #{base22_forward.3} parent=31 // pred_check_branch
        %2573 = sbr.rel (%p2571) target = $region36
      $region35: #{base22_forward.3} parent=31 // pred_region
        _
      $region36: #{base22_forward.3} parent=31 // pred_fallthru
        _
    $region32: #{base22_forward.3} parent=5 // pred_fallthru
      _
    %p2574 = scmp.le.s32.totalorder 2, %s9
    // Predicated region
    $region37: #{base22_forward.3} parent=5 // pred_check
      %p2575 = pneg %p2574
    $region38: #{base22_forward.3} parent=5 // pred_check_branch
      %2577 = sbr.rel (%p2575) target = $region40
    $region39: #{base22_forward.3} parent=5 // pred_region
      %s2578 = ssub.s32 %s9, 2
      // Predicated region
      $region41: #{base22_forward.3} parent=39 // pred_check
        %p2579 = pneg %p106
      $region42: #{base22_forward.3} parent=39 // pred_check_branch
        %2581 = sbr.rel (%p2579) target = $region44
      $region43: #{base22_forward.3} parent=39 // pred_region
        %p2582 = scmp.lt.s32.totalorder %s15, 1
        %s2583 = scalar_select %p2582, %s15, 1
        %s2584 = smul.addr %s2583, 36
        %s2585 = smul.addr %s2584, 8
        %s2586 = scalar_lea.vmem %s3, %s2585
      $region44: #{base22_forward.3} parent=39 // pred_fallthru
        _
    $region40: #{base22_forward.3} parent=5 // pred_fallthru
      _
  $region6: #{base22_forward.3} parent=0 // loop_footer
    %s13 = sadd.s32 1, %s9
  $region7: #{base22_forward.3} parent=0 // loop_footer_branch
    %8 = sbr.rel target = $region3
  $region8: #{base22_forward.3} parent=0 // loop_exit
    _

</llo_original>
